<compile_context>
chip_gen: v6e
topology: v6e:2x2x1
jax: 0.10.0
libtpu: 0.0.40
codegen_flags: <defaults>
</compile_context>

<pallas_src>
import functools
import math

import jax
import jax.numpy as jnp
from jax import lax
from jax.experimental import pallas as pl
from jax.experimental.pallas import tpu as pltpu

EPS = 1e-8


def _visual_conv1d_kernel(x_ref, w1_ref, c1_ref, g1_ref, b1_ref, wd_ref,
                          w2_ref, c2_ref, alpha_ref, o_ref, *, seq_len):
    f32 = jnp.float32
    x = x_ref[...]                                   # (V, L) block, L = B*seq_len lanes
    K = seq_len
    L = x.shape[1]
    B = L // K                                       # batch elements ("segments") in this block

    # ---- lane bookkeeping: iota + compares only (no HBM inputs, no int div/mod) ----
    row_b = lax.broadcasted_iota(jnp.int32, (B, L), 0)
    col_l = lax.broadcasted_iota(jnp.int32, (B, L), 1)
    d_bl = col_l - row_b * K
    seg_bl = ((d_bl >= 0) & (d_bl < K)).astype(f32)                 # (B, L) broadcast matrix
    lmask = 1.0 - jnp.sum((d_bl == 0).astype(f32), axis=0, keepdims=True)      # (1, L)
    rmask = 1.0 - jnp.sum((d_bl == K - 1).astype(f32), axis=0, keepdims=True)  # (1, L)

    row_l = lax.broadcasted_iota(jnp.int32, (L, B), 0)
    col_b = lax.broadcasted_iota(jnp.int32, (L, B), 1)
    d_lb = row_l - col_b * K
    seg_lb = ((d_lb >= 0) & (d_lb < K)).astype(f32)                 # (L, B) reduce matrix

    ridx_l = lax.broadcasted_iota(jnp.int32, (4, L), 0)             # hoisted row selectors,
    ridx_b = lax.broadcasted_iota(jnp.int32, (4, B), 0)             # reused by all three gLNs

    def stack4(a, b, c, d, ridx):
        # Stack four (1, N) rows into a (4, N) array via selects (avoids concatenate).
        return jnp.where(ridx == 0, a,
                         jnp.where(ridx == 1, b,
                                   jnp.where(ridx == 2, c, d)))

    def seg_stats(y):
        # Per-segment (= per batch element) mean / inv_std over (channels, K), computed on the
        # otherwise idle MXU: column sums -> one-hot reduce (4,L)x(L,B) -> one-hot broadcast
        # back (4,B)x(B,L).  Each value is split into a bf16 "hi" part plus f32 residual so the
        # statistics stay ~1e-5-accurate even if f32 matmul uses a single bf16 MXU pass.
        inv_n = 1.0 / (y.shape[0] * K)
        s = jnp.sum(y, axis=0, keepdims=True)                       # (1, L)
        s2 = jnp.sum(y * y, axis=0, keepdims=True)                  # (1, L)
        s_hi = s.astype(jnp.bfloat16).astype(f32)
        s2_hi = s2.astype(jnp.bfloat16).astype(f32)
        stats = stack4(s_hi, s - s_hi, s2_hi, s2 - s2_hi, ridx_l)   # (4, L)
        seg = jnp.dot(stats, seg_lb, preferred_element_type=f32)    # (4, B)
        mean_b = (seg[0:1] + seg[1:2]) * inv_n
        ex2_b = (seg[2:3] + seg[3:4]) * inv_n
        var_b = jnp.maximum(ex2_b - mean_b * mean_b, 0.0)
        istd_b = lax.rsqrt(var_b + EPS)                             # EUP slot
        m_hi = mean_b.astype(jnp.bfloat16).astype(f32)
        i_hi = istd_b.astype(jnp.bfloat16).astype(f32)
        mb = stack4(m_hi, mean_b - m_hi, i_hi, istd_b - i_hi, ridx_b)   # (4, B)
        bl = jnp.dot(mb, seg_bl, preferred_element_type=f32)            # (4, L)
        return bl[0:1] + bl[1:2], bl[2:3] + bl[3:4]                 # mean, inv_std per lane

    # relu_0 -> gLN_0 (gamma0/beta0 folded into w1/c1 on the host)
    y = jnp.maximum(x, 0.0)
    mean0, istd0 = seg_stats(y)
    yn = (y - mean0) * istd0
    # conv1x1 (with folded gLN_0 affine) -> relu -> gLN_1
    h = jnp.dot(w1_ref[...], yn, preferred_element_type=f32) + c1_ref[...]     # (H, L)
    h = jnp.maximum(h, 0.0)
    mean1, istd1 = seg_stats(h)
    h = (h - mean1) * istd1 * g1_ref[...] + b1_ref[...]
    # dsconv: depthwise Conv1d(H, H, 3, padding=1, groups=H, bias=False),
    # zero padding enforced per batch segment via iota-derived boundary masks.
    left = pltpu.roll(h, shift=1, axis=1) * lmask                   # h[:, k-1]
    right = pltpu.roll(h, shift=L - 1, axis=1) * rmask              # h[:, k+1]
    wd = wd_ref[...]                                                # (H, 3)
    h = wd[:, 0:1] * left + wd[:, 1:2] * h + wd[:, 2:3] * right
    # PReLU (single shared alpha, read from SMEM)
    alpha = alpha_ref[0]
    h = jnp.where(h >= 0.0, h, alpha * h)
    # gLN_2 (gamma2/beta2 folded into w2/c2) -> pw_conv -> residual
    mean2, istd2 = seg_stats(h)
    hn = (h - mean2) * istd2
    o_ref[...] = jnp.dot(w2_ref[...], hn, preferred_element_type=f32) + c2_ref[...] + x


def _default_target_blocks():
    # v7x has two TensorCores per chip -> keep the grid splittable across both; single-TC
    # v5e/v6e prefer one full-width block (the grid is just a serial loop there).
    try:
        kind = jax.devices()[0].device_kind.lower()
    except Exception:
        return 2
    return 2 if "7" in kind else 1


def _pick_block_batch(M, K, target_blocks):
    # Choose B (batch elements per grid step) so L = B*K is a multiple of 128 (unmasked vst)
    # and M % B == 0, aiming for `target_blocks` grid steps.
    target_blocks = max(1, min(target_blocks, M))
    for g in range(target_blocks, 0, -1):
        if M % g:
            continue
        b = M // g
        if (b * K) % 128 == 0:
            return b
    return M      # fall back to one full-width block (lane dim == full array dim)


@functools.partial(jax.jit, static_argnames=("block_batch",))
def visual_conv1d(x, params, block_batch=None):
    """x: (M, V, K) float32 in PyTorch Conv1d NCW layout.  Returns (M, V, K)."""
    M, V, K = x.shape
    B = _pick_block_batch(M, K, _default_target_blocks()) if block_batch is None else block_batch
    assert M % B == 0
    L = B * K
    grid = (M // B,)
    H = params["w1"].shape[0]

    # Fold gLN_0 gamma/beta into the 1x1 conv and gLN_2 gamma/beta into the pointwise conv
    # (exact algebraic fold, done once outside the kernel).
    w1f = params["w1"] * params["g0"].reshape(1, V)                 # (H, V)
    c1 = params["w1"] @ params["b0"]                                # (H, 1)
    w2f = params["w2"] * params["g2"].reshape(1, H)                 # (V, H)
    c2 = params["w2"] @ params["b2"]                                # (V, 1)

    # Flatten batch onto the lane axis so every block is lane-dense: (M, V, K) -> (V, M*K).
    # TODO(synk): for production-size K, keep neighbouring ops in this layout (or relayout
    # in-kernel) to avoid the extra HBM round-trip of these XLA transposes.
    x2 = jnp.transpose(x, (1, 0, 2)).reshape(V, M * K)

    def full(shape):
        zeros = (0,) * len(shape)
        return pl.BlockSpec(shape, lambda g, zeros=zeros: zeros)

    in_specs = [
        pl.BlockSpec((V, L), lambda g: (0, g)),              # x: lane-dense blocks along M*K
        full((H, V)), full((H, 1)),                          # folded w1, folded bias (w1 @ b0)
        full((H, 1)), full((H, 1)),                          # gamma1, beta1
        full((H, 3)),                                        # depthwise taps
        full((V, H)), full((V, 1)),                          # folded w2, folded bias (w2 @ b2)
        pl.BlockSpec(memory_space=pltpu.MemorySpace.SMEM),   # PReLU alpha (scalar)
    ]
    out_specs = pl.BlockSpec((V, L), lambda g: (0, g))

    out2 = pl.pallas_call(
        functools.partial(_visual_conv1d_kernel, seq_len=K),
        out_shape=jax.ShapeDtypeStruct((V, M * K), jnp.float32),
        grid_spec=pltpu.PrefetchScalarGridSpec(
            num_scalar_prefetch=0,
            grid=grid,
            in_specs=in_specs,
            out_specs=out_specs,
        ),
        compiler_params=pltpu.CompilerParams(
            dimension_semantics=("parallel",)),
    )(x2, w1f, c1, params["g1"], params["b1"], params["wd"], w2f, c2, params["alpha"])

    return jnp.transpose(out2.reshape(V, M, K), (1, 0, 2))


def init_params(key, V, H):
    k1, k2, k3 = jax.random.split(key, 3)
    return {
        # conv1x1 weight [H, V] (kernel size 1 squeezed)
        "w1": jax.random.normal(k1, (H, V), jnp.float32) / math.sqrt(V),
        # depthwise conv weight [H, 3]  (groups=H, in_per_group=1)
        "wd": jax.random.normal(k2, (H, 3), jnp.float32) / math.sqrt(3.0),
        # pointwise conv weight [V, H]
        "w2": jax.random.normal(k3, (V, H), jnp.float32) / math.sqrt(H),
        # gLN params: gamma=1, beta=0 (matches reset_parameters)
        "g0": jnp.ones((V, 1), jnp.float32), "b0": jnp.zeros((V, 1), jnp.float32),
        "g1": jnp.ones((H, 1), jnp.float32), "b1": jnp.zeros((H, 1), jnp.float32),
        "g2": jnp.ones((H, 1), jnp.float32), "b2": jnp.zeros((H, 1), jnp.float32),
        # PReLU default init = 0.25 (single shared parameter)
        "alpha": jnp.full((1,), 0.25, jnp.float32),
    }


def _reference(x, p):
    # Pure-JAX reference of the PyTorch forward for a sanity check.
    def gln(y, g, b):
        mean = jnp.mean(y, axis=(1, 2), keepdims=True)
        var = jnp.mean((y - mean) ** 2, axis=(1, 2), keepdims=True)
        return g[None] * (y - mean) / jnp.sqrt(var + EPS) + b[None]

    y = jnp.maximum(x, 0.0)
    y = gln(y, p["g0"], p["b0"])
    h = jnp.einsum("hv,mvk->mhk", p["w1"], y)
    h = jnp.maximum(h, 0.0)
    h = gln(h, p["g1"], p["b1"])
    hp = jnp.pad(h, ((0, 0), (0, 0), (1, 1)))
    h = (p["wd"][None, :, 0:1] * hp[:, :, :-2]
         + p["wd"][None, :, 1:2] * hp[:, :, 1:-1]
         + p["wd"][None, :, 2:3] * hp[:, :, 2:])
    a = p["alpha"][0]
    h = jnp.where(h >= 0.0, h, a * h)
    h = gln(h, p["g2"], p["b2"])
    out = jnp.einsum("vh,mhk->mvk", p["w2"], h)
    return out + x


if __name__ == "__main__":
    # M*K = 512 lanes -> either one 512-lane block (single-TC chips) or two 256-lane blocks
    # (dual-TC v7x); all blocks are lane-dense multiples of 128 -> unmasked stores.
    M, V, H, K = 32, 16, 32, 16
    key = jax.random.PRNGKey(0)
    kx, kp = jax.random.split(key)
    x = jax.random.normal(kx, (M, V, K), jnp.float32)
    params = init_params(kp, V, H)

    out = jax.block_until_ready(visual_conv1d(x, params))

    ref = _reference(x, params)
    assert out.shape == (M, V, K)
    assert jnp.allclose(out, ref, atol=1e-3, rtol=1e-3), float(jnp.max(jnp.abs(out - ref)))

    print("KERNEL_OK")
</pallas_src>

<mosaic_0001>
module attributes {stable_mosaic.version = 11 : i64} {
  func.func @_visual_conv1d_kernel(%arg0: i32, %arg1: memref<16x512xf32, #tpu.memory_space<vmem>>, %arg2: memref<32x16xf32, #tpu.memory_space<vmem>>, %arg3: memref<32x1xf32, #tpu.memory_space<vmem>>, %arg4: memref<32x1xf32, #tpu.memory_space<vmem>>, %arg5: memref<32x1xf32, #tpu.memory_space<vmem>>, %arg6: memref<32x3xf32, #tpu.memory_space<vmem>>, %arg7: memref<16x32xf32, #tpu.memory_space<vmem>>, %arg8: memref<16x1xf32, #tpu.memory_space<vmem>>, %arg9: memref<1xf32, #tpu.memory_space<smem>>, %arg10: memref<16x512xf32, #tpu.memory_space<vmem>>) attributes {dimension_semantics = [#tpu.dimension_semantics<parallel>], iteration_bounds = array<i64: 1>, scalar_prefetch = 0 : i64, scratch_operands = 0 : i64, tpu.core_type = #tpu.core_type<tc>, window_params = [{transform_indices = @transform_0, window_bounds = array<i64: 16, 512>}, {pipeline_mode = #tpu.pipeline_mode<synchronous>, transform_indices = @transform_1, window_bounds = array<i64: 32, 16>}, {pipeline_mode = #tpu.pipeline_mode<synchronous>, transform_indices = @transform_2, window_bounds = array<i64: 32, 1>}, {pipeline_mode = #tpu.pipeline_mode<synchronous>, transform_indices = @transform_3, window_bounds = array<i64: 32, 1>}, {pipeline_mode = #tpu.pipeline_mode<synchronous>, transform_indices = @transform_4, window_bounds = array<i64: 32, 1>}, {pipeline_mode = #tpu.pipeline_mode<synchronous>, transform_indices = @transform_5, window_bounds = array<i64: 32, 3>}, {pipeline_mode = #tpu.pipeline_mode<synchronous>, transform_indices = @transform_6, window_bounds = array<i64: 16, 32>}, {pipeline_mode = #tpu.pipeline_mode<synchronous>, transform_indices = @transform_7, window_bounds = array<i64: 16, 1>}, {transform_indices = @transform_8, window_bounds = array<i64: 1>}, {transform_indices = @transform_9, window_bounds = array<i64: 16, 512>}]} {
    %c0 = arith.constant 0 : index
    %c0_0 = arith.constant 0 : index
    %0 = vector.load %arg1[%c0, %c0_0] : memref<16x512xf32, #tpu.memory_space<vmem>>, vector<16x512xf32>
    %1 = tpu.iota {dimensions = array<i32: 0>} : vector<32x512xi32>
    %2 = tpu.iota {dimensions = array<i32: 1>} : vector<32x512xi32>
    %c16_i32 = arith.constant 16 : i32
    %3 = vector.broadcast %c16_i32 : i32 to vector<32x512xi32>
    %4 = arith.muli %1, %3 : vector<32x512xi32>
    %5 = arith.subi %2, %4 : vector<32x512xi32>
    %c0_i32 = arith.constant 0 : i32
    %6 = vector.broadcast %c0_i32 : i32 to vector<32x512xi32>
    %7 = arith.cmpi sge, %5, %6 : vector<32x512xi32>
    %c16_i32_1 = arith.constant 16 : i32
    %8 = vector.broadcast %c16_i32_1 : i32 to vector<32x512xi32>
    %9 = arith.cmpi slt, %5, %8 : vector<32x512xi32>
    %10 = arith.andi %7, %9 : vector<32x512xi1>
    %11 = arith.extui %10 : vector<32x512xi1> to vector<32x512xi32>
    %12 = arith.sitofp %11 : vector<32x512xi32> to vector<32x512xf32>
    %c0_i32_2 = arith.constant 0 : i32
    %13 = vector.broadcast %c0_i32_2 : i32 to vector<32x512xi32>
    %14 = arith.cmpi eq, %5, %13 : vector<32x512xi32>
    %15 = arith.extui %14 : vector<32x512xi1> to vector<32x512xi32>
    %16 = arith.sitofp %15 : vector<32x512xi32> to vector<32x512xf32>
    %cst = arith.constant dense<0.000000e+00> : vector<512xf32>
    %17 = vector.multi_reduction <add>, %16, %cst [0] : vector<32x512xf32> to vector<512xf32>
    %18 = vector.shape_cast %17 : vector<512xf32> to vector<1x512xf32>
    %cst_3 = arith.constant 1.000000e+00 : f32
    %19 = vector.broadcast %cst_3 : f32 to vector<1x512xf32>
    %20 = arith.subf %19, %18 : vector<1x512xf32>
    %c15_i32 = arith.constant 15 : i32
    %21 = vector.broadcast %c15_i32 : i32 to vector<32x512xi32>
    %22 = arith.cmpi eq, %5, %21 : vector<32x512xi32>
    %23 = arith.extui %22 : vector<32x512xi1> to vector<32x512xi32>
    %24 = arith.sitofp %23 : vector<32x512xi32> to vector<32x512xf32>
    %cst_4 = arith.constant dense<0.000000e+00> : vector<512xf32>
    %25 = vector.multi_reduction <add>, %24, %cst_4 [0] : vector<32x512xf32> to vector<512xf32>
    %26 = vector.shape_cast %25 : vector<512xf32> to vector<1x512xf32>
    %cst_5 = arith.constant 1.000000e+00 : f32
    %27 = vector.broadcast %cst_5 : f32 to vector<1x512xf32>
    %28 = arith.subf %27, %26 : vector<1x512xf32>
    %29 = tpu.iota {dimensions = array<i32: 0>} : vector<512x32xi32>
    %30 = tpu.iota {dimensions = array<i32: 1>} : vector<512x32xi32>
    %c16_i32_6 = arith.constant 16 : i32
    %31 = vector.broadcast %c16_i32_6 : i32 to vector<512x32xi32>
    %32 = arith.muli %30, %31 : vector<512x32xi32>
    %33 = arith.subi %29, %32 : vector<512x32xi32>
    %c0_i32_7 = arith.constant 0 : i32
    %34 = vector.broadcast %c0_i32_7 : i32 to vector<512x32xi32>
    %35 = arith.cmpi sge, %33, %34 : vector<512x32xi32>
    %c16_i32_8 = arith.constant 16 : i32
    %36 = vector.broadcast %c16_i32_8 : i32 to vector<512x32xi32>
    %37 = arith.cmpi slt, %33, %36 : vector<512x32xi32>
    %38 = arith.andi %35, %37 : vector<512x32xi1>
    %39 = arith.extui %38 : vector<512x32xi1> to vector<512x32xi32>
    %40 = arith.sitofp %39 : vector<512x32xi32> to vector<512x32xf32>
    %41 = tpu.iota {dimensions = array<i32: 0>} : vector<4x512xi32>
    %42 = tpu.iota {dimensions = array<i32: 0>} : vector<4x32xi32>
    %cst_9 = arith.constant 0.000000e+00 : f32
    %43 = vector.broadcast %cst_9 : f32 to vector<16x512xf32>
    %44 = arith.maximumf %0, %43 : vector<16x512xf32>
    %cst_10 = arith.constant dense<0.000000e+00> : vector<512xf32>
    %45 = vector.multi_reduction <add>, %44, %cst_10 [0] : vector<16x512xf32> to vector<512xf32>
    %46 = vector.shape_cast %45 : vector<512xf32> to vector<1x512xf32>
    %47 = arith.mulf %44, %44 : vector<16x512xf32>
    %cst_11 = arith.constant dense<0.000000e+00> : vector<512xf32>
    %48 = vector.multi_reduction <add>, %47, %cst_11 [0] : vector<16x512xf32> to vector<512xf32>
    %49 = vector.shape_cast %48 : vector<512xf32> to vector<1x512xf32>
    %50 = arith.truncf %46 : vector<1x512xf32> to vector<1x512xbf16>
    %51 = arith.extf %50 : vector<1x512xbf16> to vector<1x512xf32>
    %52 = arith.truncf %49 : vector<1x512xf32> to vector<1x512xbf16>
    %53 = arith.extf %52 : vector<1x512xbf16> to vector<1x512xf32>
    %54 = arith.subf %46, %51 : vector<1x512xf32>
    %55 = arith.subf %49, %53 : vector<1x512xf32>
    %c0_i32_12 = arith.constant 0 : i32
    %56 = vector.broadcast %c0_i32_12 : i32 to vector<4x512xi32>
    %57 = arith.cmpi eq, %41, %56 : vector<4x512xi32>
    %c1_i32 = arith.constant 1 : i32
    %58 = vector.broadcast %c1_i32 : i32 to vector<4x512xi32>
    %59 = arith.cmpi eq, %41, %58 : vector<4x512xi32>
    %c2_i32 = arith.constant 2 : i32
    %60 = vector.broadcast %c2_i32 : i32 to vector<4x512xi32>
    %61 = arith.cmpi eq, %41, %60 : vector<4x512xi32>
    %62 = vector.shape_cast %53 : vector<1x512xf32> to vector<1x512xf32>
    %63 = vector.broadcast %62 : vector<1x512xf32> to vector<4x512xf32>
    %64 = vector.shape_cast %55 : vector<1x512xf32> to vector<1x512xf32>
    %65 = vector.broadcast %64 : vector<1x512xf32> to vector<4x512xf32>
    %66 = arith.select %61, %63, %65 : vector<4x512xi1>, vector<4x512xf32>
    %67 = vector.shape_cast %54 : vector<1x512xf32> to vector<1x512xf32>
    %68 = vector.broadcast %67 : vector<1x512xf32> to vector<4x512xf32>
    %69 = arith.select %59, %68, %66 : vector<4x512xi1>, vector<4x512xf32>
    %70 = vector.shape_cast %51 : vector<1x512xf32> to vector<1x512xf32>
    %71 = vector.broadcast %70 : vector<1x512xf32> to vector<4x512xf32>
    %72 = arith.select %57, %71, %69 : vector<4x512xi1>, vector<4x512xf32>
    %cst_13 = arith.constant dense<0.000000e+00> : vector<4x32xf32>
    %73 = tpu.matmul %72, %40, %cst_13 {dimension_numbers = #tpu.dot_dimension_numbers<[1], [0], [0], [1], [0, 0, 1, 1], [], []>} : vector<4x512xf32>, vector<512x32xf32>, vector<4x32xf32> -> vector<4x32xf32>
    %74 = vector.extract_strided_slice %73 {offsets = [0, 0], sizes = [1, 32], strides = [1, 1]} : vector<4x32xf32> to vector<1x32xf32>
    %75 = vector.extract_strided_slice %73 {offsets = [1, 0], sizes = [1, 32], strides = [1, 1]} : vector<4x32xf32> to vector<1x32xf32>
    %76 = arith.addf %74, %75 : vector<1x32xf32>
    %cst_14 = arith.constant 3.906250e-03 : f32
    %77 = vector.broadcast %cst_14 : f32 to vector<1x32xf32>
    %78 = arith.mulf %76, %77 : vector<1x32xf32>
    %79 = vector.extract_strided_slice %73 {offsets = [2, 0], sizes = [1, 32], strides = [1, 1]} : vector<4x32xf32> to vector<1x32xf32>
    %80 = vector.extract_strided_slice %73 {offsets = [3, 0], sizes = [1, 32], strides = [1, 1]} : vector<4x32xf32> to vector<1x32xf32>
    %81 = arith.addf %79, %80 : vector<1x32xf32>
    %cst_15 = arith.constant 3.906250e-03 : f32
    %82 = vector.broadcast %cst_15 : f32 to vector<1x32xf32>
    %83 = arith.mulf %81, %82 : vector<1x32xf32>
    %84 = arith.mulf %78, %78 : vector<1x32xf32>
    %85 = arith.subf %83, %84 : vector<1x32xf32>
    %cst_16 = arith.constant 0.000000e+00 : f32
    %86 = vector.broadcast %cst_16 : f32 to vector<1x32xf32>
    %87 = arith.maximumf %85, %86 : vector<1x32xf32>
    %cst_17 = arith.constant 9.99999993E-9 : f32
    %88 = vector.broadcast %cst_17 : f32 to vector<1x32xf32>
    %89 = arith.addf %87, %88 : vector<1x32xf32>
    %90 = math.rsqrt %89 : vector<1x32xf32>
    %91 = arith.truncf %78 : vector<1x32xf32> to vector<1x32xbf16>
    %92 = arith.extf %91 : vector<1x32xbf16> to vector<1x32xf32>
    %93 = arith.truncf %90 : vector<1x32xf32> to vector<1x32xbf16>
    %94 = arith.extf %93 : vector<1x32xbf16> to vector<1x32xf32>
    %95 = arith.subf %78, %92 : vector<1x32xf32>
    %96 = arith.subf %90, %94 : vector<1x32xf32>
    %c0_i32_18 = arith.constant 0 : i32
    %97 = vector.broadcast %c0_i32_18 : i32 to vector<4x32xi32>
    %98 = arith.cmpi eq, %42, %97 : vector<4x32xi32>
    %c1_i32_19 = arith.constant 1 : i32
    %99 = vector.broadcast %c1_i32_19 : i32 to vector<4x32xi32>
    %100 = arith.cmpi eq, %42, %99 : vector<4x32xi32>
    %c2_i32_20 = arith.constant 2 : i32
    %101 = vector.broadcast %c2_i32_20 : i32 to vector<4x32xi32>
    %102 = arith.cmpi eq, %42, %101 : vector<4x32xi32>
    %103 = vector.shape_cast %94 : vector<1x32xf32> to vector<1x32xf32>
    %104 = vector.broadcast %103 : vector<1x32xf32> to vector<4x32xf32>
    %105 = vector.shape_cast %96 : vector<1x32xf32> to vector<1x32xf32>
    %106 = vector.broadcast %105 : vector<1x32xf32> to vector<4x32xf32>
    %107 = arith.select %102, %104, %106 : vector<4x32xi1>, vector<4x32xf32>
    %108 = vector.shape_cast %95 : vector<1x32xf32> to vector<1x32xf32>
    %109 = vector.broadcast %108 : vector<1x32xf32> to vector<4x32xf32>
    %110 = arith.select %100, %109, %107 : vector<4x32xi1>, vector<4x32xf32>
    %111 = vector.shape_cast %92 : vector<1x32xf32> to vector<1x32xf32>
    %112 = vector.broadcast %111 : vector<1x32xf32> to vector<4x32xf32>
    %113 = arith.select %98, %112, %110 : vector<4x32xi1>, vector<4x32xf32>
    %cst_21 = arith.constant dense<0.000000e+00> : vector<4x512xf32>
    %114 = tpu.matmul %113, %12, %cst_21 {dimension_numbers = #tpu.dot_dimension_numbers<[1], [0], [0], [1], [0, 0, 1, 1], [], []>} : vector<4x32xf32>, vector<32x512xf32>, vector<4x512xf32> -> vector<4x512xf32>
    %115 = vector.extract_strided_slice %114 {offsets = [0, 0], sizes = [1, 512], strides = [1, 1]} : vector<4x512xf32> to vector<1x512xf32>
    %116 = vector.extract_strided_slice %114 {offsets = [1, 0], sizes = [1, 512], strides = [1, 1]} : vector<4x512xf32> to vector<1x512xf32>
    %117 = arith.addf %115, %116 : vector<1x512xf32>
    %118 = vector.extract_strided_slice %114 {offsets = [2, 0], sizes = [1, 512], strides = [1, 1]} : vector<4x512xf32> to vector<1x512xf32>
    %119 = vector.extract_strided_slice %114 {offsets = [3, 0], sizes = [1, 512], strides = [1, 1]} : vector<4x512xf32> to vector<1x512xf32>
    %120 = arith.addf %118, %119 : vector<1x512xf32>
    %121 = vector.broadcast %117 : vector<1x512xf32> to vector<16x512xf32>
    %122 = arith.subf %44, %121 : vector<16x512xf32>
    %123 = vector.broadcast %120 : vector<1x512xf32> to vector<16x512xf32>
    %124 = arith.mulf %122, %123 : vector<16x512xf32>
    %c0_22 = arith.constant 0 : index
    %c0_23 = arith.constant 0 : index
    %125 = vector.load %arg2[%c0_22, %c0_23] : memref<32x16xf32, #tpu.memory_space<vmem>>, vector<32x16xf32>
    %cst_24 = arith.constant dense<0.000000e+00> : vector<32x512xf32>
    %126 = tpu.matmul %125, %124, %cst_24 {dimension_numbers = #tpu.dot_dimension_numbers<[1], [0], [0], [1], [0, 0, 1, 1], [], []>} : vector<32x16xf32>, vector<16x512xf32>, vector<32x512xf32> -> vector<32x512xf32>
    %c0_25 = arith.constant 0 : index
    %c0_26 = arith.constant 0 : index
    %127 = vector.load %arg3[%c0_25, %c0_26] : memref<32x1xf32, #tpu.memory_space<vmem>>, vector<32x1xf32>
    %128 = vector.broadcast %127 : vector<32x1xf32> to vector<32x512xf32>
    %129 = arith.addf %126, %128 : vector<32x512xf32>
    %cst_27 = arith.constant 0.000000e+00 : f32
    %130 = vector.broadcast %cst_27 : f32 to vector<32x512xf32>
    %131 = arith.maximumf %129, %130 : vector<32x512xf32>
    %cst_28 = arith.constant dense<0.000000e+00> : vector<512xf32>
    %132 = vector.multi_reduction <add>, %131, %cst_28 [0] : vector<32x512xf32> to vector<512xf32>
    %133 = vector.shape_cast %132 : vector<512xf32> to vector<1x512xf32>
    %134 = arith.mulf %131, %131 : vector<32x512xf32>
    %cst_29 = arith.constant dense<0.000000e+00> : vector<512xf32>
    %135 = vector.multi_reduction <add>, %134, %cst_29 [0] : vector<32x512xf32> to vector<512xf32>
    %136 = vector.shape_cast %135 : vector<512xf32> to vector<1x512xf32>
    %137 = arith.truncf %133 : vector<1x512xf32> to vector<1x512xbf16>
    %138 = arith.extf %137 : vector<1x512xbf16> to vector<1x512xf32>
    %139 = arith.truncf %136 : vector<1x512xf32> to vector<1x512xbf16>
    %140 = arith.extf %139 : vector<1x512xbf16> to vector<1x512xf32>
    %141 = arith.subf %133, %138 : vector<1x512xf32>
    %142 = arith.subf %136, %140 : vector<1x512xf32>
    %c0_i32_30 = arith.constant 0 : i32
    %143 = vector.broadcast %c0_i32_30 : i32 to vector<4x512xi32>
    %144 = arith.cmpi eq, %41, %143 : vector<4x512xi32>
    %c1_i32_31 = arith.constant 1 : i32
    %145 = vector.broadcast %c1_i32_31 : i32 to vector<4x512xi32>
    %146 = arith.cmpi eq, %41, %145 : vector<4x512xi32>
    %c2_i32_32 = arith.constant 2 : i32
    %147 = vector.broadcast %c2_i32_32 : i32 to vector<4x512xi32>
    %148 = arith.cmpi eq, %41, %147 : vector<4x512xi32>
    %149 = vector.shape_cast %140 : vector<1x512xf32> to vector<1x512xf32>
    %150 = vector.broadcast %149 : vector<1x512xf32> to vector<4x512xf32>
    %151 = vector.shape_cast %142 : vector<1x512xf32> to vector<1x512xf32>
    %152 = vector.broadcast %151 : vector<1x512xf32> to vector<4x512xf32>
    %153 = arith.select %148, %150, %152 : vector<4x512xi1>, vector<4x512xf32>
    %154 = vector.shape_cast %141 : vector<1x512xf32> to vector<1x512xf32>
    %155 = vector.broadcast %154 : vector<1x512xf32> to vector<4x512xf32>
    %156 = arith.select %146, %155, %153 : vector<4x512xi1>, vector<4x512xf32>
    %157 = vector.shape_cast %138 : vector<1x512xf32> to vector<1x512xf32>
    %158 = vector.broadcast %157 : vector<1x512xf32> to vector<4x512xf32>
    %159 = arith.select %144, %158, %156 : vector<4x512xi1>, vector<4x512xf32>
    %cst_33 = arith.constant dense<0.000000e+00> : vector<4x32xf32>
    %160 = tpu.matmul %159, %40, %cst_33 {dimension_numbers = #tpu.dot_dimension_numbers<[1], [0], [0], [1], [0, 0, 1, 1], [], []>} : vector<4x512xf32>, vector<512x32xf32>, vector<4x32xf32> -> vector<4x32xf32>
    %161 = vector.extract_strided_slice %160 {offsets = [0, 0], sizes = [1, 32], strides = [1, 1]} : vector<4x32xf32> to vector<1x32xf32>
    %162 = vector.extract_strided_slice %160 {offsets = [1, 0], sizes = [1, 32], strides = [1, 1]} : vector<4x32xf32> to vector<1x32xf32>
    %163 = arith.addf %161, %162 : vector<1x32xf32>
    %cst_34 = arith.constant 0.001953125 : f32
    %164 = vector.broadcast %cst_34 : f32 to vector<1x32xf32>
    %165 = arith.mulf %163, %164 : vector<1x32xf32>
    %166 = vector.extract_strided_slice %160 {offsets = [2, 0], sizes = [1, 32], strides = [1, 1]} : vector<4x32xf32> to vector<1x32xf32>
    %167 = vector.extract_strided_slice %160 {offsets = [3, 0], sizes = [1, 32], strides = [1, 1]} : vector<4x32xf32> to vector<1x32xf32>
    %168 = arith.addf %166, %167 : vector<1x32xf32>
    %cst_35 = arith.constant 0.001953125 : f32
    %169 = vector.broadcast %cst_35 : f32 to vector<1x32xf32>
    %170 = arith.mulf %168, %169 : vector<1x32xf32>
    %171 = arith.mulf %165, %165 : vector<1x32xf32>
    %172 = arith.subf %170, %171 : vector<1x32xf32>
    %cst_36 = arith.constant 0.000000e+00 : f32
    %173 = vector.broadcast %cst_36 : f32 to vector<1x32xf32>
    %174 = arith.maximumf %172, %173 : vector<1x32xf32>
    %cst_37 = arith.constant 9.99999993E-9 : f32
    %175 = vector.broadcast %cst_37 : f32 to vector<1x32xf32>
    %176 = arith.addf %174, %175 : vector<1x32xf32>
    %177 = math.rsqrt %176 : vector<1x32xf32>
    %178 = arith.truncf %165 : vector<1x32xf32> to vector<1x32xbf16>
    %179 = arith.extf %178 : vector<1x32xbf16> to vector<1x32xf32>
    %180 = arith.truncf %177 : vector<1x32xf32> to vector<1x32xbf16>
    %181 = arith.extf %180 : vector<1x32xbf16> to vector<1x32xf32>
    %182 = arith.subf %165, %179 : vector<1x32xf32>
    %183 = arith.subf %177, %181 : vector<1x32xf32>
    %c0_i32_38 = arith.constant 0 : i32
    %184 = vector.broadcast %c0_i32_38 : i32 to vector<4x32xi32>
    %185 = arith.cmpi eq, %42, %184 : vector<4x32xi32>
    %c1_i32_39 = arith.constant 1 : i32
    %186 = vector.broadcast %c1_i32_39 : i32 to vector<4x32xi32>
    %187 = arith.cmpi eq, %42, %186 : vector<4x32xi32>
    %c2_i32_40 = arith.constant 2 : i32
    %188 = vector.broadcast %c2_i32_40 : i32 to vector<4x32xi32>
    %189 = arith.cmpi eq, %42, %188 : vector<4x32xi32>
    %190 = vector.shape_cast %181 : vector<1x32xf32> to vector<1x32xf32>
    %191 = vector.broadcast %190 : vector<1x32xf32> to vector<4x32xf32>
    %192 = vector.shape_cast %183 : vector<1x32xf32> to vector<1x32xf32>
    %193 = vector.broadcast %192 : vector<1x32xf32> to vector<4x32xf32>
    %194 = arith.select %189, %191, %193 : vector<4x32xi1>, vector<4x32xf32>
    %195 = vector.shape_cast %182 : vector<1x32xf32> to vector<1x32xf32>
    %196 = vector.broadcast %195 : vector<1x32xf32> to vector<4x32xf32>
    %197 = arith.select %187, %196, %194 : vector<4x32xi1>, vector<4x32xf32>
    %198 = vector.shape_cast %179 : vector<1x32xf32> to vector<1x32xf32>
    %199 = vector.broadcast %198 : vector<1x32xf32> to vector<4x32xf32>
    %200 = arith.select %185, %199, %197 : vector<4x32xi1>, vector<4x32xf32>
    %cst_41 = arith.constant dense<0.000000e+00> : vector<4x512xf32>
    %201 = tpu.matmul %200, %12, %cst_41 {dimension_numbers = #tpu.dot_dimension_numbers<[1], [0], [0], [1], [0, 0, 1, 1], [], []>} : vector<4x32xf32>, vector<32x512xf32>, vector<4x512xf32> -> vector<4x512xf32>
    %202 = vector.extract_strided_slice %201 {offsets = [0, 0], sizes = [1, 512], strides = [1, 1]} : vector<4x512xf32> to vector<1x512xf32>
    %203 = vector.extract_strided_slice %201 {offsets = [1, 0], sizes = [1, 512], strides = [1, 1]} : vector<4x512xf32> to vector<1x512xf32>
    %204 = arith.addf %202, %203 : vector<1x512xf32>
    %205 = vector.extract_strided_slice %201 {offsets = [2, 0], sizes = [1, 512], strides = [1, 1]} : vector<4x512xf32> to vector<1x512xf32>
    %206 = vector.extract_strided_slice %201 {offsets = [3, 0], sizes = [1, 512], strides = [1, 1]} : vector<4x512xf32> to vector<1x512xf32>
    %207 = arith.addf %205, %206 : vector<1x512xf32>
    %208 = vector.broadcast %204 : vector<1x512xf32> to vector<32x512xf32>
    %209 = arith.subf %131, %208 : vector<32x512xf32>
    %210 = vector.broadcast %207 : vector<1x512xf32> to vector<32x512xf32>
    %211 = arith.mulf %209, %210 : vector<32x512xf32>
    %c0_42 = arith.constant 0 : index
    %c0_43 = arith.constant 0 : index
    %212 = vector.load %arg4[%c0_42, %c0_43] : memref<32x1xf32, #tpu.memory_space<vmem>>, vector<32x1xf32>
    %213 = vector.broadcast %212 : vector<32x1xf32> to vector<32x512xf32>
    %214 = arith.mulf %211, %213 : vector<32x512xf32>
    %c0_44 = arith.constant 0 : index
    %c0_45 = arith.constant 0 : index
    %215 = vector.load %arg5[%c0_44, %c0_45] : memref<32x1xf32, #tpu.memory_space<vmem>>, vector<32x1xf32>
    %216 = vector.broadcast %215 : vector<32x1xf32> to vector<32x512xf32>
    %217 = arith.addf %214, %216 : vector<32x512xf32>
    %c1_i32_46 = arith.constant 1 : i32
    %218 = tpu.dynamic_rotate %217 by %c1_i32_46 dim 1 : vector<32x512xf32>, i32 -> vector<32x512xf32>
    %219 = vector.broadcast %20 : vector<1x512xf32> to vector<32x512xf32>
    %220 = arith.mulf %218, %219 : vector<32x512xf32>
    %c511_i32 = arith.constant 511 : i32
    %221 = tpu.dynamic_rotate %217 by %c511_i32 dim 1 : vector<32x512xf32>, i32 -> vector<32x512xf32>
    %222 = vector.broadcast %28 : vector<1x512xf32> to vector<32x512xf32>
    %223 = arith.mulf %221, %222 : vector<32x512xf32>
    %c0_47 = arith.constant 0 : index
    %c0_48 = arith.constant 0 : index
    %224 = vector.load %arg6[%c0_47, %c0_48] : memref<32x3xf32, #tpu.memory_space<vmem>>, vector<32x3xf32>
    %225 = vector.extract_strided_slice %224 {offsets = [0, 0], sizes = [32, 1], strides = [1, 1]} : vector<32x3xf32> to vector<32x1xf32>
    %226 = vector.broadcast %225 : vector<32x1xf32> to vector<32x512xf32>
    %227 = arith.mulf %226, %220 : vector<32x512xf32>
    %228 = vector.extract_strided_slice %224 {offsets = [0, 1], sizes = [32, 1], strides = [1, 1]} : vector<32x3xf32> to vector<32x1xf32>
    %229 = vector.broadcast %228 : vector<32x1xf32> to vector<32x512xf32>
    %230 = arith.mulf %229, %217 : vector<32x512xf32>
    %231 = arith.addf %227, %230 : vector<32x512xf32>
    %232 = vector.extract_strided_slice %224 {offsets = [0, 2], sizes = [32, 1], strides = [1, 1]} : vector<32x3xf32> to vector<32x1xf32>
    %233 = vector.broadcast %232 : vector<32x1xf32> to vector<32x512xf32>
    %234 = arith.mulf %233, %223 : vector<32x512xf32>
    %235 = arith.addf %231, %234 : vector<32x512xf32>
    %c0_49 = arith.constant 0 : index
    %236 = memref.load %arg9[%c0_49] : memref<1xf32, #tpu.memory_space<smem>>
    %cst_50 = arith.constant 0.000000e+00 : f32
    %237 = vector.broadcast %cst_50 : f32 to vector<32x512xf32>
    %238 = arith.cmpf oge, %235, %237 : vector<32x512xf32>
    %239 = vector.broadcast %236 : f32 to vector<32x512xf32>
    %240 = arith.mulf %239, %235 : vector<32x512xf32>
    %241 = arith.select %238, %235, %240 : vector<32x512xi1>, vector<32x512xf32>
    %cst_51 = arith.constant dense<0.000000e+00> : vector<512xf32>
    %242 = vector.multi_reduction <add>, %241, %cst_51 [0] : vector<32x512xf32> to vector<512xf32>
    %243 = vector.shape_cast %242 : vector<512xf32> to vector<1x512xf32>
    %244 = arith.mulf %241, %241 : vector<32x512xf32>
    %cst_52 = arith.constant dense<0.000000e+00> : vector<512xf32>
    %245 = vector.multi_reduction <add>, %244, %cst_52 [0] : vector<32x512xf32> to vector<512xf32>
    %246 = vector.shape_cast %245 : vector<512xf32> to vector<1x512xf32>
    %247 = arith.truncf %243 : vector<1x512xf32> to vector<1x512xbf16>
    %248 = arith.extf %247 : vector<1x512xbf16> to vector<1x512xf32>
    %249 = arith.truncf %246 : vector<1x512xf32> to vector<1x512xbf16>
    %250 = arith.extf %249 : vector<1x512xbf16> to vector<1x512xf32>
    %251 = arith.subf %243, %248 : vector<1x512xf32>
    %252 = arith.subf %246, %250 : vector<1x512xf32>
    %c0_i32_53 = arith.constant 0 : i32
    %253 = vector.broadcast %c0_i32_53 : i32 to vector<4x512xi32>
    %254 = arith.cmpi eq, %41, %253 : vector<4x512xi32>
    %c1_i32_54 = arith.constant 1 : i32
    %255 = vector.broadcast %c1_i32_54 : i32 to vector<4x512xi32>
    %256 = arith.cmpi eq, %41, %255 : vector<4x512xi32>
    %c2_i32_55 = arith.constant 2 : i32
    %257 = vector.broadcast %c2_i32_55 : i32 to vector<4x512xi32>
    %258 = arith.cmpi eq, %41, %257 : vector<4x512xi32>
    %259 = vector.shape_cast %250 : vector<1x512xf32> to vector<1x512xf32>
    %260 = vector.broadcast %259 : vector<1x512xf32> to vector<4x512xf32>
    %261 = vector.shape_cast %252 : vector<1x512xf32> to vector<1x512xf32>
    %262 = vector.broadcast %261 : vector<1x512xf32> to vector<4x512xf32>
    %263 = arith.select %258, %260, %262 : vector<4x512xi1>, vector<4x512xf32>
    %264 = vector.shape_cast %251 : vector<1x512xf32> to vector<1x512xf32>
    %265 = vector.broadcast %264 : vector<1x512xf32> to vector<4x512xf32>
    %266 = arith.select %256, %265, %263 : vector<4x512xi1>, vector<4x512xf32>
    %267 = vector.shape_cast %248 : vector<1x512xf32> to vector<1x512xf32>
    %268 = vector.broadcast %267 : vector<1x512xf32> to vector<4x512xf32>
    %269 = arith.select %254, %268, %266 : vector<4x512xi1>, vector<4x512xf32>
    %cst_56 = arith.constant dense<0.000000e+00> : vector<4x32xf32>
    %270 = tpu.matmul %269, %40, %cst_56 {dimension_numbers = #tpu.dot_dimension_numbers<[1], [0], [0], [1], [0, 0, 1, 1], [], []>} : vector<4x512xf32>, vector<512x32xf32>, vector<4x32xf32> -> vector<4x32xf32>
    %271 = vector.extract_strided_slice %270 {offsets = [0, 0], sizes = [1, 32], strides = [1, 1]} : vector<4x32xf32> to vector<1x32xf32>
    %272 = vector.extract_strided_slice %270 {offsets = [1, 0], sizes = [1, 32], strides = [1, 1]} : vector<4x32xf32> to vector<1x32xf32>
    %273 = arith.addf %271, %272 : vector<1x32xf32>
    %cst_57 = arith.constant 0.001953125 : f32
    %274 = vector.broadcast %cst_57 : f32 to vector<1x32xf32>
    %275 = arith.mulf %273, %274 : vector<1x32xf32>
    %276 = vector.extract_strided_slice %270 {offsets = [2, 0], sizes = [1, 32], strides = [1, 1]} : vector<4x32xf32> to vector<1x32xf32>
    %277 = vector.extract_strided_slice %270 {offsets = [3, 0], sizes = [1, 32], strides = [1, 1]} : vector<4x32xf32> to vector<1x32xf32>
    %278 = arith.addf %276, %277 : vector<1x32xf32>
    %cst_58 = arith.constant 0.001953125 : f32
    %279 = vector.broadcast %cst_58 : f32 to vector<1x32xf32>
    %280 = arith.mulf %278, %279 : vector<1x32xf32>
    %281 = arith.mulf %275, %275 : vector<1x32xf32>
    %282 = arith.subf %280, %281 : vector<1x32xf32>
    %cst_59 = arith.constant 0.000000e+00 : f32
    %283 = vector.broadcast %cst_59 : f32 to vector<1x32xf32>
    %284 = arith.maximumf %282, %283 : vector<1x32xf32>
    %cst_60 = arith.constant 9.99999993E-9 : f32
    %285 = vector.broadcast %cst_60 : f32 to vector<1x32xf32>
    %286 = arith.addf %284, %285 : vector<1x32xf32>
    %287 = math.rsqrt %286 : vector<1x32xf32>
    %288 = arith.truncf %275 : vector<1x32xf32> to vector<1x32xbf16>
    %289 = arith.extf %288 : vector<1x32xbf16> to vector<1x32xf32>
    %290 = arith.truncf %287 : vector<1x32xf32> to vector<1x32xbf16>
    %291 = arith.extf %290 : vector<1x32xbf16> to vector<1x32xf32>
    %292 = arith.subf %275, %289 : vector<1x32xf32>
    %293 = arith.subf %287, %291 : vector<1x32xf32>
    %c0_i32_61 = arith.constant 0 : i32
    %294 = vector.broadcast %c0_i32_61 : i32 to vector<4x32xi32>
    %295 = arith.cmpi eq, %42, %294 : vector<4x32xi32>
    %c1_i32_62 = arith.constant 1 : i32
    %296 = vector.broadcast %c1_i32_62 : i32 to vector<4x32xi32>
    %297 = arith.cmpi eq, %42, %296 : vector<4x32xi32>
    %c2_i32_63 = arith.constant 2 : i32
    %298 = vector.broadcast %c2_i32_63 : i32 to vector<4x32xi32>
    %299 = arith.cmpi eq, %42, %298 : vector<4x32xi32>
    %300 = vector.shape_cast %291 : vector<1x32xf32> to vector<1x32xf32>
    %301 = vector.broadcast %300 : vector<1x32xf32> to vector<4x32xf32>
    %302 = vector.shape_cast %293 : vector<1x32xf32> to vector<1x32xf32>
    %303 = vector.broadcast %302 : vector<1x32xf32> to vector<4x32xf32>
    %304 = arith.select %299, %301, %303 : vector<4x32xi1>, vector<4x32xf32>
    %305 = vector.shape_cast %292 : vector<1x32xf32> to vector<1x32xf32>
    %306 = vector.broadcast %305 : vector<1x32xf32> to vector<4x32xf32>
    %307 = arith.select %297, %306, %304 : vector<4x32xi1>, vector<4x32xf32>
    %308 = vector.shape_cast %289 : vector<1x32xf32> to vector<1x32xf32>
    %309 = vector.broadcast %308 : vector<1x32xf32> to vector<4x32xf32>
    %310 = arith.select %295, %309, %307 : vector<4x32xi1>, vector<4x32xf32>
    %cst_64 = arith.constant dense<0.000000e+00> : vector<4x512xf32>
    %311 = tpu.matmul %310, %12, %cst_64 {dimension_numbers = #tpu.dot_dimension_numbers<[1], [0], [0], [1], [0, 0, 1, 1], [], []>} : vector<4x32xf32>, vector<32x512xf32>, vector<4x512xf32> -> vector<4x512xf32>
    %312 = vector.extract_strided_slice %311 {offsets = [0, 0], sizes = [1, 512], strides = [1, 1]} : vector<4x512xf32> to vector<1x512xf32>
    %313 = vector.extract_strided_slice %311 {offsets = [1, 0], sizes = [1, 512], strides = [1, 1]} : vector<4x512xf32> to vector<1x512xf32>
    %314 = arith.addf %312, %313 : vector<1x512xf32>
    %315 = vector.extract_strided_slice %311 {offsets = [2, 0], sizes = [1, 512], strides = [1, 1]} : vector<4x512xf32> to vector<1x512xf32>
    %316 = vector.extract_strided_slice %311 {offsets = [3, 0], sizes = [1, 512], strides = [1, 1]} : vector<4x512xf32> to vector<1x512xf32>
    %317 = arith.addf %315, %316 : vector<1x512xf32>
    %318 = vector.broadcast %314 : vector<1x512xf32> to vector<32x512xf32>
    %319 = arith.subf %241, %318 : vector<32x512xf32>
    %320 = vector.broadcast %317 : vector<1x512xf32> to vector<32x512xf32>
    %321 = arith.mulf %319, %320 : vector<32x512xf32>
    %c0_65 = arith.constant 0 : index
    %c0_66 = arith.constant 0 : index
    %322 = vector.load %arg7[%c0_65, %c0_66] : memref<16x32xf32, #tpu.memory_space<vmem>>, vector<16x32xf32>
    %cst_67 = arith.constant dense<0.000000e+00> : vector<16x512xf32>
    %323 = tpu.matmul %322, %321, %cst_67 {dimension_numbers = #tpu.dot_dimension_numbers<[1], [0], [0], [1], [0, 0, 1, 1], [], []>} : vector<16x32xf32>, vector<32x512xf32>, vector<16x512xf32> -> vector<16x512xf32>
    %c0_68 = arith.constant 0 : index
    %c0_69 = arith.constant 0 : index
    %324 = vector.load %arg8[%c0_68, %c0_69] : memref<16x1xf32, #tpu.memory_space<vmem>>, vector<16x1xf32>
    %325 = vector.broadcast %324 : vector<16x1xf32> to vector<16x512xf32>
    %326 = arith.addf %323, %325 : vector<16x512xf32>
    %327 = arith.addf %326, %0 : vector<16x512xf32>
    %c0_70 = arith.constant 0 : index
    %c0_71 = arith.constant 0 : index
    %328 = vector.load %arg10[%c0_70, %c0_71] : memref<16x512xf32, #tpu.memory_space<vmem>>, vector<16x512xf32>
    tpu.vector_store %arg10[%c0_70, %c0_71], %327 {strides = array<i32>} : memref<16x512xf32, #tpu.memory_space<vmem>>, vector<16x512xf32>,
    return
  }
  func.func @transform_0(%arg0: i32) -> (i32, i32) {
    %c0_i32 = arith.constant 0 : i32
    %c0_i32_0 = arith.constant 0 : i32
    return %c0_i32, %arg0 : i32, i32
  }
  func.func @transform_1(%arg0: i32) -> (i32, i32) {
    %c0_i32 = arith.constant 0 : i32
    %c0_i32_0 = arith.constant 0 : i32
    %c0_i32_1 = arith.constant 0 : i32
    return %c0_i32, %c0_i32_0 : i32, i32
  }
  func.func @transform_2(%arg0: i32) -> (i32, i32) {
    %c0_i32 = arith.constant 0 : i32
    %c0_i32_0 = arith.constant 0 : i32
    %c0_i32_1 = arith.constant 0 : i32
    return %c0_i32, %c0_i32_0 : i32, i32
  }
  func.func @transform_3(%arg0: i32) -> (i32, i32) {
    %c0_i32 = arith.constant 0 : i32
    %c0_i32_0 = arith.constant 0 : i32
    %c0_i32_1 = arith.constant 0 : i32
    return %c0_i32, %c0_i32_0 : i32, i32
  }
  func.func @transform_4(%arg0: i32) -> (i32, i32) {
    %c0_i32 = arith.constant 0 : i32
    %c0_i32_0 = arith.constant 0 : i32
    %c0_i32_1 = arith.constant 0 : i32
    return %c0_i32, %c0_i32_0 : i32, i32
  }
  func.func @transform_5(%arg0: i32) -> (i32, i32) {
    %c0_i32 = arith.constant 0 : i32
    %c0_i32_0 = arith.constant 0 : i32
    %c0_i32_1 = arith.constant 0 : i32
    return %c0_i32, %c0_i32_0 : i32, i32
  }
  func.func @transform_6(%arg0: i32) -> (i32, i32) {
    %c0_i32 = arith.constant 0 : i32
    %c0_i32_0 = arith.constant 0 : i32
    %c0_i32_1 = arith.constant 0 : i32
    return %c0_i32, %c0_i32_0 : i32, i32
  }
  func.func @transform_7(%arg0: i32) -> (i32, i32) {
    %c0_i32 = arith.constant 0 : i32
    %c0_i32_0 = arith.constant 0 : i32
    %c0_i32_1 = arith.constant 0 : i32
    return %c0_i32, %c0_i32_0 : i32, i32
  }
  func.func @transform_8(%arg0: i32) -> i32 {
    %c0_i32 = arith.constant 0 : i32
    %c0_i32_0 = arith.constant 0 : i32
    return %c0_i32 : i32
  }
  func.func @transform_9(%arg0: i32) -> (i32, i32) {
    %c0_i32 = arith.constant 0 : i32
    %c0_i32_0 = arith.constant 0 : i32
    return %c0_i32, %arg0 : i32, i32
  }
}

</mosaic_0001>

<llo_original>
// kernel: visual_conv1d.1
$region0: #{visual_conv1d.1}
  #allocation0 [shape = 'u32[]', space=smem, size = 0x4, offset = 0x4, fixed_abs, tag = 'smem constant byte address 0x4 - core index']
  #allocation1 [shape = 'u32[144,128]{1,0:T(1,128)}', space=vmem, size = 0x12000, scoped, tag = 'internal scratch']
  #allocation2 [shape = 'f32[1]{0:T(128)S(6)}', space=smem, size = 0x200, scoped, tag = 'scoped memory for visual_conv1d.1']
  %s0 = inlined_call_operand.vmem [shape: f32[16,512], index: 0, kind: input, shape index: {}]
  %s1 = inlined_call_operand.vmem [shape: f32[32,16], index: 1, kind: input, shape index: {}]
  %s2 = inlined_call_operand.vmem [shape: f32[32,1], index: 2, kind: input, shape index: {}]
  %s3 = inlined_call_operand.vmem [shape: f32[32,1], index: 3, kind: input, shape index: {}]
  %s4 = inlined_call_operand.vmem [shape: f32[32,1], index: 4, kind: input, shape index: {}]
  %s5 = inlined_call_operand.vmem [shape: f32[32,3], index: 5, kind: input, shape index: {}]
  %s6 = inlined_call_operand.vmem [shape: f32[16,32], index: 6, kind: input, shape index: {}]
  %s7 = inlined_call_operand.vmem [shape: f32[16,1], index: 7, kind: input, shape index: {}]
  %s8 = inlined_call_operand.<no memory space> [shape: f32[1], index: 8, kind: input, shape index: {}]
  %s9 = inlined_call_operand.vmem [shape: f32[16,512], index: 9, kind: output, shape index: {}]
  %s10 = sld [smem:[#allocation0]]
  $region46: #{visual_conv1d.1} parent=0
    _
  %s12 = ssub.s32 1, %s10
  %s13 = scalar_select 0, %s12, %s10
  %14 = sst [smem:[#allocation2]] %s8
  // Predicated region
  $region2: #{visual_conv1d.1} parent=0 // pred_check
    _
  $region3: #{visual_conv1d.1} parent=0 // pred_check_branch
    %16 = sbr.rel (0) target = $region5
  $region4: #{visual_conv1d.1} parent=0 // pred_region
    _
  $region5: #{visual_conv1d.1} parent=0 // pred_fallthru
    _
  // Predicated region
  $region6: #{visual_conv1d.1} parent=0 // pred_check
    _
  $region7: #{visual_conv1d.1} parent=0 // pred_check_branch
    %18 = sbr.rel (0) target = $region9
  $region8: #{visual_conv1d.1} parent=0 // pred_region
    _
  $region9: #{visual_conv1d.1} parent=0 // pred_fallthru
    _
  // Predicated region
  $region10: #{visual_conv1d.1} parent=0 // pred_check
    _
  $region11: #{visual_conv1d.1} parent=0 // pred_check_branch
    %20 = sbr.rel (0) target = $region13
  $region12: #{visual_conv1d.1} parent=0 // pred_region
    _
  $region13: #{visual_conv1d.1} parent=0 // pred_fallthru
    _
  // Predicated region
  $region14: #{visual_conv1d.1} parent=0 // pred_check
    _
  $region15: #{visual_conv1d.1} parent=0 // pred_check_branch
    %22 = sbr.rel (0) target = $region17
  $region16: #{visual_conv1d.1} parent=0 // pred_region
    _
  $region17: #{visual_conv1d.1} parent=0 // pred_fallthru
    _
  // Predicated region
  $region18: #{visual_conv1d.1} parent=0 // pred_check
    _
  $region19: #{visual_conv1d.1} parent=0 // pred_check_branch
    %24 = sbr.rel (0) target = $region21
  $region20: #{visual_conv1d.1} parent=0 // pred_region
    _
  $region21: #{visual_conv1d.1} parent=0 // pred_fallthru
    _
  // Predicated region
  $region22: #{visual_conv1d.1} parent=0 // pred_check
    _
  $region23: #{visual_conv1d.1} parent=0 // pred_check_branch
    %26 = sbr.rel (0) target = $region25
  $region24: #{visual_conv1d.1} parent=0 // pred_region
    _
  $region25: #{visual_conv1d.1} parent=0 // pred_fallthru
    _
  // Predicated region
  $region26: #{visual_conv1d.1} parent=0 // pred_check
    _
  $region27: #{visual_conv1d.1} parent=0 // pred_check_branch
    %28 = sbr.rel (0) target = $region29
  $region28: #{visual_conv1d.1} parent=0 // pred_region
    _
  $region29: #{visual_conv1d.1} parent=0 // pred_fallthru
    _
  // Predicated region
  $region30: #{visual_conv1d.1} parent=0 // pred_check
    _
  $region31: #{visual_conv1d.1} parent=0 // pred_check_branch
    %30 = sbr.rel (0) target = $region33
  $region32: #{visual_conv1d.1} parent=0 // pred_region
    _
  $region33: #{visual_conv1d.1} parent=0 // pred_fallthru
    _
  // Predicated region
  $region34: #{visual_conv1d.1} parent=0 // pred_check
    _
  $region35: #{visual_conv1d.1} parent=0 // pred_check_branch
    %32 = sbr.rel (0) target = $region37
  $region36: #{visual_conv1d.1} parent=0 // pred_region
    _
  $region37: #{visual_conv1d.1} parent=0 // pred_fallthru
    _
  %v33 = vld [vmem:[%s0] sm:$0xff]
  %v34 = vld [vmem:[%s0 + $0x8] sm:$0xff]
  %v35 = vld [vmem:[%s0 + $0x10] sm:$0xff]
  %v36 = vld [vmem:[%s0 + $0x18] sm:$0xff]
  %v37 = vld [vmem:[%s0 + $0x20] sm:$0xff]
  %v38 = vld [vmem:[%s0 + $0x28] sm:$0xff]
  %v39 = vld [vmem:[%s0 + $0x30] sm:$0xff]
  %v40 = vld [vmem:[%s0 + $0x38] sm:$0xff]
  %v41 = vlaneseq
  %v42 = vshrl.u32 %v41, 7
  %v43 = vadd.s32 %v42, 8
  %v44 = vadd.s32 %v42, 16
  %v45 = vadd.s32 %v42, 24
  %v46 = vlaneseq
  %v47 = vand.u32 %v46, 127
  %v48 = vadd.s32 %v47, 128
  %v49 = vadd.s32 %v47, 256
  %v50 = vadd.s32 %v47, 384
  %v51 = vmul.u32 %v42, 16
  %v52 = vmul.u32 %v43, 16
  %v53 = vmul.u32 %v44, 16
  %v54 = vmul.u32 %v45, 16
  %v55 = vsub.s32 %v47, %v51
  %v56 = vsub.s32 %v48, %v51
  %v57 = vsub.s32 %v49, %v51
  %v58 = vsub.s32 %v50, %v51
  %v59 = vsub.s32 %v47, %v52
  %v60 = vsub.s32 %v48, %v52
  %v61 = vsub.s32 %v49, %v52
  %v62 = vsub.s32 %v50, %v52
  %v63 = vsub.s32 %v47, %v53
  %v64 = vsub.s32 %v48, %v53
  %v65 = vsub.s32 %v49, %v53
  %v66 = vsub.s32 %v50, %v53
  %v67 = vsub.s32 %v47, %v54
  %v68 = vsub.s32 %v48, %v54
  %v69 = vsub.s32 %v49, %v54
  %v70 = vsub.s32 %v50, %v54
  %vm71 = vcmp.ge.s32.totalorder %v55, 0
  %vm72 = vcmp.ge.s32.totalorder %v56, 0
  %vm73 = vcmp.ge.s32.totalorder %v57, 0
  %vm74 = vcmp.ge.s32.totalorder %v58, 0
  %vm75 = vcmp.ge.s32.totalorder %v59, 0
  %vm76 = vcmp.ge.s32.totalorder %v60, 0
  %vm77 = vcmp.ge.s32.totalorder %v61, 0
  %vm78 = vcmp.ge.s32.totalorder %v62, 0
  %vm79 = vcmp.ge.s32.totalorder %v63, 0
  %vm80 = vcmp.ge.s32.totalorder %v64, 0
  %vm81 = vcmp.ge.s32.totalorder %v65, 0
  %vm82 = vcmp.ge.s32.totalorder %v66, 0
  %vm83 = vcmp.ge.s32.totalorder %v67, 0
  %vm84 = vcmp.ge.s32.totalorder %v68, 0
  %vm85 = vcmp.ge.s32.totalorder %v69, 0
  %vm86 = vcmp.ge.s32.totalorder %v70, 0
  %vm87 = vcmp.lt.s32.totalorder %v55, 16
  %vm88 = vcmp.lt.s32.totalorder %v56, 16
  %vm89 = vcmp.lt.s32.totalorder %v57, 16
  %vm90 = vcmp.lt.s32.totalorder %v58, 16
  %vm91 = vcmp.lt.s32.totalorder %v59, 16
  %vm92 = vcmp.lt.s32.totalorder %v60, 16
  %vm93 = vcmp.lt.s32.totalorder %v61, 16
  %vm94 = vcmp.lt.s32.totalorder %v62, 16
  %vm95 = vcmp.lt.s32.totalorder %v63, 16
  %vm96 = vcmp.lt.s32.totalorder %v64, 16
  %vm97 = vcmp.lt.s32.totalorder %v65, 16
  %vm98 = vcmp.lt.s32.totalorder %v66, 16
  %vm99 = vcmp.lt.s32.totalorder %v67, 16
  %vm100 = vcmp.lt.s32.totalorder %v68, 16
  %vm101 = vcmp.lt.s32.totalorder %v69, 16
  %vm102 = vcmp.lt.s32.totalorder %v70, 16
  %vm103 = vmand %vm71, %vm87
  %vm104 = vmand %vm72, %vm88
  %vm105 = vmand %vm73, %vm89
  %vm106 = vmand %vm74, %vm90
  %vm107 = vmand %vm75, %vm91
  %vm108 = vmand %vm76, %vm92
  %vm109 = vmand %vm77, %vm93
  %vm110 = vmand %vm78, %vm94
  %vm111 = vmand %vm79, %vm95
  %vm112 = vmand %vm80, %vm96
  %vm113 = vmand %vm81, %vm97
  %vm114 = vmand %vm82, %vm98
  %vm115 = vmand %vm83, %vm99
  %vm116 = vmand %vm84, %vm100
  %vm117 = vmand %vm85, %vm101
  %vm118 = vmand %vm86, %vm102
  %v119 = vsel %vm103, 1, 0
  %v120 = vsel %vm104, 1, 0
  %v121 = vsel %vm105, 1, 0
  %v122 = vsel %vm106, 1, 0
  %v123 = vsel %vm107, 1, 0
  %v124 = vsel %vm108, 1, 0
  %v125 = vsel %vm109, 1, 0
  %v126 = vsel %vm110, 1, 0
  %v127 = vsel %vm111, 1, 0
  %v128 = vsel %vm112, 1, 0
  %v129 = vsel %vm113, 1, 0
  %v130 = vsel %vm114, 1, 0
  %v131 = vsel %vm115, 1, 0
  %v132 = vsel %vm116, 1, 0
  %v133 = vsel %vm117, 1, 0
  %v134 = vsel %vm118, 1, 0
  %v135 = vcvt.s32.f32 %v119
  %v136 = vcvt.s32.f32 %v120
  %v137 = vcvt.s32.f32 %v121
  %v138 = vcvt.s32.f32 %v122
  %v139 = vcvt.s32.f32 %v123
  %v140 = vcvt.s32.f32 %v124
  %v141 = vcvt.s32.f32 %v125
  %v142 = vcvt.s32.f32 %v126
  %v143 = vcvt.s32.f32 %v127
  %v144 = vcvt.s32.f32 %v128
  %v145 = vcvt.s32.f32 %v129
  %v146 = vcvt.s32.f32 %v130
  %v147 = vcvt.s32.f32 %v131
  %v148 = vcvt.s32.f32 %v132
  %v149 = vcvt.s32.f32 %v133
  %v150 = vcvt.s32.f32 %v134
  %vm151 = vcmp.eq.s32.totalorder %v55, 0
  %vm152 = vcmp.eq.s32.totalorder %v56, 0
  %vm153 = vcmp.eq.s32.totalorder %v57, 0
  %vm154 = vcmp.eq.s32.totalorder %v58, 0
  %vm155 = vcmp.eq.s32.totalorder %v59, 0
  %vm156 = vcmp.eq.s32.totalorder %v60, 0
  %vm157 = vcmp.eq.s32.totalorder %v61, 0
  %vm158 = vcmp.eq.s32.totalorder %v62, 0
  %vm159 = vcmp.eq.s32.totalorder %v63, 0
  %vm160 = vcmp.eq.s32.totalorder %v64, 0
  %vm161 = vcmp.eq.s32.totalorder %v65, 0
  %vm162 = vcmp.eq.s32.totalorder %v66, 0
  %vm163 = vcmp.eq.s32.totalorder %v67, 0
  %vm164 = vcmp.eq.s32.totalorder %v68, 0
  %vm165 = vcmp.eq.s32.totalorder %v69, 0
  %vm166 = vcmp.eq.s32.totalorder %v70, 0
  %v167 = vsel %vm151, 1, 0
  %v168 = vsel %vm152, 1, 0
  %v169 = vsel %vm153, 1, 0
  %v170 = vsel %vm154, 1, 0
  %v171 = vsel %vm155, 1, 0
  %v172 = vsel %vm156, 1, 0
  %v173 = vsel %vm157, 1, 0
  %v174 = vsel %vm158, 1, 0
  %v175 = vsel %vm159, 1, 0
  %v176 = vsel %vm160, 1, 0
  %v177 = vsel %vm161, 1, 0
  %v178 = vsel %vm162, 1, 0
  %v179 = vsel %vm163, 1, 0
  %v180 = vsel %vm164, 1, 0
  %v181 = vsel %vm165, 1, 0
  %v182 = vsel %vm166, 1, 0
  %v183 = vcvt.s32.f32 %v167
  %v184 = vcvt.s32.f32 %v168
  %v185 = vcvt.s32.f32 %v169
  %v186 = vcvt.s32.f32 %v170
  %v187 = vcvt.s32.f32 %v171
  %v188 = vcvt.s32.f32 %v172
  %v189 = vcvt.s32.f32 %v173
  %v190 = vcvt.s32.f32 %v174
  %v191 = vcvt.s32.f32 %v175
  %v192 = vcvt.s32.f32 %v176
  %v193 = vcvt.s32.f32 %v177
  %v194 = vcvt.s32.f32 %v178
  %v195 = vcvt.s32.f32 %v179
  %v196 = vcvt.s32.f32 %v180
  %v197 = vcvt.s32.f32 %v181
  %v198 = vcvt.s32.f32 %v182
  %v199 = vadd.f32 %v183, %v187
  %v200 = vadd.f32 %v199, %v191
  %v201 = vadd.f32 %v200, %v195
  %v202 = vrot.slane %v201, 4
  %v203 = vadd.f32 %v201, %v202
  %v204 = vrot.slane %v203, 2
  %v205 = vadd.f32 %v203, %v204
  %v206 = vrot.slane %v205, 1
  %v207 = vadd.f32 %v205, %v206
  %v208 = vadd.f32 %v184, %v188
  %v209 = vadd.f32 %v208, %v192
  %v210 = vadd.f32 %v209, %v196
  %v211 = vrot.slane %v210, 4
  %v212 = vadd.f32 %v210, %v211
  %v213 = vrot.slane %v212, 2
  %v214 = vadd.f32 %v212, %v213
  %v215 = vrot.slane %v214, 1
  %v216 = vadd.f32 %v214, %v215
  %v217 = vadd.f32 %v185, %v189
  %v218 = vadd.f32 %v217, %v193
  %v219 = vadd.f32 %v218, %v197
  %v220 = vrot.slane %v219, 4
  %v221 = vadd.f32 %v219, %v220
  %v222 = vrot.slane %v221, 2
  %v223 = vadd.f32 %v221, %v222
  %v224 = vrot.slane %v223, 1
  %v225 = vadd.f32 %v223, %v224
  %v226 = vadd.f32 %v186, %v190
  %v227 = vadd.f32 %v226, %v194
  %v228 = vadd.f32 %v227, %v198
  %v229 = vrot.slane %v228, 4
  %v230 = vadd.f32 %v228, %v229
  %v231 = vrot.slane %v230, 2
  %v232 = vadd.f32 %v230, %v231
  %v233 = vrot.slane %v232, 1
  %v234 = vadd.f32 %v232, %v233
  %v235 = vsub.f32 1.0, %v207
  %v236 = vsub.f32 1.0, %v216
  %v237 = vsub.f32 1.0, %v225
  %v238 = vsub.f32 1.0, %v234
  %vm239 = vcmp.eq.s32.totalorder %v55, 15
  %vm240 = vcmp.eq.s32.totalorder %v56, 15
  %vm241 = vcmp.eq.s32.totalorder %v57, 15
  %vm242 = vcmp.eq.s32.totalorder %v58, 15
  %vm243 = vcmp.eq.s32.totalorder %v59, 15
  %vm244 = vcmp.eq.s32.totalorder %v60, 15
  %vm245 = vcmp.eq.s32.totalorder %v61, 15
  %vm246 = vcmp.eq.s32.totalorder %v62, 15
  %vm247 = vcmp.eq.s32.totalorder %v63, 15
  %vm248 = vcmp.eq.s32.totalorder %v64, 15
  %vm249 = vcmp.eq.s32.totalorder %v65, 15
  %vm250 = vcmp.eq.s32.totalorder %v66, 15
  %vm251 = vcmp.eq.s32.totalorder %v67, 15
  %vm252 = vcmp.eq.s32.totalorder %v68, 15
  %vm253 = vcmp.eq.s32.totalorder %v69, 15
  %vm254 = vcmp.eq.s32.totalorder %v70, 15
  %v255 = vsel %vm239, 1, 0
  %v256 = vsel %vm240, 1, 0
  %v257 = vsel %vm241, 1, 0
  %v258 = vsel %vm242, 1, 0
  %v259 = vsel %vm243, 1, 0
  %v260 = vsel %vm244, 1, 0
  %v261 = vsel %vm245, 1, 0
  %v262 = vsel %vm246, 1, 0
  %v263 = vsel %vm247, 1, 0
  %v264 = vsel %vm248, 1, 0
  %v265 = vsel %vm249, 1, 0
  %v266 = vsel %vm250, 1, 0
  %v267 = vsel %vm251, 1, 0
  %v268 = vsel %vm252, 1, 0
  %v269 = vsel %vm253, 1, 0
  %v270 = vsel %vm254, 1, 0
  %v271 = vcvt.s32.f32 %v255
  %v272 = vcvt.s32.f32 %v256
  %v273 = vcvt.s32.f32 %v257
  %v274 = vcvt.s32.f32 %v258
  %v275 = vcvt.s32.f32 %v259
  %v276 = vcvt.s32.f32 %v260
  %v277 = vcvt.s32.f32 %v261
  %v278 = vcvt.s32.f32 %v262
  %v279 = vcvt.s32.f32 %v263
  %v280 = vcvt.s32.f32 %v264
  %v281 = vcvt.s32.f32 %v265
  %v282 = vcvt.s32.f32 %v266
  %v283 = vcvt.s32.f32 %v267
  %v284 = vcvt.s32.f32 %v268
  %v285 = vcvt.s32.f32 %v269
  %v286 = vcvt.s32.f32 %v270
  %v287 = vadd.f32 %v271, %v275
  %v288 = vadd.f32 %v287, %v279
  %v289 = vadd.f32 %v288, %v283
  %v290 = vrot.slane %v289, 4
  %v291 = vadd.f32 %v289, %v290
  %v292 = vrot.slane %v291, 2
  %v293 = vadd.f32 %v291, %v292
  %v294 = vrot.slane %v293, 1
  %v295 = vadd.f32 %v293, %v294
  %v296 = vadd.f32 %v272, %v276
  %v297 = vadd.f32 %v296, %v280
  %v298 = vadd.f32 %v297, %v284
  %v299 = vrot.slane %v298, 4
  %v300 = vadd.f32 %v298, %v299
  %v301 = vrot.slane %v300, 2
  %v302 = vadd.f32 %v300, %v301
  %v303 = vrot.slane %v302, 1
  %v304 = vadd.f32 %v302, %v303
  %v305 = vadd.f32 %v273, %v277
  %v306 = vadd.f32 %v305, %v281
  %v307 = vadd.f32 %v306, %v285
  %v308 = vrot.slane %v307, 4
  %v309 = vadd.f32 %v307, %v308
  %v310 = vrot.slane %v309, 2
  %v311 = vadd.f32 %v309, %v310
  %v312 = vrot.slane %v311, 1
  %v313 = vadd.f32 %v311, %v312
  %v314 = vadd.f32 %v274, %v278
  %v315 = vadd.f32 %v314, %v282
  %v316 = vadd.f32 %v315, %v286
  %v317 = vrot.slane %v316, 4
  %v318 = vadd.f32 %v316, %v317
  %v319 = vrot.slane %v318, 2
  %v320 = vadd.f32 %v318, %v319
  %v321 = vrot.slane %v320, 1
  %v322 = vadd.f32 %v320, %v321
  %v323 = vsub.f32 1.0, %v295
  %v324 = vsub.f32 1.0, %v304
  %v325 = vsub.f32 1.0, %v313
  %v326 = vsub.f32 1.0, %v322
  %v327 = vadd.s32 %v42, 32
  %v328 = vadd.s32 %v42, 40
  %v329 = vadd.s32 %v42, 48
  %v330 = vadd.s32 %v42, 56
  %v331 = vadd.s32 %v42, 64
  %v332 = vadd.s32 %v42, 72
  %v333 = vadd.s32 %v42, 80
  %v334 = vadd.s32 %v42, 88
  %v335 = vadd.s32 %v42, 96
  %v336 = vadd.s32 %v42, 104
  %v337 = vadd.s32 %v42, 112
  %v338 = vadd.s32 %v42, 120
  %v339 = vadd.s32 %v42, 128
  %v340 = vadd.s32 %v42, 136
  %v341 = vadd.s32 %v42, 144
  %v342 = vadd.s32 %v42, 152
  %v343 = vadd.s32 %v42, 160
  %v344 = vadd.s32 %v42, 168
  %v345 = vadd.s32 %v42, 176
  %v346 = vadd.s32 %v42, 184
  %v347 = vadd.s32 %v42, 192
  %v348 = vadd.s32 %v42, 200
  %v349 = vadd.s32 %v42, 208
  %v350 = vadd.s32 %v42, 216
  %v351 = vadd.s32 %v42, 224
  %v352 = vadd.s32 %v42, 232
  %v353 = vadd.s32 %v42, 240
  %v354 = vadd.s32 %v42, 248
  %v355 = vadd.s32 %v42, 256
  %v356 = vadd.s32 %v42, 264
  %v357 = vadd.s32 %v42, 272
  %v358 = vadd.s32 %v42, 280
  %v359 = vadd.s32 %v42, 288
  %v360 = vadd.s32 %v42, 296
  %v361 = vadd.s32 %v42, 304
  %v362 = vadd.s32 %v42, 312
  %v363 = vadd.s32 %v42, 320
  %v364 = vadd.s32 %v42, 328
  %v365 = vadd.s32 %v42, 336
  %v366 = vadd.s32 %v42, 344
  %v367 = vadd.s32 %v42, 352
  %v368 = vadd.s32 %v42, 360
  %v369 = vadd.s32 %v42, 368
  %v370 = vadd.s32 %v42, 376
  %v371 = vadd.s32 %v42, 384
  %v372 = vadd.s32 %v42, 392
  %v373 = vadd.s32 %v42, 400
  %v374 = vadd.s32 %v42, 408
  %v375 = vadd.s32 %v42, 416
  %v376 = vadd.s32 %v42, 424
  %v377 = vadd.s32 %v42, 432
  %v378 = vadd.s32 %v42, 440
  %v379 = vadd.s32 %v42, 448
  %v380 = vadd.s32 %v42, 456
  %v381 = vadd.s32 %v42, 464
  %v382 = vadd.s32 %v42, 472
  %v383 = vadd.s32 %v42, 480
  %v384 = vadd.s32 %v42, 488
  %v385 = vadd.s32 %v42, 496
  %v386 = vadd.s32 %v42, 504
  %v387 = vmul.u32 %v47, 16
  %v388 = vsub.s32 %v42, %v387
  %v389 = vsub.s32 %v43, %v387
  %v390 = vsub.s32 %v44, %v387
  %v391 = vsub.s32 %v45, %v387
  %v392 = vsub.s32 %v327, %v387
  %v393 = vsub.s32 %v328, %v387
  %v394 = vsub.s32 %v329, %v387
  %v395 = vsub.s32 %v330, %v387
  %v396 = vsub.s32 %v331, %v387
  %v397 = vsub.s32 %v332, %v387
  %v398 = vsub.s32 %v333, %v387
  %v399 = vsub.s32 %v334, %v387
  %v400 = vsub.s32 %v335, %v387
  %v401 = vsub.s32 %v336, %v387
  %v402 = vsub.s32 %v337, %v387
  %v403 = vsub.s32 %v338, %v387
  %v404 = vsub.s32 %v339, %v387
  %v405 = vsub.s32 %v340, %v387
  %v406 = vsub.s32 %v341, %v387
  %v407 = vsub.s32 %v342, %v387
  %v408 = vsub.s32 %v343, %v387
  %v409 = vsub.s32 %v344, %v387
  %v410 = vsub.s32 %v345, %v387
  %v411 = vsub.s32 %v346, %v387
  %v412 = vsub.s32 %v347, %v387
  %v413 = vsub.s32 %v348, %v387
  %v414 = vsub.s32 %v349, %v387
  %v415 = vsub.s32 %v350, %v387
  %v416 = vsub.s32 %v351, %v387
  %v417 = vsub.s32 %v352, %v387
  %v418 = vsub.s32 %v353, %v387
  %v419 = vsub.s32 %v354, %v387
  %v420 = vsub.s32 %v355, %v387
  %v421 = vsub.s32 %v356, %v387
  %v422 = vsub.s32 %v357, %v387
  %v423 = vsub.s32 %v358, %v387
  %v424 = vsub.s32 %v359, %v387
  %v425 = vsub.s32 %v360, %v387
  %v426 = vsub.s32 %v361, %v387
  %v427 = vsub.s32 %v362, %v387
  %v428 = vsub.s32 %v363, %v387
  %v429 = vsub.s32 %v364, %v387
  %v430 = vsub.s32 %v365, %v387
  %v431 = vsub.s32 %v366, %v387
  %v432 = vsub.s32 %v367, %v387
  %v433 = vsub.s32 %v368, %v387
  %v434 = vsub.s32 %v369, %v387
  %v435 = vsub.s32 %v370, %v387
  %v436 = vsub.s32 %v371, %v387
  %v437 = vsub.s32 %v372, %v387
  %v438 = vsub.s32 %v373, %v387
  %v439 = vsub.s32 %v374, %v387
  %v440 = vsub.s32 %v375, %v387
  %v441 = vsub.s32 %v376, %v387
  %v442 = vsub.s32 %v377, %v387
  %v443 = vsub.s32 %v378, %v387
  %v444 = vsub.s32 %v379, %v387
  %v445 = vsub.s32 %v380, %v387
  %v446 = vsub.s32 %v381, %v387
  %v447 = vsub.s32 %v382, %v387
  %v448 = vsub.s32 %v383, %v387
  %v449 = vsub.s32 %v384, %v387
  %v450 = vsub.s32 %v385, %v387
  %v451 = vsub.s32 %v386, %v387
  %vm452 = vcmp.ge.s32.totalorder %v388, 0
  %vm453 = vcmp.ge.s32.totalorder %v389, 0
  %vm454 = vcmp.ge.s32.totalorder %v390, 0
  %vm455 = vcmp.ge.s32.totalorder %v391, 0
  %vm456 = vcmp.ge.s32.totalorder %v392, 0
  %vm457 = vcmp.ge.s32.totalorder %v393, 0
  %vm458 = vcmp.ge.s32.totalorder %v394, 0
  %vm459 = vcmp.ge.s32.totalorder %v395, 0
  %vm460 = vcmp.ge.s32.totalorder %v396, 0
  %vm461 = vcmp.ge.s32.totalorder %v397, 0
  %vm462 = vcmp.ge.s32.totalorder %v398, 0
  %vm463 = vcmp.ge.s32.totalorder %v399, 0
  %vm464 = vcmp.ge.s32.totalorder %v400, 0
  %vm465 = vcmp.ge.s32.totalorder %v401, 0
  %vm466 = vcmp.ge.s32.totalorder %v402, 0
  %vm467 = vcmp.ge.s32.totalorder %v403, 0
  %vm468 = vcmp.ge.s32.totalorder %v404, 0
  %vm469 = vcmp.ge.s32.totalorder %v405, 0
  %vm470 = vcmp.ge.s32.totalorder %v406, 0
  %vm471 = vcmp.ge.s32.totalorder %v407, 0
  %vm472 = vcmp.ge.s32.totalorder %v408, 0
  %vm473 = vcmp.ge.s32.totalorder %v409, 0
  %vm474 = vcmp.ge.s32.totalorder %v410, 0
  %vm475 = vcmp.ge.s32.totalorder %v411, 0
  %vm476 = vcmp.ge.s32.totalorder %v412, 0
  %vm477 = vcmp.ge.s32.totalorder %v413, 0
  %vm478 = vcmp.ge.s32.totalorder %v414, 0
  %vm479 = vcmp.ge.s32.totalorder %v415, 0
  %vm480 = vcmp.ge.s32.totalorder %v416, 0
  %vm481 = vcmp.ge.s32.totalorder %v417, 0
  %vm482 = vcmp.ge.s32.totalorder %v418, 0
  %vm483 = vcmp.ge.s32.totalorder %v419, 0
  %vm484 = vcmp.ge.s32.totalorder %v420, 0
  %vm485 = vcmp.ge.s32.totalorder %v421, 0
  %vm486 = vcmp.ge.s32.totalorder %v422, 0
  %vm487 = vcmp.ge.s32.totalorder %v423, 0
  %vm488 = vcmp.ge.s32.totalorder %v424, 0
  %vm489 = vcmp.ge.s32.totalorder %v425, 0
  %vm490 = vcmp.ge.s32.totalorder %v426, 0
  %vm491 = vcmp.ge.s32.totalorder %v427, 0
  %vm492 = vcmp.ge.s32.totalorder %v428, 0
  %vm493 = vcmp.ge.s32.totalorder %v429, 0
  %vm494 = vcmp.ge.s32.totalorder %v430, 0
  %vm495 = vcmp.ge.s32.totalorder %v431, 0
  %vm496 = vcmp.ge.s32.totalorder %v432, 0
  %vm497 = vcmp.ge.s32.totalorder %v433, 0
  %vm498 = vcmp.ge.s32.totalorder %v434, 0
  %vm499 = vcmp.ge.s32.totalorder %v435, 0
  %vm500 = vcmp.ge.s32.totalorder %v436, 0
  %vm501 = vcmp.ge.s32.totalorder %v437, 0
  %vm502 = vcmp.ge.s32.totalorder %v438, 0
  %vm503 = vcmp.ge.s32.totalorder %v439, 0
  %vm504 = vcmp.ge.s32.totalorder %v440, 0
  %vm505 = vcmp.ge.s32.totalorder %v441, 0
  %vm506 = vcmp.ge.s32.totalorder %v442, 0
  %vm507 = vcmp.ge.s32.totalorder %v443, 0
  %vm508 = vcmp.ge.s32.totalorder %v444, 0
  %vm509 = vcmp.ge.s32.totalorder %v445, 0
  %vm510 = vcmp.ge.s32.totalorder %v446, 0
  %vm511 = vcmp.ge.s32.totalorder %v447, 0
  %vm512 = vcmp.ge.s32.totalorder %v448, 0
  %vm513 = vcmp.ge.s32.totalorder %v449, 0
  %vm514 = vcmp.ge.s32.totalorder %v450, 0
  %vm515 = vcmp.ge.s32.totalorder %v451, 0
  %vm516 = vcmp.lt.s32.totalorder %v388, 16
  %vm517 = vcmp.lt.s32.totalorder %v389, 16
  %vm518 = vcmp.lt.s32.totalorder %v390, 16
  %vm519 = vcmp.lt.s32.totalorder %v391, 16
  %vm520 = vcmp.lt.s32.totalorder %v392, 16
  %vm521 = vcmp.lt.s32.totalorder %v393, 16
  %vm522 = vcmp.lt.s32.totalorder %v394, 16
  %vm523 = vcmp.lt.s32.totalorder %v395, 16
  %vm524 = vcmp.lt.s32.totalorder %v396, 16
  %vm525 = vcmp.lt.s32.totalorder %v397, 16
  %vm526 = vcmp.lt.s32.totalorder %v398, 16
  %vm527 = vcmp.lt.s32.totalorder %v399, 16
  %vm528 = vcmp.lt.s32.totalorder %v400, 16
  %vm529 = vcmp.lt.s32.totalorder %v401, 16
  %vm530 = vcmp.lt.s32.totalorder %v402, 16
  %vm531 = vcmp.lt.s32.totalorder %v403, 16
  %vm532 = vcmp.lt.s32.totalorder %v404, 16
  %vm533 = vcmp.lt.s32.totalorder %v405, 16
  %vm534 = vcmp.lt.s32.totalorder %v406, 16
  %vm535 = vcmp.lt.s32.totalorder %v407, 16
  %vm536 = vcmp.lt.s32.totalorder %v408, 16
  %vm537 = vcmp.lt.s32.totalorder %v409, 16
  %vm538 = vcmp.lt.s32.totalorder %v410, 16
  %vm539 = vcmp.lt.s32.totalorder %v411, 16
  %vm540 = vcmp.lt.s32.totalorder %v412, 16
  %vm541 = vcmp.lt.s32.totalorder %v413, 16
  %vm542 = vcmp.lt.s32.totalorder %v414, 16
  %vm543 = vcmp.lt.s32.totalorder %v415, 16
  %vm544 = vcmp.lt.s32.totalorder %v416, 16
  %vm545 = vcmp.lt.s32.totalorder %v417, 16
  %vm546 = vcmp.lt.s32.totalorder %v418, 16
  %vm547 = vcmp.lt.s32.totalorder %v419, 16
  %vm548 = vcmp.lt.s32.totalorder %v420, 16
  %vm549 = vcmp.lt.s32.totalorder %v421, 16
  %vm550 = vcmp.lt.s32.totalorder %v422, 16
  %vm551 = vcmp.lt.s32.totalorder %v423, 16
  %vm552 = vcmp.lt.s32.totalorder %v424, 16
  %vm553 = vcmp.lt.s32.totalorder %v425, 16
  %vm554 = vcmp.lt.s32.totalorder %v426, 16
  %vm555 = vcmp.lt.s32.totalorder %v427, 16
  %vm556 = vcmp.lt.s32.totalorder %v428, 16
  %vm557 = vcmp.lt.s32.totalorder %v429, 16
  %vm558 = vcmp.lt.s32.totalorder %v430, 16
  %vm559 = vcmp.lt.s32.totalorder %v431, 16
  %vm560 = vcmp.lt.s32.totalorder %v432, 16
  %vm561 = vcmp.lt.s32.totalorder %v433, 16
  %vm562 = vcmp.lt.s32.totalorder %v434, 16
  %vm563 = vcmp.lt.s32.totalorder %v435, 16
  %vm564 = vcmp.lt.s32.totalorder %v436, 16
  %vm565 = vcmp.lt.s32.totalorder %v437, 16
  %vm566 = vcmp.lt.s32.totalorder %v438, 16
  %vm567 = vcmp.lt.s32.totalorder %v439, 16
  %vm568 = vcmp.lt.s32.totalorder %v440, 16
  %vm569 = vcmp.lt.s32.totalorder %v441, 16
  %vm570 = vcmp.lt.s32.totalorder %v442, 16
  %vm571 = vcmp.lt.s32.totalorder %v443, 16
  %vm572 = vcmp.lt.s32.totalorder %v444, 16
  %vm573 = vcmp.lt.s32.totalorder %v445, 16
  %vm574 = vcmp.lt.s32.totalorder %v446, 16
  %vm575 = vcmp.lt.s32.totalorder %v447, 16
  %vm576 = vcmp.lt.s32.totalorder %v448, 16
  %vm577 = vcmp.lt.s32.totalorder %v449, 16
  %vm578 = vcmp.lt.s32.totalorder %v450, 16
  %vm579 = vcmp.lt.s32.totalorder %v451, 16
  %vm580 = vmand %vm452, %vm516
  %vm581 = vmand %vm453, %vm517
  %vm582 = vmand %vm454, %vm518
  %vm583 = vmand %vm455, %vm519
  %vm584 = vmand %vm456, %vm520
  %vm585 = vmand %vm457, %vm521
  %vm586 = vmand %vm458, %vm522
  %vm587 = vmand %vm459, %vm523
  %vm588 = vmand %vm460, %vm524
  %vm589 = vmand %vm461, %vm525
  %vm590 = vmand %vm462, %vm526
  %vm591 = vmand %vm463, %vm527
  %vm592 = vmand %vm464, %vm528
  %vm593 = vmand %vm465, %vm529
  %vm594 = vmand %vm466, %vm530
  %vm595 = vmand %vm467, %vm531
  %vm596 = vmand %vm468, %vm532
  %vm597 = vmand %vm469, %vm533
  %vm598 = vmand %vm470, %vm534
  %vm599 = vmand %vm471, %vm535
  %vm600 = vmand %vm472, %vm536
  %vm601 = vmand %vm473, %vm537
  %vm602 = vmand %vm474, %vm538
  %vm603 = vmand %vm475, %vm539
  %vm604 = vmand %vm476, %vm540
  %vm605 = vmand %vm477, %vm541
  %vm606 = vmand %vm478, %vm542
  %vm607 = vmand %vm479, %vm543
  %vm608 = vmand %vm480, %vm544
  %vm609 = vmand %vm481, %vm545
  %vm610 = vmand %vm482, %vm546
  %vm611 = vmand %vm483, %vm547
  %vm612 = vmand %vm484, %vm548
  %vm613 = vmand %vm485, %vm549
  %vm614 = vmand %vm486, %vm550
  %vm615 = vmand %vm487, %vm551
  %vm616 = vmand %vm488, %vm552
  %vm617 = vmand %vm489, %vm553
  %vm618 = vmand %vm490, %vm554
  %vm619 = vmand %vm491, %vm555
  %vm620 = vmand %vm492, %vm556
  %vm621 = vmand %vm493, %vm557
  %vm622 = vmand %vm494, %vm558
  %vm623 = vmand %vm495, %vm559
  %vm624 = vmand %vm496, %vm560
  %vm625 = vmand %vm497, %vm561
  %vm626 = vmand %vm498, %vm562
  %vm627 = vmand %vm499, %vm563
  %vm628 = vmand %vm500, %vm564
  %vm629 = vmand %vm501, %vm565
  %vm630 = vmand %vm502, %vm566
  %vm631 = vmand %vm503, %vm567
  %vm632 = vmand %vm504, %vm568
  %vm633 = vmand %vm505, %vm569
  %vm634 = vmand %vm506, %vm570
  %vm635 = vmand %vm507, %vm571
  %vm636 = vmand %vm508, %vm572
  %vm637 = vmand %vm509, %vm573
  %vm638 = vmand %vm510, %vm574
  %vm639 = vmand %vm511, %vm575
  %vm640 = vmand %vm512, %vm576
  %vm641 = vmand %vm513, %vm577
  %vm642 = vmand %vm514, %vm578
  %vm643 = vmand %vm515, %vm579
  %v644 = vsel %vm580, 1, 0
  %v645 = vsel %vm581, 1, 0
  %v646 = vsel %vm582, 1, 0
  %v647 = vsel %vm583, 1, 0
  %v648 = vsel %vm584, 1, 0
  %v649 = vsel %vm585, 1, 0
  %v650 = vsel %vm586, 1, 0
  %v651 = vsel %vm587, 1, 0
  %v652 = vsel %vm588, 1, 0
  %v653 = vsel %vm589, 1, 0
  %v654 = vsel %vm590, 1, 0
  %v655 = vsel %vm591, 1, 0
  %v656 = vsel %vm592, 1, 0
  %v657 = vsel %vm593, 1, 0
  %v658 = vsel %vm594, 1, 0
  %v659 = vsel %vm595, 1, 0
  %v660 = vsel %vm596, 1, 0
  %v661 = vsel %vm597, 1, 0
  %v662 = vsel %vm598, 1, 0
  %v663 = vsel %vm599, 1, 0
  %v664 = vsel %vm600, 1, 0
  %v665 = vsel %vm601, 1, 0
  %v666 = vsel %vm602, 1, 0
  %v667 = vsel %vm603, 1, 0
  %v668 = vsel %vm604, 1, 0
  %v669 = vsel %vm605, 1, 0
  %v670 = vsel %vm606, 1, 0
  %v671 = vsel %vm607, 1, 0
  %v672 = vsel %vm608, 1, 0
  %v673 = vsel %vm609, 1, 0
  %v674 = vsel %vm610, 1, 0
  %v675 = vsel %vm611, 1, 0
  %v676 = vsel %vm612, 1, 0
  %v677 = vsel %vm613, 1, 0
  %v678 = vsel %vm614, 1, 0
  %v679 = vsel %vm615, 1, 0
  %v680 = vsel %vm616, 1, 0
  %v681 = vsel %vm617, 1, 0
  %v682 = vsel %vm618, 1, 0
  %v683 = vsel %vm619, 1, 0
  %v684 = vsel %vm620, 1, 0
  %v685 = vsel %vm621, 1, 0
  %v686 = vsel %vm622, 1, 0
  %v687 = vsel %vm623, 1, 0
  %v688 = vsel %vm624, 1, 0
  %v689 = vsel %vm625, 1, 0
  %v690 = vsel %vm626, 1, 0
  %v691 = vsel %vm627, 1, 0
  %v692 = vsel %vm628, 1, 0
  %v693 = vsel %vm629, 1, 0
  %v694 = vsel %vm630, 1, 0
  %v695 = vsel %vm631, 1, 0
  %v696 = vsel %vm632, 1, 0
  %v697 = vsel %vm633, 1, 0
  %v698 = vsel %vm634, 1, 0
  %v699 = vsel %vm635, 1, 0
  %v700 = vsel %vm636, 1, 0
  %v701 = vsel %vm637, 1, 0
  %v702 = vsel %vm638, 1, 0
  %v703 = vsel %vm639, 1, 0
  %v704 = vsel %vm640, 1, 0
  %v705 = vsel %vm641, 1, 0
  %v706 = vsel %vm642, 1, 0
  %v707 = vsel %vm643, 1, 0
  %v708 = vcvt.s32.f32 %v644
  %v709 = vcvt.s32.f32 %v645
  %v710 = vcvt.s32.f32 %v646
  %v711 = vcvt.s32.f32 %v647
  %v712 = vcvt.s32.f32 %v648
  %v713 = vcvt.s32.f32 %v649
  %v714 = vcvt.s32.f32 %v650
  %v715 = vcvt.s32.f32 %v651
  %v716 = vcvt.s32.f32 %v652
  %v717 = vcvt.s32.f32 %v653
  %v718 = vcvt.s32.f32 %v654
  %v719 = vcvt.s32.f32 %v655
  %v720 = vcvt.s32.f32 %v656
  %v721 = vcvt.s32.f32 %v657
  %v722 = vcvt.s32.f32 %v658
  %v723 = vcvt.s32.f32 %v659
  %v724 = vcvt.s32.f32 %v660
  %v725 = vcvt.s32.f32 %v661
  %v726 = vcvt.s32.f32 %v662
  %v727 = vcvt.s32.f32 %v663
  %v728 = vcvt.s32.f32 %v664
  %v729 = vcvt.s32.f32 %v665
  %v730 = vcvt.s32.f32 %v666
  %v731 = vcvt.s32.f32 %v667
  %v732 = vcvt.s32.f32 %v668
  %v733 = vcvt.s32.f32 %v669
  %v734 = vcvt.s32.f32 %v670
  %v735 = vcvt.s32.f32 %v671
  %v736 = vcvt.s32.f32 %v672
  %v737 = vcvt.s32.f32 %v673
  %v738 = vcvt.s32.f32 %v674
  %v739 = vcvt.s32.f32 %v675
  %v740 = vcvt.s32.f32 %v676
  %v741 = vcvt.s32.f32 %v677
  %v742 = vcvt.s32.f32 %v678
  %v743 = vcvt.s32.f32 %v679
  %v744 = vcvt.s32.f32 %v680
  %v745 = vcvt.s32.f32 %v681
  %v746 = vcvt.s32.f32 %v682
  %v747 = vcvt.s32.f32 %v683
  %v748 = vcvt.s32.f32 %v684
  %v749 = vcvt.s32.f32 %v685
  %v750 = vcvt.s32.f32 %v686
  %v751 = vcvt.s32.f32 %v687
  %v752 = vcvt.s32.f32 %v688
  %v753 = vcvt.s32.f32 %v689
  %v754 = vcvt.s32.f32 %v690
  %v755 = vcvt.s32.f32 %v691
  %v756 = vcvt.s32.f32 %v692
  %v757 = vcvt.s32.f32 %v693
  %v758 = vcvt.s32.f32 %v694
  %v759 = vcvt.s32.f32 %v695
  %v760 = vcvt.s32.f32 %v696
  %v761 = vcvt.s32.f32 %v697
  %v762 = vcvt.s32.f32 %v698
  %v763 = vcvt.s32.f32 %v699
  %v764 = vcvt.s32.f32 %v700
  %v765 = vcvt.s32.f32 %v701
  %v766 = vcvt.s32.f32 %v702
  %v767 = vcvt.s32.f32 %v703
  %v768 = vcvt.s32.f32 %v704
  %v769 = vcvt.s32.f32 %v705
  %v770 = vcvt.s32.f32 %v706
  %v771 = vcvt.s32.f32 %v707
  %v772 = vmax.f32 %v33, 0.0
  %v773 = vmax.f32 %v34, 0.0
  %v774 = vmax.f32 %v35, 0.0
  %v775 = vmax.f32 %v36, 0.0
  %v776 = vmax.f32 %v37, 0.0
  %v777 = vmax.f32 %v38, 0.0
  %v778 = vmax.f32 %v39, 0.0
  %v779 = vmax.f32 %v40, 0.0
  %v780 = vadd.f32 %v772, %v776
  %v781 = vrot.slane %v780, 4
  %v782 = vadd.f32 %v780, %v781
  %v783 = vrot.slane %v782, 2
  %v784 = vadd.f32 %v782, %v783
  %v785 = vrot.slane %v784, 1
  %v786 = vadd.f32 %v784, %v785
  %v787 = vadd.f32 %v773, %v777
  %v788 = vrot.slane %v787, 4
  %v789 = vadd.f32 %v787, %v788
  %v790 = vrot.slane %v789, 2
  %v791 = vadd.f32 %v789, %v790
  %v792 = vrot.slane %v791, 1
  %v793 = vadd.f32 %v791, %v792
  %v794 = vadd.f32 %v774, %v778
  %v795 = vrot.slane %v794, 4
  %v796 = vadd.f32 %v794, %v795
  %v797 = vrot.slane %v796, 2
  %v798 = vadd.f32 %v796, %v797
  %v799 = vrot.slane %v798, 1
  %v800 = vadd.f32 %v798, %v799
  %v801 = vadd.f32 %v775, %v779
  %v802 = vrot.slane %v801, 4
  %v803 = vadd.f32 %v801, %v802
  %v804 = vrot.slane %v803, 2
  %v805 = vadd.f32 %v803, %v804
  %v806 = vrot.slane %v805, 1
  %v807 = vadd.f32 %v805, %v806
  %v808 = vmul.f32 %v772, %v772
  %v809 = vmul.f32 %v773, %v773
  %v810 = vmul.f32 %v774, %v774
  %v811 = vmul.f32 %v775, %v775
  %v812 = vmul.f32 %v776, %v776
  %v813 = vmul.f32 %v777, %v777
  %v814 = vmul.f32 %v778, %v778
  %v815 = vmul.f32 %v779, %v779
  %v816 = vadd.f32 %v808, %v812
  %v817 = vrot.slane %v816, 4
  %v818 = vadd.f32 %v816, %v817
  %v819 = vrot.slane %v818, 2
  %v820 = vadd.f32 %v818, %v819
  %v821 = vrot.slane %v820, 1
  %v822 = vadd.f32 %v820, %v821
  %v823 = vadd.f32 %v809, %v813
  %v824 = vrot.slane %v823, 4
  %v825 = vadd.f32 %v823, %v824
  %v826 = vrot.slane %v825, 2
  %v827 = vadd.f32 %v825, %v826
  %v828 = vrot.slane %v827, 1
  %v829 = vadd.f32 %v827, %v828
  %v830 = vadd.f32 %v810, %v814
  %v831 = vrot.slane %v830, 4
  %v832 = vadd.f32 %v830, %v831
  %v833 = vrot.slane %v832, 2
  %v834 = vadd.f32 %v832, %v833
  %v835 = vrot.slane %v834, 1
  %v836 = vadd.f32 %v834, %v835
  %v837 = vadd.f32 %v811, %v815
  %v838 = vrot.slane %v837, 4
  %v839 = vadd.f32 %v837, %v838
  %v840 = vrot.slane %v839, 2
  %v841 = vadd.f32 %v839, %v840
  %v842 = vrot.slane %v841, 1
  %v843 = vadd.f32 %v841, %v842
  %v844 = vpack.c.bf16 %v786, %v786
  %v845 = vpack.c.bf16 %v793, %v793
  %v846 = vpack.c.bf16 %v800, %v800
  %v847 = vpack.c.bf16 %v807, %v807
  %v848 = vunpack.c.l.bf16 %v844
  %v849 = vunpack.c.l.bf16 %v845
  %v850 = vunpack.c.l.bf16 %v846
  %v851 = vunpack.c.l.bf16 %v847
  %v852 = vpack.c.bf16 %v822, %v822
  %v853 = vpack.c.bf16 %v829, %v829
  %v854 = vpack.c.bf16 %v836, %v836
  %v855 = vpack.c.bf16 %v843, %v843
  %v856 = vunpack.c.l.bf16 %v852
  %v857 = vunpack.c.l.bf16 %v853
  %v858 = vunpack.c.l.bf16 %v854
  %v859 = vunpack.c.l.bf16 %v855
  %v860 = vsub.f32 %v786, %v848
  %v861 = vsub.f32 %v793, %v849
  %v862 = vsub.f32 %v800, %v850
  %v863 = vsub.f32 %v807, %v851
  %v864 = vsub.f32 %v822, %v856
  %v865 = vsub.f32 %v829, %v857
  %v866 = vsub.f32 %v836, %v858
  %v867 = vsub.f32 %v843, %v859
  %vm868 = vcmp.eq.s32.totalorder %v42, 0
  %vm869 = vcmp.eq.s32.totalorder %v42, 1
  %vm870 = vcmp.eq.s32.totalorder %v42, 2
  %v871 = vsel %vm870, %v856, %v864
  %v872 = vsel %vm870, %v857, %v865
  %v873 = vsel %vm870, %v858, %v866
  %v874 = vsel %vm870, %v859, %v867
  %v875 = vsel %vm869, %v860, %v871
  %v876 = vsel %vm869, %v861, %v872
  %v877 = vsel %vm869, %v862, %v873
  %v878 = vsel %vm869, %v863, %v874
  %v879 = vsel %vm868, %v848, %v875
  %v880 = vsel %vm868, %v849, %v876
  %v881 = vsel %vm868, %v850, %v877
  %v882 = vsel %vm868, %v851, %v878
  %883 = vmatprep.subr.mxu0 0.0
  %884 = vmatpush1.msra.mxu0 %v723
  %885 = vmatprep.subr.mxu0 0.0
  %886 = vmatpush1.msra.mxu0 %v722
  %887 = vmatprep.subr.mxu0 0.0
  %888 = vmatpush1.msra.mxu0 %v721
  %889 = vmatprep.subr.mxu0 0.0
  %890 = vmatpush1.msra.mxu0 %v720
  %891 = vmatprep.subr.mxu0 0.0
  %892 = vmatpush1.msra.mxu0 %v719
  %893 = vmatprep.subr.mxu0 0.0
  %894 = vmatpush1.msra.mxu0 %v718
  %895 = vmatprep.subr.mxu0 0.0
  %896 = vmatpush1.msra.mxu0 %v717
  %897 = vmatprep.subr.mxu0 0.0
  %898 = vmatpush1.msra.mxu0 %v716
  %899 = vmatprep.subr.mxu0 0.0
  %900 = vmatpush1.msra.mxu0 %v715
  %901 = vmatprep.subr.mxu0 0.0
  %902 = vmatpush1.msra.mxu0 %v714
  %903 = vmatprep.subr.mxu0 0.0
  %904 = vmatpush1.msra.mxu0 %v713
  %905 = vmatprep.subr.mxu0 0.0
  %906 = vmatpush1.msra.mxu0 %v712
  %907 = vmatprep.subr.mxu0 0.0
  %908 = vmatpush1.msra.mxu0 %v711
  %909 = vmatprep.subr.mxu0 0.0
  %910 = vmatpush1.msra.mxu0 %v710
  %911 = vmatprep.subr.mxu0 0.0
  %912 = vmatpush1.msra.mxu0 %v709
  %913 = vmatprep.subr.mxu0 0.0
  %914 = vmatpush1.msra.mxu0 %v708
  %915 = vmatprep.subr.mxu0 0.0
  %916 = vmatpush2.msra.mxu0 %v739
  %917 = vmatprep.subr.mxu0 0.0
  %918 = vmatpush2.msra.mxu0 %v738
  %919 = vmatprep.subr.mxu0 0.0
  %920 = vmatpush2.msra.mxu0 %v737
  %921 = vmatprep.subr.mxu0 0.0
  %922 = vmatpush2.msra.mxu0 %v736
  %923 = vmatprep.subr.mxu0 0.0
  %924 = vmatpush2.msra.mxu0 %v735
  %925 = vmatprep.subr.mxu0 0.0
  %926 = vmatpush2.msra.mxu0 %v734
  %927 = vmatprep.subr.mxu0 0.0
  %928 = vmatpush2.msra.mxu0 %v733
  %929 = vmatprep.subr.mxu0 0.0
  %930 = vmatpush2.msra.mxu0 %v732
  %931 = vmatprep.subr.mxu0 0.0
  %932 = vmatpush2.msra.mxu0 %v731
  %933 = vmatprep.subr.mxu0 0.0
  %934 = vmatpush2.msra.mxu0 %v730
  %935 = vmatprep.subr.mxu0 0.0
  %936 = vmatpush2.msra.mxu0 %v729
  %937 = vmatprep.subr.mxu0 0.0
  %938 = vmatpush2.msra.mxu0 %v728
  %939 = vmatprep.subr.mxu0 0.0
  %940 = vmatpush2.msra.mxu0 %v727
  %941 = vmatprep.subr.mxu0 0.0
  %942 = vmatpush2.msra.mxu0 %v726
  %943 = vmatprep.subr.mxu0 0.0
  %944 = vmatpush2.msra.mxu0 %v725
  %945 = vmatprep.subr.mxu0 0.0
  %946 = vmatpush2.msra.mxu0 %v724
  %947 = vmatprep.mubr.f32.mxu0 %v880
  %948 = vmatmul.mubr.f32.gmra.mxu0 %v879
  %v949 = vpop.f32.mrf.mxu0
  %v950 = vadd.f32 0.0, %v949
  %v951 = vpop.f32.mrf.mxu0
  %952 = vdwg.mxu0
  %953 = vmatprep.subr.mxu0 0.0
  %954 = vmatpush1.msra.mxu0 %v755
  %955 = vmatprep.subr.mxu0 0.0
  %956 = vmatpush1.msra.mxu0 %v754
  %957 = vmatprep.subr.mxu0 0.0
  %958 = vmatpush1.msra.mxu0 %v753
  %959 = vmatprep.subr.mxu0 0.0
  %960 = vmatpush1.msra.mxu0 %v752
  %961 = vmatprep.subr.mxu0 0.0
  %962 = vmatpush1.msra.mxu0 %v751
  %963 = vmatprep.subr.mxu0 0.0
  %964 = vmatpush1.msra.mxu0 %v750
  %965 = vmatprep.subr.mxu0 0.0
  %966 = vmatpush1.msra.mxu0 %v749
  %967 = vmatprep.subr.mxu0 0.0
  %968 = vmatpush1.msra.mxu0 %v748
  %969 = vmatprep.subr.mxu0 0.0
  %970 = vmatpush1.msra.mxu0 %v747
  %971 = vmatprep.subr.mxu0 0.0
  %972 = vmatpush1.msra.mxu0 %v746
  %973 = vmatprep.subr.mxu0 0.0
  %974 = vmatpush1.msra.mxu0 %v745
  %975 = vmatprep.subr.mxu0 0.0
  %976 = vmatpush1.msra.mxu0 %v744
  %977 = vmatprep.subr.mxu0 0.0
  %978 = vmatpush1.msra.mxu0 %v743
  %979 = vmatprep.subr.mxu0 0.0
  %980 = vmatpush1.msra.mxu0 %v742
  %981 = vmatprep.subr.mxu0 0.0
  %982 = vmatpush1.msra.mxu0 %v741
  %983 = vmatprep.subr.mxu0 0.0
  %984 = vmatpush1.msra.mxu0 %v740
  %985 = vmatprep.subr.mxu0 0.0
  %986 = vmatpush2.msra.mxu0 %v771
  %987 = vmatprep.subr.mxu0 0.0
  %988 = vmatpush2.msra.mxu0 %v770
  %989 = vmatprep.subr.mxu0 0.0
  %990 = vmatpush2.msra.mxu0 %v769
  %991 = vmatprep.subr.mxu0 0.0
  %992 = vmatpush2.msra.mxu0 %v768
  %993 = vmatprep.subr.mxu0 0.0
  %994 = vmatpush2.msra.mxu0 %v767
  %995 = vmatprep.subr.mxu0 0.0
  %996 = vmatpush2.msra.mxu0 %v766
  %997 = vmatprep.subr.mxu0 0.0
  %998 = vmatpush2.msra.mxu0 %v765
  %999 = vmatprep.subr.mxu0 0.0
  %1000 = vmatpush2.msra.mxu0 %v764
  %1001 = vmatprep.subr.mxu0 0.0
  %1002 = vmatpush2.msra.mxu0 %v763
  %1003 = vmatprep.subr.mxu0 0.0
  %1004 = vmatpush2.msra.mxu0 %v762
  %1005 = vmatprep.subr.mxu0 0.0
  %1006 = vmatpush2.msra.mxu0 %v761
  %1007 = vmatprep.subr.mxu0 0.0
  %1008 = vmatpush2.msra.mxu0 %v760
  %1009 = vmatprep.subr.mxu0 0.0
  %1010 = vmatpush2.msra.mxu0 %v759
  %1011 = vmatprep.subr.mxu0 0.0
  %1012 = vmatpush2.msra.mxu0 %v758
  %1013 = vmatprep.subr.mxu0 0.0
  %1014 = vmatpush2.msra.mxu0 %v757
  %1015 = vmatprep.subr.mxu0 0.0
  %1016 = vmatpush2.msra.mxu0 %v756
  %1017 = vmatprep.mubr.f32.mxu0 %v882
  %1018 = vmatmul.mubr.f32.gmra.mxu0 %v881
  %v1019 = vpop.f32.mrf.mxu0
  %v1020 = vadd.f32 %v950, %v1019
  %v1021 = vpop.f32.mrf.mxu0
  %1022 = vdwg.mxu0
  %v1024 = vrot.slane %v1020, 1
  %v1026 = vadd.f32 %v1020, %v1024
  %v1027 = vmul.f32 %v1026, 0.00390625
  %v1028 = vmul.f32 %v1027, %v1027
  %v1030 = vrot.slane %v1028, 6
  %v1032 = vsub.f32 %v1027, %v1030
  %v1033 = vmax.f32 %v1032, 0.0
  %v1034 = vadd.f32 %v1033, 1e-08
  %v1035 = vrsqrt.pop %v1034
  %v1036 = vpack.c.bf16 %v1027, %v1027
  %v1037 = vunpack.c.l.bf16 %v1036
  %v1038 = vpack.c.bf16 %v1035, %v1035
  %v1039 = vunpack.c.l.bf16 %v1038
  %v1040 = vsub.f32 %v1027, %v1037
  %v1041 = vsub.f32 %v1035, %v1039
  %v1042 = vlaneseq
  %v1043 = vshrl.u32 %v1042, 7
  %v1044 = vsub.s32 2, %v1043
  %v1045 = vrot.slane %v1039, %v1044
  %v1046 = vlaneseq
  %v1047 = vshrl.u32 %v1046, 7
  %v1048 = vsub.s32 2, %v1047
  %v1049 = vrot.slane %v1041, %v1048
  %v1050 = vsel %vm870, %v1045, %v1049
  %v1051 = vlaneseq
  %v1052 = vshrl.u32 %v1051, 7
  %v1053 = vsub.s32 0, %v1052
  %v1054 = vrot.slane %v1040, %v1053
  %v1055 = vsel %vm869, %v1054, %v1050
  %v1056 = vlaneseq
  %v1057 = vshrl.u32 %v1056, 7
  %v1058 = vsub.s32 0, %v1057
  %v1059 = vrot.slane %v1037, %v1058
  %v1060 = vsel %vm868, %v1059, %v1055
  %vm1061 = vcmask 261120
  %v1063 = vsel %vm1061, %v1060, 0
  %1065 = vmatprep.subr.mxu0 0.0
  %1066 = vmatpush1.msra.mxu0 0.0
  %1067 = vmatprep.subr.mxu0 0.0
  %1068 = vmatpush1.msra.mxu0 0.0
  %1069 = vmatprep.subr.mxu0 0.0
  %1070 = vmatpush1.msra.mxu0 0.0
  %1071 = vmatprep.subr.mxu0 0.0
  %1072 = vmatpush1.msra.mxu0 0.0
  %1073 = vmatprep.subr.mxu0 0.0
  %1074 = vmatpush1.msra.mxu0 0.0
  %1075 = vmatprep.subr.mxu0 0.0
  %1076 = vmatpush1.msra.mxu0 0.0
  %1077 = vmatprep.subr.mxu0 0.0
  %1078 = vmatpush1.msra.mxu0 0.0
  %1079 = vmatprep.subr.mxu0 0.0
  %1080 = vmatpush1.msra.mxu0 0.0
  %1081 = vmatprep.subr.mxu0 0.0
  %1082 = vmatpush1.msra.mxu0 0.0
  %1083 = vmatprep.subr.mxu0 0.0
  %1084 = vmatpush1.msra.mxu0 0.0
  %1085 = vmatprep.subr.mxu0 0.0
  %1086 = vmatpush1.msra.mxu0 0.0
  %1087 = vmatprep.subr.mxu0 0.0
  %1088 = vmatpush1.msra.mxu0 0.0
  %1089 = vmatprep.subr.mxu0 %v148
  %1090 = vmatpush1.msra.mxu0 %v147
  %1091 = vmatprep.subr.mxu0 %v144
  %1092 = vmatpush1.msra.mxu0 %v143
  %1093 = vmatprep.subr.mxu0 %v140
  %1094 = vmatpush1.msra.mxu0 %v139
  %1095 = vmatprep.subr.mxu0 %v136
  %1096 = vmatpush1.msra.mxu0 %v135
  %1097 = vmatprep.subr.mxu0 0.0
  %1098 = vmatpush2.msra.mxu0 0.0
  %1099 = vmatprep.subr.mxu0 0.0
  %1100 = vmatpush2.msra.mxu0 0.0
  %1101 = vmatprep.subr.mxu0 0.0
  %1102 = vmatpush2.msra.mxu0 0.0
  %1103 = vmatprep.subr.mxu0 0.0
  %1104 = vmatpush2.msra.mxu0 0.0
  %1105 = vmatprep.subr.mxu0 0.0
  %1106 = vmatpush2.msra.mxu0 0.0
  %1107 = vmatprep.subr.mxu0 0.0
  %1108 = vmatpush2.msra.mxu0 0.0
  %1109 = vmatprep.subr.mxu0 0.0
  %1110 = vmatpush2.msra.mxu0 0.0
  %1111 = vmatprep.subr.mxu0 0.0
  %1112 = vmatpush2.msra.mxu0 0.0
  %1113 = vmatprep.subr.mxu0 0.0
  %1114 = vmatpush2.msra.mxu0 0.0
  %1115 = vmatprep.subr.mxu0 0.0
  %1116 = vmatpush2.msra.mxu0 0.0
  %1117 = vmatprep.subr.mxu0 0.0
  %1118 = vmatpush2.msra.mxu0 0.0
  %1119 = vmatprep.subr.mxu0 0.0
  %1120 = vmatpush2.msra.mxu0 0.0
  %1121 = vmatprep.subr.mxu0 0.0
  %1122 = vmatpush2.msra.mxu0 0.0
  %1123 = vmatprep.subr.mxu0 0.0
  %1124 = vmatpush2.msra.mxu0 0.0
  %1125 = vmatprep.subr.mxu0 0.0
  %1126 = vmatpush2.msra.mxu0 0.0
  %1127 = vmatprep.subr.mxu0 0.0
  %1128 = vmatpush2.msra.mxu0 0.0
  %1129 = vmatprep.mubr.f32.mxu0 0.0
  %1130 = vmatmul.mubr.f32.gmra.mxu0 %v1063
  %v1131 = vpop.f32.mrf.mxu0
  %v1132 = vadd.f32 0.0, %v1131
  %v1133 = vpop.f32.mrf.mxu0
  %v1134 = vadd.f32 0.0, %v1133
  %1135 = vdwg.mxu0
  %1136 = vmatprep.subr.mxu0 0.0
  %1137 = vmatpush1.msra.mxu0 0.0
  %1138 = vmatprep.subr.mxu0 0.0
  %1139 = vmatpush1.msra.mxu0 0.0
  %1140 = vmatprep.subr.mxu0 0.0
  %1141 = vmatpush1.msra.mxu0 0.0
  %1142 = vmatprep.subr.mxu0 0.0
  %1143 = vmatpush1.msra.mxu0 0.0
  %1144 = vmatprep.subr.mxu0 0.0
  %1145 = vmatpush1.msra.mxu0 0.0
  %1146 = vmatprep.subr.mxu0 0.0
  %1147 = vmatpush1.msra.mxu0 0.0
  %1148 = vmatprep.subr.mxu0 0.0
  %1149 = vmatpush1.msra.mxu0 0.0
  %1150 = vmatprep.subr.mxu0 0.0
  %1151 = vmatpush1.msra.mxu0 0.0
  %1152 = vmatprep.subr.mxu0 0.0
  %1153 = vmatpush1.msra.mxu0 0.0
  %1154 = vmatprep.subr.mxu0 0.0
  %1155 = vmatpush1.msra.mxu0 0.0
  %1156 = vmatprep.subr.mxu0 0.0
  %1157 = vmatpush1.msra.mxu0 0.0
  %1158 = vmatprep.subr.mxu0 0.0
  %1159 = vmatpush1.msra.mxu0 0.0
  %1160 = vmatprep.subr.mxu0 %v150
  %1161 = vmatpush1.msra.mxu0 %v149
  %1162 = vmatprep.subr.mxu0 %v146
  %1163 = vmatpush1.msra.mxu0 %v145
  %1164 = vmatprep.subr.mxu0 %v142
  %1165 = vmatpush1.msra.mxu0 %v141
  %1166 = vmatprep.subr.mxu0 %v138
  %1167 = vmatpush1.msra.mxu0 %v137
  %1168 = vmatprep.subr.mxu0 0.0
  %1169 = vmatpush2.msra.mxu0 0.0
  %1170 = vmatprep.subr.mxu0 0.0
  %1171 = vmatpush2.msra.mxu0 0.0
  %1172 = vmatprep.subr.mxu0 0.0
  %1173 = vmatpush2.msra.mxu0 0.0
  %1174 = vmatprep.subr.mxu0 0.0
  %1175 = vmatpush2.msra.mxu0 0.0
  %1176 = vmatprep.subr.mxu0 0.0
  %1177 = vmatpush2.msra.mxu0 0.0
  %1178 = vmatprep.subr.mxu0 0.0
  %1179 = vmatpush2.msra.mxu0 0.0
  %1180 = vmatprep.subr.mxu0 0.0
  %1181 = vmatpush2.msra.mxu0 0.0
  %1182 = vmatprep.subr.mxu0 0.0
  %1183 = vmatpush2.msra.mxu0 0.0
  %1184 = vmatprep.subr.mxu0 0.0
  %1185 = vmatpush2.msra.mxu0 0.0
  %1186 = vmatprep.subr.mxu0 0.0
  %1187 = vmatpush2.msra.mxu0 0.0
  %1188 = vmatprep.subr.mxu0 0.0
  %1189 = vmatpush2.msra.mxu0 0.0
  %1190 = vmatprep.subr.mxu0 0.0
  %1191 = vmatpush2.msra.mxu0 0.0
  %1192 = vmatprep.subr.mxu0 0.0
  %1193 = vmatpush2.msra.mxu0 0.0
  %1194 = vmatprep.subr.mxu0 0.0
  %1195 = vmatpush2.msra.mxu0 0.0
  %1196 = vmatprep.subr.mxu0 0.0
  %1197 = vmatpush2.msra.mxu0 0.0
  %1198 = vmatprep.subr.mxu0 0.0
  %1199 = vmatpush2.msra.mxu0 0.0
  %1200 = vmatprep.mubr.f32.mxu0 0.0
  %1201 = vmatmul.mubr.f32.gmra.mxu0 %v1063
  %v1202 = vpop.f32.mrf.mxu0
  %v1203 = vadd.f32 0.0, %v1202
  %v1204 = vpop.f32.mrf.mxu0
  %v1205 = vadd.f32 0.0, %v1204
  %1206 = vdwg.mxu0
  %v1211 = vrot.slane %v1132, 1
  %v1212 = vrot.slane %v1134, 1
  %v1213 = vrot.slane %v1203, 1
  %v1214 = vrot.slane %v1205, 1
  %v1219 = vadd.f32 %v1132, %v1211
  %v1220 = vadd.f32 %v1134, %v1212
  %v1221 = vadd.f32 %v1203, %v1213
  %v1222 = vadd.f32 %v1205, %v1214
  %v1223 = vlaneseq
  %v1224 = vshrl.u32 %v1223, 7
  %v1225 = vsub.s32 0, %v1224
  %v1226 = vrot.slane %v1219, %v1225
  %v1227 = vlaneseq
  %v1228 = vshrl.u32 %v1227, 7
  %v1229 = vsub.s32 0, %v1228
  %v1230 = vrot.slane %v1220, %v1229
  %v1231 = vlaneseq
  %v1232 = vshrl.u32 %v1231, 7
  %v1233 = vsub.s32 0, %v1232
  %v1234 = vrot.slane %v1221, %v1233
  %v1235 = vlaneseq
  %v1236 = vshrl.u32 %v1235, 7
  %v1237 = vsub.s32 0, %v1236
  %v1238 = vrot.slane %v1222, %v1237
  %v1239 = vsub.f32 %v772, %v1226
  %v1240 = vsub.f32 %v773, %v1230
  %v1241 = vsub.f32 %v774, %v1234
  %v1242 = vsub.f32 %v775, %v1238
  %v1243 = vsub.f32 %v776, %v1226
  %v1244 = vsub.f32 %v777, %v1230
  %v1245 = vsub.f32 %v778, %v1234
  %v1246 = vsub.f32 %v779, %v1238
  %v1247 = vlaneseq
  %v1248 = vshrl.u32 %v1247, 7
  %v1249 = vsub.s32 2, %v1248
  %v1250 = vrot.slane %v1219, %v1249
  %v1251 = vlaneseq
  %v1252 = vshrl.u32 %v1251, 7
  %v1253 = vsub.s32 2, %v1252
  %v1254 = vrot.slane %v1220, %v1253
  %v1255 = vlaneseq
  %v1256 = vshrl.u32 %v1255, 7
  %v1257 = vsub.s32 2, %v1256
  %v1258 = vrot.slane %v1221, %v1257
  %v1259 = vlaneseq
  %v1260 = vshrl.u32 %v1259, 7
  %v1261 = vsub.s32 2, %v1260
  %v1262 = vrot.slane %v1222, %v1261
  %v1263 = vmul.f32 %v1239, %v1250
  %v1264 = vmul.f32 %v1240, %v1254
  %v1265 = vmul.f32 %v1241, %v1258
  %v1266 = vmul.f32 %v1242, %v1262
  %v1267 = vmul.f32 %v1243, %v1250
  %v1268 = vmul.f32 %v1244, %v1254
  %v1269 = vmul.f32 %v1245, %v1258
  %v1270 = vmul.f32 %v1246, %v1262
  %v1271 = vld [vmem:[%s1] sm:$0xff]
  %v1272 = vld [vmem:[%s1 + $0x8] sm:$0xff]
  %v1273 = vld [vmem:[%s1 + $0x10] sm:$0xff]
  %v1274 = vld [vmem:[%s1 + $0x18] sm:$0xff]
  %v1275 = vld [vmem:[%s2] sm:$0xff]
  %v1276 = vld [vmem:[%s2 + $0x8] sm:$0xff]
  %v1277 = vld [vmem:[%s2 + $0x10] sm:$0xff]
  %v1278 = vld [vmem:[%s2 + $0x18] sm:$0xff]
  %1280 = vset.pattern.permute.xlu0 0
  %1281 = vperm.xlu0 %1280, %v1275
  %v1282 = vpop.permute.xlu0 %1281
  %1285 = vset.pattern.permute.xlu0 0
  %1286 = vperm.xlu0 %1285, %v1276
  %v1287 = vpop.permute.xlu0 %1286
  %1290 = vset.pattern.permute.xlu0 0
  %1291 = vperm.xlu0 %1290, %v1277
  %v1292 = vpop.permute.xlu0 %1291
  %1295 = vset.pattern.permute.xlu0 0
  %1296 = vperm.xlu0 %1295, %v1278
  %v1297 = vpop.permute.xlu0 %1296
  %vm1299 = vcmask 130048
  %v1301 = vsel %vm1299, %v1271, 0
  %v1304 = vsel %vm1299, %v1272, 0
  %v1307 = vsel %vm1299, %v1273, 0
  %v1310 = vsel %vm1299, %v1274, 0
  %1312 = vmatprep.subr.mxu0 0.0
  %1313 = vmatpush1.msra.mxu0 0.0
  %1314 = vmatprep.subr.mxu0 0.0
  %1315 = vmatpush1.msra.mxu0 0.0
  %1316 = vmatprep.subr.mxu0 0.0
  %1317 = vmatpush1.msra.mxu0 0.0
  %1318 = vmatprep.subr.mxu0 0.0
  %1319 = vmatpush1.msra.mxu0 0.0
  %1320 = vmatprep.subr.mxu0 0.0
  %1321 = vmatpush1.msra.mxu0 0.0
  %1322 = vmatprep.subr.mxu0 0.0
  %1323 = vmatpush1.msra.mxu0 0.0
  %1324 = vmatprep.subr.mxu0 0.0
  %1325 = vmatpush1.msra.mxu0 0.0
  %1326 = vmatprep.subr.mxu0 0.0
  %1327 = vmatpush1.msra.mxu0 0.0
  %1328 = vmatprep.subr.mxu0 0.0
  %1329 = vmatpush1.msra.mxu0 0.0
  %1330 = vmatprep.subr.mxu0 0.0
  %1331 = vmatpush1.msra.mxu0 0.0
  %1332 = vmatprep.subr.mxu0 0.0
  %1333 = vmatpush1.msra.mxu0 0.0
  %1334 = vmatprep.subr.mxu0 0.0
  %1335 = vmatpush1.msra.mxu0 0.0
  %1336 = vmatprep.subr.mxu0 0.0
  %1337 = vmatpush1.msra.mxu0 0.0
  %1338 = vmatprep.subr.mxu0 0.0
  %1339 = vmatpush1.msra.mxu0 0.0
  %1340 = vmatprep.subr.mxu0 %v1268
  %1341 = vmatpush1.msra.mxu0 %v1267
  %1342 = vmatprep.subr.mxu0 %v1264
  %1343 = vmatpush1.msra.mxu0 %v1263
  %1344 = vmatprep.subr.mxu0 0.0
  %1345 = vmatpush2.msra.mxu0 0.0
  %1346 = vmatprep.subr.mxu0 0.0
  %1347 = vmatpush2.msra.mxu0 0.0
  %1348 = vmatprep.subr.mxu0 0.0
  %1349 = vmatpush2.msra.mxu0 0.0
  %1350 = vmatprep.subr.mxu0 0.0
  %1351 = vmatpush2.msra.mxu0 0.0
  %1352 = vmatprep.subr.mxu0 0.0
  %1353 = vmatpush2.msra.mxu0 0.0
  %1354 = vmatprep.subr.mxu0 0.0
  %1355 = vmatpush2.msra.mxu0 0.0
  %1356 = vmatprep.subr.mxu0 0.0
  %1357 = vmatpush2.msra.mxu0 0.0
  %1358 = vmatprep.subr.mxu0 0.0
  %1359 = vmatpush2.msra.mxu0 0.0
  %1360 = vmatprep.subr.mxu0 0.0
  %1361 = vmatpush2.msra.mxu0 0.0
  %1362 = vmatprep.subr.mxu0 0.0
  %1363 = vmatpush2.msra.mxu0 0.0
  %1364 = vmatprep.subr.mxu0 0.0
  %1365 = vmatpush2.msra.mxu0 0.0
  %1366 = vmatprep.subr.mxu0 0.0
  %1367 = vmatpush2.msra.mxu0 0.0
  %1368 = vmatprep.subr.mxu0 0.0
  %1369 = vmatpush2.msra.mxu0 0.0
  %1370 = vmatprep.subr.mxu0 0.0
  %1371 = vmatpush2.msra.mxu0 0.0
  %1372 = vmatprep.subr.mxu0 0.0
  %1373 = vmatpush2.msra.mxu0 0.0
  %1374 = vmatprep.subr.mxu0 0.0
  %1375 = vmatpush2.msra.mxu0 0.0
  %1376 = vmatprep.mubr.f32.mxu0 0.0
  %1377 = vmatmul.mubr.f32.gmra.mxu0 %v1301
  %v1378 = vpop.f32.mrf.mxu0
  %v1379 = vadd.f32 %v1282, %v1378
  %v1380 = vpop.f32.mrf.mxu0
  %v1381 = vadd.f32 %v1282, %v1380
  %1382 = vmatprep.mubr.f32.mxu0 0.0
  %1383 = vmatmul.mubr.f32.gmra.mxu0 %v1304
  %v1384 = vpop.f32.mrf.mxu0
  %v1385 = vadd.f32 %v1287, %v1384
  %v1386 = vpop.f32.mrf.mxu0
  %v1387 = vadd.f32 %v1287, %v1386
  %1388 = vmatprep.mubr.f32.mxu0 0.0
  %1389 = vmatmul.mubr.f32.gmra.mxu0 %v1307
  %v1390 = vpop.f32.mrf.mxu0
  %v1391 = vadd.f32 %v1292, %v1390
  %v1392 = vpop.f32.mrf.mxu0
  %v1393 = vadd.f32 %v1292, %v1392
  %1394 = vmatprep.mubr.f32.mxu0 0.0
  %1395 = vmatmul.mubr.f32.gmra.mxu0 %v1310
  %v1396 = vpop.f32.mrf.mxu0
  %v1397 = vadd.f32 %v1297, %v1396
  %v1398 = vpop.f32.mrf.mxu0
  %v1399 = vadd.f32 %v1297, %v1398
  %1400 = vdwg.mxu0
  %1401 = vmatprep.subr.mxu0 0.0
  %1402 = vmatpush1.msra.mxu0 0.0
  %1403 = vmatprep.subr.mxu0 0.0
  %1404 = vmatpush1.msra.mxu0 0.0
  %1405 = vmatprep.subr.mxu0 0.0
  %1406 = vmatpush1.msra.mxu0 0.0
  %1407 = vmatprep.subr.mxu0 0.0
  %1408 = vmatpush1.msra.mxu0 0.0
  %1409 = vmatprep.subr.mxu0 0.0
  %1410 = vmatpush1.msra.mxu0 0.0
  %1411 = vmatprep.subr.mxu0 0.0
  %1412 = vmatpush1.msra.mxu0 0.0
  %1413 = vmatprep.subr.mxu0 0.0
  %1414 = vmatpush1.msra.mxu0 0.0
  %1415 = vmatprep.subr.mxu0 0.0
  %1416 = vmatpush1.msra.mxu0 0.0
  %1417 = vmatprep.subr.mxu0 0.0
  %1418 = vmatpush1.msra.mxu0 0.0
  %1419 = vmatprep.subr.mxu0 0.0
  %1420 = vmatpush1.msra.mxu0 0.0
  %1421 = vmatprep.subr.mxu0 0.0
  %1422 = vmatpush1.msra.mxu0 0.0
  %1423 = vmatprep.subr.mxu0 0.0
  %1424 = vmatpush1.msra.mxu0 0.0
  %1425 = vmatprep.subr.mxu0 0.0
  %1426 = vmatpush1.msra.mxu0 0.0
  %1427 = vmatprep.subr.mxu0 0.0
  %1428 = vmatpush1.msra.mxu0 0.0
  %1429 = vmatprep.subr.mxu0 %v1270
  %1430 = vmatpush1.msra.mxu0 %v1269
  %1431 = vmatprep.subr.mxu0 %v1266
  %1432 = vmatpush1.msra.mxu0 %v1265
  %1433 = vmatprep.subr.mxu0 0.0
  %1434 = vmatpush2.msra.mxu0 0.0
  %1435 = vmatprep.subr.mxu0 0.0
  %1436 = vmatpush2.msra.mxu0 0.0
  %1437 = vmatprep.subr.mxu0 0.0
  %1438 = vmatpush2.msra.mxu0 0.0
  %1439 = vmatprep.subr.mxu0 0.0
  %1440 = vmatpush2.msra.mxu0 0.0
  %1441 = vmatprep.subr.mxu0 0.0
  %1442 = vmatpush2.msra.mxu0 0.0
  %1443 = vmatprep.subr.mxu0 0.0
  %1444 = vmatpush2.msra.mxu0 0.0
  %1445 = vmatprep.subr.mxu0 0.0
  %1446 = vmatpush2.msra.mxu0 0.0
  %1447 = vmatprep.subr.mxu0 0.0
  %1448 = vmatpush2.msra.mxu0 0.0
  %1449 = vmatprep.subr.mxu0 0.0
  %1450 = vmatpush2.msra.mxu0 0.0
  %1451 = vmatprep.subr.mxu0 0.0
  %1452 = vmatpush2.msra.mxu0 0.0
  %1453 = vmatprep.subr.mxu0 0.0
  %1454 = vmatpush2.msra.mxu0 0.0
  %1455 = vmatprep.subr.mxu0 0.0
  %1456 = vmatpush2.msra.mxu0 0.0
  %1457 = vmatprep.subr.mxu0 0.0
  %1458 = vmatpush2.msra.mxu0 0.0
  %1459 = vmatprep.subr.mxu0 0.0
  %1460 = vmatpush2.msra.mxu0 0.0
  %1461 = vmatprep.subr.mxu0 0.0
  %1462 = vmatpush2.msra.mxu0 0.0
  %1463 = vmatprep.subr.mxu0 0.0
  %1464 = vmatpush2.msra.mxu0 0.0
  %1465 = vmatprep.mubr.f32.mxu0 0.0
  %1466 = vmatmul.mubr.f32.gmra.mxu0 %v1301
  %v1467 = vpop.f32.mrf.mxu0
  %v1468 = vadd.f32 %v1282, %v1467
  %v1469 = vpop.f32.mrf.mxu0
  %v1470 = vadd.f32 %v1282, %v1469
  %1471 = vmatprep.mubr.f32.mxu0 0.0
  %1472 = vmatmul.mubr.f32.gmra.mxu0 %v1304
  %v1473 = vpop.f32.mrf.mxu0
  %v1474 = vadd.f32 %v1287, %v1473
  %v1475 = vpop.f32.mrf.mxu0
  %v1476 = vadd.f32 %v1287, %v1475
  %1477 = vmatprep.mubr.f32.mxu0 0.0
  %1478 = vmatmul.mubr.f32.gmra.mxu0 %v1307
  %v1479 = vpop.f32.mrf.mxu0
  %v1480 = vadd.f32 %v1292, %v1479
  %v1481 = vpop.f32.mrf.mxu0
  %v1482 = vadd.f32 %v1292, %v1481
  %1483 = vmatprep.mubr.f32.mxu0 0.0
  %1484 = vmatmul.mubr.f32.gmra.mxu0 %v1310
  %v1485 = vpop.f32.mrf.mxu0
  %v1486 = vadd.f32 %v1297, %v1485
  %v1487 = vpop.f32.mrf.mxu0
  %v1488 = vadd.f32 %v1297, %v1487
  %1489 = vdwg.mxu0
  %v1490 = vmax.f32 %v1379, 0.0
  %v1491 = vmax.f32 %v1381, 0.0
  %v1492 = vmax.f32 %v1468, 0.0
  %v1493 = vmax.f32 %v1470, 0.0
  %v1494 = vmax.f32 %v1385, 0.0
  %v1495 = vmax.f32 %v1387, 0.0
  %v1496 = vmax.f32 %v1474, 0.0
  %v1497 = vmax.f32 %v1476, 0.0
  %v1498 = vmax.f32 %v1391, 0.0
  %v1499 = vmax.f32 %v1393, 0.0
  %v1500 = vmax.f32 %v1480, 0.0
  %v1501 = vmax.f32 %v1482, 0.0
  %v1502 = vmax.f32 %v1397, 0.0
  %v1503 = vmax.f32 %v1399, 0.0
  %v1504 = vmax.f32 %v1486, 0.0
  %v1505 = vmax.f32 %v1488, 0.0
  %v1506 = vadd.f32 %v1490, %v1494
  %v1507 = vadd.f32 %v1506, %v1498
  %v1508 = vadd.f32 %v1507, %v1502
  %v1509 = vrot.slane %v1508, 4
  %v1510 = vadd.f32 %v1508, %v1509
  %v1511 = vrot.slane %v1510, 2
  %v1512 = vadd.f32 %v1510, %v1511
  %v1513 = vrot.slane %v1512, 1
  %v1514 = vadd.f32 %v1512, %v1513
  %v1515 = vadd.f32 %v1491, %v1495
  %v1516 = vadd.f32 %v1515, %v1499
  %v1517 = vadd.f32 %v1516, %v1503
  %v1518 = vrot.slane %v1517, 4
  %v1519 = vadd.f32 %v1517, %v1518
  %v1520 = vrot.slane %v1519, 2
  %v1521 = vadd.f32 %v1519, %v1520
  %v1522 = vrot.slane %v1521, 1
  %v1523 = vadd.f32 %v1521, %v1522
  %v1524 = vadd.f32 %v1492, %v1496
  %v1525 = vadd.f32 %v1524, %v1500
  %v1526 = vadd.f32 %v1525, %v1504
  %v1527 = vrot.slane %v1526, 4
  %v1528 = vadd.f32 %v1526, %v1527
  %v1529 = vrot.slane %v1528, 2
  %v1530 = vadd.f32 %v1528, %v1529
  %v1531 = vrot.slane %v1530, 1
  %v1532 = vadd.f32 %v1530, %v1531
  %v1533 = vadd.f32 %v1493, %v1497
  %v1534 = vadd.f32 %v1533, %v1501
  %v1535 = vadd.f32 %v1534, %v1505
  %v1536 = vrot.slane %v1535, 4
  %v1537 = vadd.f32 %v1535, %v1536
  %v1538 = vrot.slane %v1537, 2
  %v1539 = vadd.f32 %v1537, %v1538
  %v1540 = vrot.slane %v1539, 1
  %v1541 = vadd.f32 %v1539, %v1540
  %v1542 = vmul.f32 %v1490, %v1490
  %v1543 = vmul.f32 %v1491, %v1491
  %v1544 = vmul.f32 %v1492, %v1492
  %v1545 = vmul.f32 %v1493, %v1493
  %v1546 = vmul.f32 %v1494, %v1494
  %v1547 = vmul.f32 %v1495, %v1495
  %v1548 = vmul.f32 %v1496, %v1496
  %v1549 = vmul.f32 %v1497, %v1497
  %v1550 = vmul.f32 %v1498, %v1498
  %v1551 = vmul.f32 %v1499, %v1499
  %v1552 = vmul.f32 %v1500, %v1500
  %v1553 = vmul.f32 %v1501, %v1501
  %v1554 = vmul.f32 %v1502, %v1502
  %v1555 = vmul.f32 %v1503, %v1503
  %v1556 = vmul.f32 %v1504, %v1504
  %v1557 = vmul.f32 %v1505, %v1505
  %v1558 = vadd.f32 %v1542, %v1546
  %v1559 = vadd.f32 %v1558, %v1550
  %v1560 = vadd.f32 %v1559, %v1554
  %v1561 = vrot.slane %v1560, 4
  %v1562 = vadd.f32 %v1560, %v1561
  %v1563 = vrot.slane %v1562, 2
  %v1564 = vadd.f32 %v1562, %v1563
  %v1565 = vrot.slane %v1564, 1
  %v1566 = vadd.f32 %v1564, %v1565
  %v1567 = vadd.f32 %v1543, %v1547
  %v1568 = vadd.f32 %v1567, %v1551
  %v1569 = vadd.f32 %v1568, %v1555
  %v1570 = vrot.slane %v1569, 4
  %v1571 = vadd.f32 %v1569, %v1570
  %v1572 = vrot.slane %v1571, 2
  %v1573 = vadd.f32 %v1571, %v1572
  %v1574 = vrot.slane %v1573, 1
  %v1575 = vadd.f32 %v1573, %v1574
  %v1576 = vadd.f32 %v1544, %v1548
  %v1577 = vadd.f32 %v1576, %v1552
  %v1578 = vadd.f32 %v1577, %v1556
  %v1579 = vrot.slane %v1578, 4
  %v1580 = vadd.f32 %v1578, %v1579
  %v1581 = vrot.slane %v1580, 2
  %v1582 = vadd.f32 %v1580, %v1581
  %v1583 = vrot.slane %v1582, 1
  %v1584 = vadd.f32 %v1582, %v1583
  %v1585 = vadd.f32 %v1545, %v1549
  %v1586 = vadd.f32 %v1585, %v1553
  %v1587 = vadd.f32 %v1586, %v1557
  %v1588 = vrot.slane %v1587, 4
  %v1589 = vadd.f32 %v1587, %v1588
  %v1590 = vrot.slane %v1589, 2
  %v1591 = vadd.f32 %v1589, %v1590
  %v1592 = vrot.slane %v1591, 1
  %v1593 = vadd.f32 %v1591, %v1592
  %v1594 = vpack.c.bf16 %v1514, %v1514
  %v1595 = vpack.c.bf16 %v1523, %v1523
  %v1596 = vpack.c.bf16 %v1532, %v1532
  %v1597 = vpack.c.bf16 %v1541, %v1541
  %v1598 = vunpack.c.l.bf16 %v1594
  %v1599 = vunpack.c.l.bf16 %v1595
  %v1600 = vunpack.c.l.bf16 %v1596
  %v1601 = vunpack.c.l.bf16 %v1597
  %v1602 = vpack.c.bf16 %v1566, %v1566
  %v1603 = vpack.c.bf16 %v1575, %v1575
  %v1604 = vpack.c.bf16 %v1584, %v1584
  %v1605 = vpack.c.bf16 %v1593, %v1593
  %v1606 = vunpack.c.l.bf16 %v1602
  %v1607 = vunpack.c.l.bf16 %v1603
  %v1608 = vunpack.c.l.bf16 %v1604
  %v1609 = vunpack.c.l.bf16 %v1605
  %v1610 = vsub.f32 %v1514, %v1598
  %v1611 = vsub.f32 %v1523, %v1599
  %v1612 = vsub.f32 %v1532, %v1600
  %v1613 = vsub.f32 %v1541, %v1601
  %v1614 = vsub.f32 %v1566, %v1606
  %v1615 = vsub.f32 %v1575, %v1607
  %v1616 = vsub.f32 %v1584, %v1608
  %v1617 = vsub.f32 %v1593, %v1609
  %v1618 = vsel %vm870, %v1606, %v1614
  %v1619 = vsel %vm870, %v1607, %v1615
  %v1620 = vsel %vm870, %v1608, %v1616
  %v1621 = vsel %vm870, %v1609, %v1617
  %v1622 = vsel %vm869, %v1610, %v1618
  %v1623 = vsel %vm869, %v1611, %v1619
  %v1624 = vsel %vm869, %v1612, %v1620
  %v1625 = vsel %vm869, %v1613, %v1621
  %v1626 = vsel %vm868, %v1598, %v1622
  %v1627 = vsel %vm868, %v1599, %v1623
  %v1628 = vsel %vm868, %v1600, %v1624
  %v1629 = vsel %vm868, %v1601, %v1625
  %1630 = vmatprep.subr.mxu0 0.0
  %1631 = vmatpush1.msra.mxu0 %v723
  %1632 = vmatprep.subr.mxu0 0.0
  %1633 = vmatpush1.msra.mxu0 %v722
  %1634 = vmatprep.subr.mxu0 0.0
  %1635 = vmatpush1.msra.mxu0 %v721
  %1636 = vmatprep.subr.mxu0 0.0
  %1637 = vmatpush1.msra.mxu0 %v720
  %1638 = vmatprep.subr.mxu0 0.0
  %1639 = vmatpush1.msra.mxu0 %v719
  %1640 = vmatprep.subr.mxu0 0.0
  %1641 = vmatpush1.msra.mxu0 %v718
  %1642 = vmatprep.subr.mxu0 0.0
  %1643 = vmatpush1.msra.mxu0 %v717
  %1644 = vmatprep.subr.mxu0 0.0
  %1645 = vmatpush1.msra.mxu0 %v716
  %1646 = vmatprep.subr.mxu0 0.0
  %1647 = vmatpush1.msra.mxu0 %v715
  %1648 = vmatprep.subr.mxu0 0.0
  %1649 = vmatpush1.msra.mxu0 %v714
  %1650 = vmatprep.subr.mxu0 0.0
  %1651 = vmatpush1.msra.mxu0 %v713
  %1652 = vmatprep.subr.mxu0 0.0
  %1653 = vmatpush1.msra.mxu0 %v712
  %1654 = vmatprep.subr.mxu0 0.0
  %1655 = vmatpush1.msra.mxu0 %v711
  %1656 = vmatprep.subr.mxu0 0.0
  %1657 = vmatpush1.msra.mxu0 %v710
  %1658 = vmatprep.subr.mxu0 0.0
  %1659 = vmatpush1.msra.mxu0 %v709
  %1660 = vmatprep.subr.mxu0 0.0
  %1661 = vmatpush1.msra.mxu0 %v708
  %1662 = vmatprep.subr.mxu0 0.0
  %1663 = vmatpush2.msra.mxu0 %v739
  %1664 = vmatprep.subr.mxu0 0.0
  %1665 = vmatpush2.msra.mxu0 %v738
  %1666 = vmatprep.subr.mxu0 0.0
  %1667 = vmatpush2.msra.mxu0 %v737
  %1668 = vmatprep.subr.mxu0 0.0
  %1669 = vmatpush2.msra.mxu0 %v736
  %1670 = vmatprep.subr.mxu0 0.0
  %1671 = vmatpush2.msra.mxu0 %v735
  %1672 = vmatprep.subr.mxu0 0.0
  %1673 = vmatpush2.msra.mxu0 %v734
  %1674 = vmatprep.subr.mxu0 0.0
  %1675 = vmatpush2.msra.mxu0 %v733
  %1676 = vmatprep.subr.mxu0 0.0
  %1677 = vmatpush2.msra.mxu0 %v732
  %1678 = vmatprep.subr.mxu0 0.0
  %1679 = vmatpush2.msra.mxu0 %v731
  %1680 = vmatprep.subr.mxu0 0.0
  %1681 = vmatpush2.msra.mxu0 %v730
  %1682 = vmatprep.subr.mxu0 0.0
  %1683 = vmatpush2.msra.mxu0 %v729
  %1684 = vmatprep.subr.mxu0 0.0
  %1685 = vmatpush2.msra.mxu0 %v728
  %1686 = vmatprep.subr.mxu0 0.0
  %1687 = vmatpush2.msra.mxu0 %v727
  %1688 = vmatprep.subr.mxu0 0.0
  %1689 = vmatpush2.msra.mxu0 %v726
  %1690 = vmatprep.subr.mxu0 0.0
  %1691 = vmatpush2.msra.mxu0 %v725
  %1692 = vmatprep.subr.mxu0 0.0
  %1693 = vmatpush2.msra.mxu0 %v724
  %1694 = vmatprep.mubr.f32.mxu0 %v1627
  %1695 = vmatmul.mubr.f32.gmra.mxu0 %v1626
  %v1696 = vpop.f32.mrf.mxu0
  %v1697 = vadd.f32 0.0, %v1696
  %v1698 = vpop.f32.mrf.mxu0
  %1699 = vdwg.mxu0
  %1700 = vmatprep.subr.mxu0 0.0
  %1701 = vmatpush1.msra.mxu0 %v755
  %1702 = vmatprep.subr.mxu0 0.0
  %1703 = vmatpush1.msra.mxu0 %v754
  %1704 = vmatprep.subr.mxu0 0.0
  %1705 = vmatpush1.msra.mxu0 %v753
  %1706 = vmatprep.subr.mxu0 0.0
  %1707 = vmatpush1.msra.mxu0 %v752
  %1708 = vmatprep.subr.mxu0 0.0
  %1709 = vmatpush1.msra.mxu0 %v751
  %1710 = vmatprep.subr.mxu0 0.0
  %1711 = vmatpush1.msra.mxu0 %v750
  %1712 = vmatprep.subr.mxu0 0.0
  %1713 = vmatpush1.msra.mxu0 %v749
  %1714 = vmatprep.subr.mxu0 0.0
  %1715 = vmatpush1.msra.mxu0 %v748
  %1716 = vmatprep.subr.mxu0 0.0
  %1717 = vmatpush1.msra.mxu0 %v747
  %1718 = vmatprep.subr.mxu0 0.0
  %1719 = vmatpush1.msra.mxu0 %v746
  %1720 = vmatprep.subr.mxu0 0.0
  %1721 = vmatpush1.msra.mxu0 %v745
  %1722 = vmatprep.subr.mxu0 0.0
  %1723 = vmatpush1.msra.mxu0 %v744
  %1724 = vmatprep.subr.mxu0 0.0
  %1725 = vmatpush1.msra.mxu0 %v743
  %1726 = vmatprep.subr.mxu0 0.0
  %1727 = vmatpush1.msra.mxu0 %v742
  %1728 = vmatprep.subr.mxu0 0.0
  %1729 = vmatpush1.msra.mxu0 %v741
  %1730 = vmatprep.subr.mxu0 0.0
  %1731 = vmatpush1.msra.mxu0 %v740
  %1732 = vmatprep.subr.mxu0 0.0
  %1733 = vmatpush2.msra.mxu0 %v771
  %1734 = vmatprep.subr.mxu0 0.0
  %1735 = vmatpush2.msra.mxu0 %v770
  %1736 = vmatprep.subr.mxu0 0.0
  %1737 = vmatpush2.msra.mxu0 %v769
  %1738 = vmatprep.subr.mxu0 0.0
  %1739 = vmatpush2.msra.mxu0 %v768
  %1740 = vmatprep.subr.mxu0 0.0
  %1741 = vmatpush2.msra.mxu0 %v767
  %1742 = vmatprep.subr.mxu0 0.0
  %1743 = vmatpush2.msra.mxu0 %v766
  %1744 = vmatprep.subr.mxu0 0.0
  %1745 = vmatpush2.msra.mxu0 %v765
  %1746 = vmatprep.subr.mxu0 0.0
  %1747 = vmatpush2.msra.mxu0 %v764
  %1748 = vmatprep.subr.mxu0 0.0
  %1749 = vmatpush2.msra.mxu0 %v763
  %1750 = vmatprep.subr.mxu0 0.0
  %1751 = vmatpush2.msra.mxu0 %v762
  %1752 = vmatprep.subr.mxu0 0.0
  %1753 = vmatpush2.msra.mxu0 %v761
  %1754 = vmatprep.subr.mxu0 0.0
  %1755 = vmatpush2.msra.mxu0 %v760
  %1756 = vmatprep.subr.mxu0 0.0
  %1757 = vmatpush2.msra.mxu0 %v759
  %1758 = vmatprep.subr.mxu0 0.0
  %1759 = vmatpush2.msra.mxu0 %v758
  %1760 = vmatprep.subr.mxu0 0.0
  %1761 = vmatpush2.msra.mxu0 %v757
  %1762 = vmatprep.subr.mxu0 0.0
  %1763 = vmatpush2.msra.mxu0 %v756
  %1764 = vmatprep.mubr.f32.mxu0 %v1629
  %1765 = vmatmul.mubr.f32.gmra.mxu0 %v1628
  %v1766 = vpop.f32.mrf.mxu0
  %v1767 = vadd.f32 %v1697, %v1766
  %v1768 = vpop.f32.mrf.mxu0
  %1769 = vdwg.mxu0
  %v1771 = vrot.slane %v1767, 1
  %v1773 = vadd.f32 %v1767, %v1771
  %v1774 = vmul.f32 %v1773, 0.001953125
  %v1775 = vmul.f32 %v1774, %v1774
  %v1777 = vrot.slane %v1775, 6
  %v1779 = vsub.f32 %v1774, %v1777
  %v1780 = vmax.f32 %v1779, 0.0
  %v1781 = vadd.f32 %v1780, 1e-08
  %v1782 = vrsqrt.pop %v1781
  %v1783 = vpack.c.bf16 %v1774, %v1774
  %v1784 = vunpack.c.l.bf16 %v1783
  %v1785 = vpack.c.bf16 %v1782, %v1782
  %v1786 = vunpack.c.l.bf16 %v1785
  %v1787 = vsub.f32 %v1774, %v1784
  %v1788 = vsub.f32 %v1782, %v1786
  %v1789 = vlaneseq
  %v1790 = vshrl.u32 %v1789, 7
  %v1791 = vsub.s32 2, %v1790
  %v1792 = vrot.slane %v1786, %v1791
  %v1793 = vlaneseq
  %v1794 = vshrl.u32 %v1793, 7
  %v1795 = vsub.s32 2, %v1794
  %v1796 = vrot.slane %v1788, %v1795
  %v1797 = vsel %vm870, %v1792, %v1796
  %v1798 = vlaneseq
  %v1799 = vshrl.u32 %v1798, 7
  %v1800 = vsub.s32 0, %v1799
  %v1801 = vrot.slane %v1787, %v1800
  %v1802 = vsel %vm869, %v1801, %v1797
  %v1803 = vlaneseq
  %v1804 = vshrl.u32 %v1803, 7
  %v1805 = vsub.s32 0, %v1804
  %v1806 = vrot.slane %v1784, %v1805
  %v1807 = vsel %vm868, %v1806, %v1802
  %v1809 = vsel %vm1061, %v1807, 0
  %1811 = vmatprep.subr.mxu0 0.0
  %1812 = vmatpush1.msra.mxu0 0.0
  %1813 = vmatprep.subr.mxu0 0.0
  %1814 = vmatpush1.msra.mxu0 0.0
  %1815 = vmatprep.subr.mxu0 0.0
  %1816 = vmatpush1.msra.mxu0 0.0
  %1817 = vmatprep.subr.mxu0 0.0
  %1818 = vmatpush1.msra.mxu0 0.0
  %1819 = vmatprep.subr.mxu0 0.0
  %1820 = vmatpush1.msra.mxu0 0.0
  %1821 = vmatprep.subr.mxu0 0.0
  %1822 = vmatpush1.msra.mxu0 0.0
  %1823 = vmatprep.subr.mxu0 0.0
  %1824 = vmatpush1.msra.mxu0 0.0
  %1825 = vmatprep.subr.mxu0 0.0
  %1826 = vmatpush1.msra.mxu0 0.0
  %1827 = vmatprep.subr.mxu0 0.0
  %1828 = vmatpush1.msra.mxu0 0.0
  %1829 = vmatprep.subr.mxu0 0.0
  %1830 = vmatpush1.msra.mxu0 0.0
  %1831 = vmatprep.subr.mxu0 0.0
  %1832 = vmatpush1.msra.mxu0 0.0
  %1833 = vmatprep.subr.mxu0 0.0
  %1834 = vmatpush1.msra.mxu0 0.0
  %1835 = vmatprep.subr.mxu0 %v148
  %1836 = vmatpush1.msra.mxu0 %v147
  %1837 = vmatprep.subr.mxu0 %v144
  %1838 = vmatpush1.msra.mxu0 %v143
  %1839 = vmatprep.subr.mxu0 %v140
  %1840 = vmatpush1.msra.mxu0 %v139
  %1841 = vmatprep.subr.mxu0 %v136
  %1842 = vmatpush1.msra.mxu0 %v135
  %1843 = vmatprep.subr.mxu0 0.0
  %1844 = vmatpush2.msra.mxu0 0.0
  %1845 = vmatprep.subr.mxu0 0.0
  %1846 = vmatpush2.msra.mxu0 0.0
  %1847 = vmatprep.subr.mxu0 0.0
  %1848 = vmatpush2.msra.mxu0 0.0
  %1849 = vmatprep.subr.mxu0 0.0
  %1850 = vmatpush2.msra.mxu0 0.0
  %1851 = vmatprep.subr.mxu0 0.0
  %1852 = vmatpush2.msra.mxu0 0.0
  %1853 = vmatprep.subr.mxu0 0.0
  %1854 = vmatpush2.msra.mxu0 0.0
  %1855 = vmatprep.subr.mxu0 0.0
  %1856 = vmatpush2.msra.mxu0 0.0
  %1857 = vmatprep.subr.mxu0 0.0
  %1858 = vmatpush2.msra.mxu0 0.0
  %1859 = vmatprep.subr.mxu0 0.0
  %1860 = vmatpush2.msra.mxu0 0.0
  %1861 = vmatprep.subr.mxu0 0.0
  %1862 = vmatpush2.msra.mxu0 0.0
  %1863 = vmatprep.subr.mxu0 0.0
  %1864 = vmatpush2.msra.mxu0 0.0
  %1865 = vmatprep.subr.mxu0 0.0
  %1866 = vmatpush2.msra.mxu0 0.0
  %1867 = vmatprep.subr.mxu0 0.0
  %1868 = vmatpush2.msra.mxu0 0.0
  %1869 = vmatprep.subr.mxu0 0.0
  %1870 = vmatpush2.msra.mxu0 0.0
  %1871 = vmatprep.subr.mxu0 0.0
  %1872 = vmatpush2.msra.mxu0 0.0
  %1873 = vmatprep.subr.mxu0 0.0
  %1874 = vmatpush2.msra.mxu0 0.0
  %1875 = vmatprep.mubr.f32.mxu0 0.0
  %1876 = vmatmul.mubr.f32.gmra.mxu0 %v1809
  %v1877 = vpop.f32.mrf.mxu0
  %v1878 = vadd.f32 0.0, %v1877
  %v1879 = vpop.f32.mrf.mxu0
  %v1880 = vadd.f32 0.0, %v1879
  %1881 = vdwg.mxu0
  %1882 = vmatprep.subr.mxu0 0.0
  %1883 = vmatpush1.msra.mxu0 0.0
  %1884 = vmatprep.subr.mxu0 0.0
  %1885 = vmatpush1.msra.mxu0 0.0
  %1886 = vmatprep.subr.mxu0 0.0
  %1887 = vmatpush1.msra.mxu0 0.0
  %1888 = vmatprep.subr.mxu0 0.0
  %1889 = vmatpush1.msra.mxu0 0.0
  %1890 = vmatprep.subr.mxu0 0.0
  %1891 = vmatpush1.msra.mxu0 0.0
  %1892 = vmatprep.subr.mxu0 0.0
  %1893 = vmatpush1.msra.mxu0 0.0
  %1894 = vmatprep.subr.mxu0 0.0
  %1895 = vmatpush1.msra.mxu0 0.0
  %1896 = vmatprep.subr.mxu0 0.0
  %1897 = vmatpush1.msra.mxu0 0.0
  %1898 = vmatprep.subr.mxu0 0.0
  %1899 = vmatpush1.msra.mxu0 0.0
  %1900 = vmatprep.subr.mxu0 0.0
  %1901 = vmatpush1.msra.mxu0 0.0
  %1902 = vmatprep.subr.mxu0 0.0
  %1903 = vmatpush1.msra.mxu0 0.0
  %1904 = vmatprep.subr.mxu0 0.0
  %1905 = vmatpush1.msra.mxu0 0.0
  %1906 = vmatprep.subr.mxu0 %v150
  %1907 = vmatpush1.msra.mxu0 %v149
  %1908 = vmatprep.subr.mxu0 %v146
  %1909 = vmatpush1.msra.mxu0 %v145
  %1910 = vmatprep.subr.mxu0 %v142
  %1911 = vmatpush1.msra.mxu0 %v141
  %1912 = vmatprep.subr.mxu0 %v138
  %1913 = vmatpush1.msra.mxu0 %v137
  %1914 = vmatprep.subr.mxu0 0.0
  %1915 = vmatpush2.msra.mxu0 0.0
  %1916 = vmatprep.subr.mxu0 0.0
  %1917 = vmatpush2.msra.mxu0 0.0
  %1918 = vmatprep.subr.mxu0 0.0
  %1919 = vmatpush2.msra.mxu0 0.0
  %1920 = vmatprep.subr.mxu0 0.0
  %1921 = vmatpush2.msra.mxu0 0.0
  %1922 = vmatprep.subr.mxu0 0.0
  %1923 = vmatpush2.msra.mxu0 0.0
  %1924 = vmatprep.subr.mxu0 0.0
  %1925 = vmatpush2.msra.mxu0 0.0
  %1926 = vmatprep.subr.mxu0 0.0
  %1927 = vmatpush2.msra.mxu0 0.0
  %1928 = vmatprep.subr.mxu0 0.0
  %1929 = vmatpush2.msra.mxu0 0.0
  %1930 = vmatprep.subr.mxu0 0.0
  %1931 = vmatpush2.msra.mxu0 0.0
  %1932 = vmatprep.subr.mxu0 0.0
  %1933 = vmatpush2.msra.mxu0 0.0
  %1934 = vmatprep.subr.mxu0 0.0
  %1935 = vmatpush2.msra.mxu0 0.0
  %1936 = vmatprep.subr.mxu0 0.0
  %1937 = vmatpush2.msra.mxu0 0.0
  %1938 = vmatprep.subr.mxu0 0.0
  %1939 = vmatpush2.msra.mxu0 0.0
  %1940 = vmatprep.subr.mxu0 0.0
  %1941 = vmatpush2.msra.mxu0 0.0
  %1942 = vmatprep.subr.mxu0 0.0
  %1943 = vmatpush2.msra.mxu0 0.0
  %1944 = vmatprep.subr.mxu0 0.0
  %1945 = vmatpush2.msra.mxu0 0.0
  %1946 = vmatprep.mubr.f32.mxu0 0.0
  %1947 = vmatmul.mubr.f32.gmra.mxu0 %v1809
  %v1948 = vpop.f32.mrf.mxu0
  %v1949 = vadd.f32 0.0, %v1948
  %v1950 = vpop.f32.mrf.mxu0
  %v1951 = vadd.f32 0.0, %v1950
  %1952 = vdwg.mxu0
  %v1957 = vrot.slane %v1878, 1
  %v1958 = vrot.slane %v1880, 1
  %v1959 = vrot.slane %v1949, 1
  %v1960 = vrot.slane %v1951, 1
  %v1965 = vadd.f32 %v1878, %v1957
  %v1966 = vadd.f32 %v1880, %v1958
  %v1967 = vadd.f32 %v1949, %v1959
  %v1968 = vadd.f32 %v1951, %v1960
  %v1969 = vlaneseq
  %v1970 = vshrl.u32 %v1969, 7
  %v1971 = vsub.s32 0, %v1970
  %v1972 = vrot.slane %v1965, %v1971
  %v1973 = vlaneseq
  %v1974 = vshrl.u32 %v1973, 7
  %v1975 = vsub.s32 0, %v1974
  %v1976 = vrot.slane %v1966, %v1975
  %v1977 = vlaneseq
  %v1978 = vshrl.u32 %v1977, 7
  %v1979 = vsub.s32 0, %v1978
  %v1980 = vrot.slane %v1967, %v1979
  %v1981 = vlaneseq
  %v1982 = vshrl.u32 %v1981, 7
  %v1983 = vsub.s32 0, %v1982
  %v1984 = vrot.slane %v1968, %v1983
  %v1985 = vsub.f32 %v1490, %v1972
  %v1986 = vsub.f32 %v1491, %v1976
  %v1987 = vsub.f32 %v1492, %v1980
  %v1988 = vsub.f32 %v1493, %v1984
  %v1989 = vsub.f32 %v1494, %v1972
  %v1990 = vsub.f32 %v1495, %v1976
  %v1991 = vsub.f32 %v1496, %v1980
  %v1992 = vsub.f32 %v1497, %v1984
  %v1993 = vsub.f32 %v1498, %v1972
  %v1994 = vsub.f32 %v1499, %v1976
  %v1995 = vsub.f32 %v1500, %v1980
  %v1996 = vsub.f32 %v1501, %v1984
  %v1997 = vsub.f32 %v1502, %v1972
  %v1998 = vsub.f32 %v1503, %v1976
  %v1999 = vsub.f32 %v1504, %v1980
  %v2000 = vsub.f32 %v1505, %v1984
  %v2001 = vlaneseq
  %v2002 = vshrl.u32 %v2001, 7
  %v2003 = vsub.s32 2, %v2002
  %v2004 = vrot.slane %v1965, %v2003
  %v2005 = vlaneseq
  %v2006 = vshrl.u32 %v2005, 7
  %v2007 = vsub.s32 2, %v2006
  %v2008 = vrot.slane %v1966, %v2007
  %v2009 = vlaneseq
  %v2010 = vshrl.u32 %v2009, 7
  %v2011 = vsub.s32 2, %v2010
  %v2012 = vrot.slane %v1967, %v2011
  %v2013 = vlaneseq
  %v2014 = vshrl.u32 %v2013, 7
  %v2015 = vsub.s32 2, %v2014
  %v2016 = vrot.slane %v1968, %v2015
  %v2017 = vmul.f32 %v1985, %v2004
  %v2018 = vmul.f32 %v1986, %v2008
  %v2019 = vmul.f32 %v1987, %v2012
  %v2020 = vmul.f32 %v1988, %v2016
  %v2021 = vmul.f32 %v1989, %v2004
  %v2022 = vmul.f32 %v1990, %v2008
  %v2023 = vmul.f32 %v1991, %v2012
  %v2024 = vmul.f32 %v1992, %v2016
  %v2025 = vmul.f32 %v1993, %v2004
  %v2026 = vmul.f32 %v1994, %v2008
  %v2027 = vmul.f32 %v1995, %v2012
  %v2028 = vmul.f32 %v1996, %v2016
  %v2029 = vmul.f32 %v1997, %v2004
  %v2030 = vmul.f32 %v1998, %v2008
  %v2031 = vmul.f32 %v1999, %v2012
  %v2032 = vmul.f32 %v2000, %v2016
  %v2033 = vld [vmem:[%s3] sm:$0xff]
  %v2034 = vld [vmem:[%s3 + $0x8] sm:$0xff]
  %v2035 = vld [vmem:[%s3 + $0x10] sm:$0xff]
  %v2036 = vld [vmem:[%s3 + $0x18] sm:$0xff]
  %2038 = vset.pattern.permute.xlu0 0
  %2039 = vperm.xlu0 %2038, %v2033
  %v2040 = vpop.permute.xlu0 %2039
  %2043 = vset.pattern.permute.xlu0 0
  %2044 = vperm.xlu0 %2043, %v2034
  %v2045 = vpop.permute.xlu0 %2044
  %2048 = vset.pattern.permute.xlu0 0
  %2049 = vperm.xlu0 %2048, %v2035
  %v2050 = vpop.permute.xlu0 %2049
  %2053 = vset.pattern.permute.xlu0 0
  %2054 = vperm.xlu0 %2053, %v2036
  %v2055 = vpop.permute.xlu0 %2054
  %v2057 = vmul.f32 %v2017, %v2040
  %v2058 = vmul.f32 %v2018, %v2040
  %v2059 = vmul.f32 %v2019, %v2040
  %v2060 = vmul.f32 %v2020, %v2040
  %v2061 = vmul.f32 %v2021, %v2045
  %v2062 = vmul.f32 %v2022, %v2045
  %v2063 = vmul.f32 %v2023, %v2045
  %v2064 = vmul.f32 %v2024, %v2045
  %v2065 = vmul.f32 %v2025, %v2050
  %v2066 = vmul.f32 %v2026, %v2050
  %v2067 = vmul.f32 %v2027, %v2050
  %v2068 = vmul.f32 %v2028, %v2050
  %v2069 = vmul.f32 %v2029, %v2055
  %v2070 = vmul.f32 %v2030, %v2055
  %v2071 = vmul.f32 %v2031, %v2055
  %v2072 = vmul.f32 %v2032, %v2055
  %v2073 = vld [vmem:[%s4] sm:$0xff]
  %v2074 = vld [vmem:[%s4 + $0x8] sm:$0xff]
  %v2075 = vld [vmem:[%s4 + $0x10] sm:$0xff]
  %v2076 = vld [vmem:[%s4 + $0x18] sm:$0xff]
  %2078 = vset.pattern.permute.xlu0 0
  %2079 = vperm.xlu0 %2078, %v2073
  %v2080 = vpop.permute.xlu0 %2079
  %2083 = vset.pattern.permute.xlu0 0
  %2084 = vperm.xlu0 %2083, %v2074
  %v2085 = vpop.permute.xlu0 %2084
  %2088 = vset.pattern.permute.xlu0 0
  %2089 = vperm.xlu0 %2088, %v2075
  %v2090 = vpop.permute.xlu0 %2089
  %2093 = vset.pattern.permute.xlu0 0
  %2094 = vperm.xlu0 %2093, %v2076
  %v2095 = vpop.permute.xlu0 %2094
  %v2097 = vadd.f32 %v2057, %v2080
  %v2098 = vadd.f32 %v2058, %v2080
  %v2099 = vadd.f32 %v2059, %v2080
  %v2100 = vadd.f32 %v2060, %v2080
  %v2101 = vadd.f32 %v2061, %v2085
  %v2102 = vadd.f32 %v2062, %v2085
  %v2103 = vadd.f32 %v2063, %v2085
  %v2104 = vadd.f32 %v2064, %v2085
  %v2105 = vadd.f32 %v2065, %v2090
  %v2106 = vadd.f32 %v2066, %v2090
  %v2107 = vadd.f32 %v2067, %v2090
  %v2108 = vadd.f32 %v2068, %v2090
  %v2109 = vadd.f32 %v2069, %v2095
  %v2110 = vadd.f32 %v2070, %v2095
  %v2111 = vadd.f32 %v2071, %v2095
  %v2112 = vadd.f32 %v2072, %v2095
  %2113 = vrot.lane.b32.xlu0 %v2097, 1
  %v2114 = vpop.permute.xlu0 %2113
  %2115 = vrot.lane.b32.xlu0 %v2101, 1
  %v2116 = vpop.permute.xlu0 %2115
  %2117 = vrot.lane.b32.xlu0 %v2105, 1
  %v2118 = vpop.permute.xlu0 %2117
  %2119 = vrot.lane.b32.xlu0 %v2109, 1
  %v2120 = vpop.permute.xlu0 %2119
  %2121 = vrot.lane.b32.xlu0 %v2098, 1
  %v2122 = vpop.permute.xlu0 %2121
  %2123 = vrot.lane.b32.xlu0 %v2102, 1
  %v2124 = vpop.permute.xlu0 %2123
  %2125 = vrot.lane.b32.xlu0 %v2106, 1
  %v2126 = vpop.permute.xlu0 %2125
  %2127 = vrot.lane.b32.xlu0 %v2110, 1
  %v2128 = vpop.permute.xlu0 %2127
  %2129 = vrot.lane.b32.xlu0 %v2099, 1
  %v2130 = vpop.permute.xlu0 %2129
  %2131 = vrot.lane.b32.xlu0 %v2103, 1
  %v2132 = vpop.permute.xlu0 %2131
  %2133 = vrot.lane.b32.xlu0 %v2107, 1
  %v2134 = vpop.permute.xlu0 %2133
  %2135 = vrot.lane.b32.xlu0 %v2111, 1
  %v2136 = vpop.permute.xlu0 %2135
  %2137 = vrot.lane.b32.xlu0 %v2100, 1
  %v2138 = vpop.permute.xlu0 %2137
  %2139 = vrot.lane.b32.xlu0 %v2104, 1
  %v2140 = vpop.permute.xlu0 %2139
  %2141 = vrot.lane.b32.xlu0 %v2108, 1
  %v2142 = vpop.permute.xlu0 %2141
  %2143 = vrot.lane.b32.xlu0 %v2112, 1
  %v2144 = vpop.permute.xlu0 %2143
  %vm2145 = vcmp.lt.s32.totalorder %v47, 1
  %v2146 = vsel %vm2145, %v2130, %v2138
  %v2147 = vsel %vm2145, %v2132, %v2140
  %v2148 = vsel %vm2145, %v2134, %v2142
  %v2149 = vsel %vm2145, %v2136, %v2144
  %v2150 = vsel %vm2145, %v2122, %v2130
  %v2151 = vsel %vm2145, %v2124, %v2132
  %v2152 = vsel %vm2145, %v2126, %v2134
  %v2153 = vsel %vm2145, %v2128, %v2136
  %v2154 = vsel %vm2145, %v2114, %v2122
  %v2155 = vsel %vm2145, %v2116, %v2124
  %v2156 = vsel %vm2145, %v2118, %v2126
  %v2157 = vsel %vm2145, %v2120, %v2128
  %v2158 = vsel %vm2145, %v2138, %v2114
  %v2159 = vsel %vm2145, %v2140, %v2116
  %v2160 = vsel %vm2145, %v2142, %v2118
  %v2161 = vsel %vm2145, %v2144, %v2120
  %v2162 = vmul.f32 %v2158, %v235
  %v2163 = vmul.f32 %v2154, %v236
  %v2164 = vmul.f32 %v2150, %v237
  %v2165 = vmul.f32 %v2146, %v238
  %v2166 = vmul.f32 %v2159, %v235
  %v2167 = vmul.f32 %v2155, %v236
  %v2168 = vmul.f32 %v2151, %v237
  %v2169 = vmul.f32 %v2147, %v238
  %v2170 = vmul.f32 %v2160, %v235
  %v2171 = vmul.f32 %v2156, %v236
  %v2172 = vmul.f32 %v2152, %v237
  %v2173 = vmul.f32 %v2148, %v238
  %v2174 = vmul.f32 %v2161, %v235
  %v2175 = vmul.f32 %v2157, %v236
  %v2176 = vmul.f32 %v2153, %v237
  %v2177 = vmul.f32 %v2149, %v238
  %2178 = vrot.lane.b32.xlu0 %v2097, 127
  %v2179 = vpop.permute.xlu0 %2178
  %2180 = vrot.lane.b32.xlu0 %v2101, 127
  %v2181 = vpop.permute.xlu0 %2180
  %2182 = vrot.lane.b32.xlu0 %v2105, 127
  %v2183 = vpop.permute.xlu0 %2182
  %2184 = vrot.lane.b32.xlu0 %v2109, 127
  %v2185 = vpop.permute.xlu0 %2184
  %2186 = vrot.lane.b32.xlu0 %v2098, 127
  %v2187 = vpop.permute.xlu0 %2186
  %2188 = vrot.lane.b32.xlu0 %v2102, 127
  %v2189 = vpop.permute.xlu0 %2188
  %2190 = vrot.lane.b32.xlu0 %v2106, 127
  %v2191 = vpop.permute.xlu0 %2190
  %2192 = vrot.lane.b32.xlu0 %v2110, 127
  %v2193 = vpop.permute.xlu0 %2192
  %2194 = vrot.lane.b32.xlu0 %v2099, 127
  %v2195 = vpop.permute.xlu0 %2194
  %2196 = vrot.lane.b32.xlu0 %v2103, 127
  %v2197 = vpop.permute.xlu0 %2196
  %2198 = vrot.lane.b32.xlu0 %v2107, 127
  %v2199 = vpop.permute.xlu0 %2198
  %2200 = vrot.lane.b32.xlu0 %v2111, 127
  %v2201 = vpop.permute.xlu0 %2200
  %2202 = vrot.lane.b32.xlu0 %v2100, 127
  %v2203 = vpop.permute.xlu0 %2202
  %2204 = vrot.lane.b32.xlu0 %v2104, 127
  %v2205 = vpop.permute.xlu0 %2204
  %2206 = vrot.lane.b32.xlu0 %v2108, 127
  %v2207 = vpop.permute.xlu0 %2206
  %2208 = vrot.lane.b32.xlu0 %v2112, 127
  %v2209 = vpop.permute.xlu0 %2208
  %vm2210 = vcmp.lt.s32.totalorder %v47, 127
  %v2211 = vsel %vm2210, %v2195, %v2203
  %v2212 = vsel %vm2210, %v2197, %v2205
  %v2213 = vsel %vm2210, %v2199, %v2207
  %v2214 = vsel %vm2210, %v2201, %v2209
  %v2215 = vsel %vm2210, %v2187, %v2195
  %v2216 = vsel %vm2210, %v2189, %v2197
  %v2217 = vsel %vm2210, %v2191, %v2199
  %v2218 = vsel %vm2210, %v2193, %v2201
  %v2219 = vsel %vm2210, %v2179, %v2187
  %v2220 = vsel %vm2210, %v2181, %v2189
  %v2221 = vsel %vm2210, %v2183, %v2191
  %v2222 = vsel %vm2210, %v2185, %v2193
  %v2223 = vsel %vm2210, %v2203, %v2179
  %v2224 = vsel %vm2210, %v2205, %v2181
  %v2225 = vsel %vm2210, %v2207, %v2183
  %v2226 = vsel %vm2210, %v2209, %v2185
  %v2227 = vmul.f32 %v2219, %v323
  %v2228 = vmul.f32 %v2215, %v324
  %v2229 = vmul.f32 %v2211, %v325
  %v2230 = vmul.f32 %v2223, %v326
  %v2231 = vmul.f32 %v2220, %v323
  %v2232 = vmul.f32 %v2216, %v324
  %v2233 = vmul.f32 %v2212, %v325
  %v2234 = vmul.f32 %v2224, %v326
  %v2235 = vmul.f32 %v2221, %v323
  %v2236 = vmul.f32 %v2217, %v324
  %v2237 = vmul.f32 %v2213, %v325
  %v2238 = vmul.f32 %v2225, %v326
  %v2239 = vmul.f32 %v2222, %v323
  %v2240 = vmul.f32 %v2218, %v324
  %v2241 = vmul.f32 %v2214, %v325
  %v2242 = vmul.f32 %v2226, %v326
  %v2243 = vld [vmem:[%s5] sm:$0xff]
  %v2244 = vld [vmem:[%s5 + $0x8] sm:$0xff]
  %v2245 = vld [vmem:[%s5 + $0x10] sm:$0xff]
  %v2246 = vld [vmem:[%s5 + $0x18] sm:$0xff]
  %2248 = vset.pattern.permute.xlu0 0
  %2249 = vperm.xlu0 %2248, %v2243
  %v2250 = vpop.permute.xlu0 %2249
  %2253 = vset.pattern.permute.xlu0 0
  %2254 = vperm.xlu0 %2253, %v2244
  %v2255 = vpop.permute.xlu0 %2254
  %2258 = vset.pattern.permute.xlu0 0
  %2259 = vperm.xlu0 %2258, %v2245
  %v2260 = vpop.permute.xlu0 %2259
  %2263 = vset.pattern.permute.xlu0 0
  %2264 = vperm.xlu0 %2263, %v2246
  %v2265 = vpop.permute.xlu0 %2264
  %v2267 = vmul.f32 %v2250, %v2162
  %v2268 = vmul.f32 %v2250, %v2163
  %v2269 = vmul.f32 %v2250, %v2164
  %v2270 = vmul.f32 %v2250, %v2165
  %v2271 = vmul.f32 %v2255, %v2166
  %v2272 = vmul.f32 %v2255, %v2167
  %v2273 = vmul.f32 %v2255, %v2168
  %v2274 = vmul.f32 %v2255, %v2169
  %v2275 = vmul.f32 %v2260, %v2170
  %v2276 = vmul.f32 %v2260, %v2171
  %v2277 = vmul.f32 %v2260, %v2172
  %v2278 = vmul.f32 %v2260, %v2173
  %v2279 = vmul.f32 %v2265, %v2174
  %v2280 = vmul.f32 %v2265, %v2175
  %v2281 = vmul.f32 %v2265, %v2176
  %v2282 = vmul.f32 %v2265, %v2177
  %2283 = vset.pattern.permute.xlu0 1
  %2284 = vperm.xlu0 %2283, %v2243
  %v2285 = vpop.permute.xlu0 %2284
  %2287 = vset.pattern.permute.xlu0 1
  %2288 = vperm.xlu0 %2287, %v2244
  %v2289 = vpop.permute.xlu0 %2288
  %2291 = vset.pattern.permute.xlu0 1
  %2292 = vperm.xlu0 %2291, %v2245
  %v2293 = vpop.permute.xlu0 %2292
  %2295 = vset.pattern.permute.xlu0 1
  %2296 = vperm.xlu0 %2295, %v2246
  %v2297 = vpop.permute.xlu0 %2296
  %v2299 = vmul.f32 %v2285, %v2097
  %v2300 = vmul.f32 %v2285, %v2098
  %v2301 = vmul.f32 %v2285, %v2099
  %v2302 = vmul.f32 %v2285, %v2100
  %v2303 = vmul.f32 %v2289, %v2101
  %v2304 = vmul.f32 %v2289, %v2102
  %v2305 = vmul.f32 %v2289, %v2103
  %v2306 = vmul.f32 %v2289, %v2104
  %v2307 = vmul.f32 %v2293, %v2105
  %v2308 = vmul.f32 %v2293, %v2106
  %v2309 = vmul.f32 %v2293, %v2107
  %v2310 = vmul.f32 %v2293, %v2108
  %v2311 = vmul.f32 %v2297, %v2109
  %v2312 = vmul.f32 %v2297, %v2110
  %v2313 = vmul.f32 %v2297, %v2111
  %v2314 = vmul.f32 %v2297, %v2112
  %v2315 = vadd.f32 %v2267, %v2299
  %v2316 = vadd.f32 %v2268, %v2300
  %v2317 = vadd.f32 %v2269, %v2301
  %v2318 = vadd.f32 %v2270, %v2302
  %v2319 = vadd.f32 %v2271, %v2303
  %v2320 = vadd.f32 %v2272, %v2304
  %v2321 = vadd.f32 %v2273, %v2305
  %v2322 = vadd.f32 %v2274, %v2306
  %v2323 = vadd.f32 %v2275, %v2307
  %v2324 = vadd.f32 %v2276, %v2308
  %v2325 = vadd.f32 %v2277, %v2309
  %v2326 = vadd.f32 %v2278, %v2310
  %v2327 = vadd.f32 %v2279, %v2311
  %v2328 = vadd.f32 %v2280, %v2312
  %v2329 = vadd.f32 %v2281, %v2313
  %v2330 = vadd.f32 %v2282, %v2314
  %2331 = vset.pattern.permute.xlu0 2
  %2332 = vperm.xlu0 %2331, %v2243
  %v2333 = vpop.permute.xlu0 %2332
  %2335 = vset.pattern.permute.xlu0 2
  %2336 = vperm.xlu0 %2335, %v2244
  %v2337 = vpop.permute.xlu0 %2336
  %2339 = vset.pattern.permute.xlu0 2
  %2340 = vperm.xlu0 %2339, %v2245
  %v2341 = vpop.permute.xlu0 %2340
  %2343 = vset.pattern.permute.xlu0 2
  %2344 = vperm.xlu0 %2343, %v2246
  %v2345 = vpop.permute.xlu0 %2344
  %v2347 = vmul.f32 %v2333, %v2227
  %v2348 = vmul.f32 %v2333, %v2228
  %v2349 = vmul.f32 %v2333, %v2229
  %v2350 = vmul.f32 %v2333, %v2230
  %v2351 = vmul.f32 %v2337, %v2231
  %v2352 = vmul.f32 %v2337, %v2232
  %v2353 = vmul.f32 %v2337, %v2233
  %v2354 = vmul.f32 %v2337, %v2234
  %v2355 = vmul.f32 %v2341, %v2235
  %v2356 = vmul.f32 %v2341, %v2236
  %v2357 = vmul.f32 %v2341, %v2237
  %v2358 = vmul.f32 %v2341, %v2238
  %v2359 = vmul.f32 %v2345, %v2239
  %v2360 = vmul.f32 %v2345, %v2240
  %v2361 = vmul.f32 %v2345, %v2241
  %v2362 = vmul.f32 %v2345, %v2242
  %v2363 = vadd.f32 %v2315, %v2347
  %v2364 = vadd.f32 %v2316, %v2348
  %v2365 = vadd.f32 %v2317, %v2349
  %v2366 = vadd.f32 %v2318, %v2350
  %v2367 = vadd.f32 %v2319, %v2351
  %v2368 = vadd.f32 %v2320, %v2352
  %v2369 = vadd.f32 %v2321, %v2353
  %v2370 = vadd.f32 %v2322, %v2354
  %v2371 = vadd.f32 %v2323, %v2355
  %v2372 = vadd.f32 %v2324, %v2356
  %v2373 = vadd.f32 %v2325, %v2357
  %v2374 = vadd.f32 %v2326, %v2358
  %v2375 = vadd.f32 %v2327, %v2359
  %v2376 = vadd.f32 %v2328, %v2360
  %v2377 = vadd.f32 %v2329, %v2361
  %v2378 = vadd.f32 %v2330, %v2362
  %s2379 = sld [smem:[#allocation2]]
  %vm2380 = vcmp.ge.f32.partialorder %v2363, 0.0
  %vm2381 = vcmp.ge.f32.partialorder %v2364, 0.0
  %vm2382 = vcmp.ge.f32.partialorder %v2365, 0.0
  %vm2383 = vcmp.ge.f32.partialorder %v2366, 0.0
  %vm2384 = vcmp.ge.f32.partialorder %v2367, 0.0
  %vm2385 = vcmp.ge.f32.partialorder %v2368, 0.0
  %vm2386 = vcmp.ge.f32.partialorder %v2369, 0.0
  %vm2387 = vcmp.ge.f32.partialorder %v2370, 0.0
  %vm2388 = vcmp.ge.f32.partialorder %v2371, 0.0
  %vm2389 = vcmp.ge.f32.partialorder %v2372, 0.0
  %vm2390 = vcmp.ge.f32.partialorder %v2373, 0.0
  %vm2391 = vcmp.ge.f32.partialorder %v2374, 0.0
  %vm2392 = vcmp.ge.f32.partialorder %v2375, 0.0
  %vm2393 = vcmp.ge.f32.partialorder %v2376, 0.0
  %vm2394 = vcmp.ge.f32.partialorder %v2377, 0.0
  %vm2395 = vcmp.ge.f32.partialorder %v2378, 0.0
  %v2396 = vstv %s2379
  %v2397 = vmul.f32 %v2396, %v2363
  %v2398 = vmul.f32 %v2396, %v2364
  %v2399 = vmul.f32 %v2396, %v2365
  %v2400 = vmul.f32 %v2396, %v2366
  %v2401 = vmul.f32 %v2396, %v2367
  %v2402 = vmul.f32 %v2396, %v2368
  %v2403 = vmul.f32 %v2396, %v2369
  %v2404 = vmul.f32 %v2396, %v2370
  %v2405 = vmul.f32 %v2396, %v2371
  %v2406 = vmul.f32 %v2396, %v2372
  %v2407 = vmul.f32 %v2396, %v2373
  %v2408 = vmul.f32 %v2396, %v2374
  %v2409 = vmul.f32 %v2396, %v2375
  %v2410 = vmul.f32 %v2396, %v2376
  %v2411 = vmul.f32 %v2396, %v2377
  %v2412 = vmul.f32 %v2396, %v2378
  %v2413 = vsel %vm2380, %v2363, %v2397
  %v2414 = vsel %vm2381, %v2364, %v2398
  %v2415 = vsel %vm2382, %v2365, %v2399
  %v2416 = vsel %vm2383, %v2366, %v2400
  %v2417 = vsel %vm2384, %v2367, %v2401
  %v2418 = vsel %vm2385, %v2368, %v2402
  %v2419 = vsel %vm2386, %v2369, %v2403
  %v2420 = vsel %vm2387, %v2370, %v2404
  %v2421 = vsel %vm2388, %v2371, %v2405
  %v2422 = vsel %vm2389, %v2372, %v2406
  %v2423 = vsel %vm2390, %v2373, %v2407
  %v2424 = vsel %vm2391, %v2374, %v2408
  %v2425 = vsel %vm2392, %v2375, %v2409
  %v2426 = vsel %vm2393, %v2376, %v2410
  %v2427 = vsel %vm2394, %v2377, %v2411
  %v2428 = vsel %vm2395, %v2378, %v2412
  %v2429 = vadd.f32 %v2413, %v2417
  %v2430 = vadd.f32 %v2429, %v2421
  %v2431 = vadd.f32 %v2430, %v2425
  %v2432 = vrot.slane %v2431, 4
  %v2433 = vadd.f32 %v2431, %v2432
  %v2434 = vrot.slane %v2433, 2
  %v2435 = vadd.f32 %v2433, %v2434
  %v2436 = vrot.slane %v2435, 1
  %v2437 = vadd.f32 %v2435, %v2436
  %v2438 = vadd.f32 %v2414, %v2418
  %v2439 = vadd.f32 %v2438, %v2422
  %v2440 = vadd.f32 %v2439, %v2426
  %v2441 = vrot.slane %v2440, 4
  %v2442 = vadd.f32 %v2440, %v2441
  %v2443 = vrot.slane %v2442, 2
  %v2444 = vadd.f32 %v2442, %v2443
  %v2445 = vrot.slane %v2444, 1
  %v2446 = vadd.f32 %v2444, %v2445
  %v2447 = vadd.f32 %v2415, %v2419
  %v2448 = vadd.f32 %v2447, %v2423
  %v2449 = vadd.f32 %v2448, %v2427
  %v2450 = vrot.slane %v2449, 4
  %v2451 = vadd.f32 %v2449, %v2450
  %v2452 = vrot.slane %v2451, 2
  %v2453 = vadd.f32 %v2451, %v2452
  %v2454 = vrot.slane %v2453, 1
  %v2455 = vadd.f32 %v2453, %v2454
  %v2456 = vadd.f32 %v2416, %v2420
  %v2457 = vadd.f32 %v2456, %v2424
  %v2458 = vadd.f32 %v2457, %v2428
  %v2459 = vrot.slane %v2458, 4
  %v2460 = vadd.f32 %v2458, %v2459
  %v2461 = vrot.slane %v2460, 2
  %v2462 = vadd.f32 %v2460, %v2461
  %v2463 = vrot.slane %v2462, 1
  %v2464 = vadd.f32 %v2462, %v2463
  %v2465 = vmul.f32 %v2413, %v2413
  %v2466 = vmul.f32 %v2414, %v2414
  %v2467 = vmul.f32 %v2415, %v2415
  %v2468 = vmul.f32 %v2416, %v2416
  %v2469 = vmul.f32 %v2417, %v2417
  %v2470 = vmul.f32 %v2418, %v2418
  %v2471 = vmul.f32 %v2419, %v2419
  %v2472 = vmul.f32 %v2420, %v2420
  %v2473 = vmul.f32 %v2421, %v2421
  %v2474 = vmul.f32 %v2422, %v2422
  %v2475 = vmul.f32 %v2423, %v2423
  %v2476 = vmul.f32 %v2424, %v2424
  %v2477 = vmul.f32 %v2425, %v2425
  %v2478 = vmul.f32 %v2426, %v2426
  %v2479 = vmul.f32 %v2427, %v2427
  %v2480 = vmul.f32 %v2428, %v2428
  %v2481 = vadd.f32 %v2465, %v2469
  %v2482 = vadd.f32 %v2481, %v2473
  %v2483 = vadd.f32 %v2482, %v2477
  %v2484 = vrot.slane %v2483, 4
  %v2485 = vadd.f32 %v2483, %v2484
  %v2486 = vrot.slane %v2485, 2
  %v2487 = vadd.f32 %v2485, %v2486
  %v2488 = vrot.slane %v2487, 1
  %v2489 = vadd.f32 %v2487, %v2488
  %v2490 = vadd.f32 %v2466, %v2470
  %v2491 = vadd.f32 %v2490, %v2474
  %v2492 = vadd.f32 %v2491, %v2478
  %v2493 = vrot.slane %v2492, 4
  %v2494 = vadd.f32 %v2492, %v2493
  %v2495 = vrot.slane %v2494, 2
  %v2496 = vadd.f32 %v2494, %v2495
  %v2497 = vrot.slane %v2496, 1
  %v2498 = vadd.f32 %v2496, %v2497
  %v2499 = vadd.f32 %v2467, %v2471
  %v2500 = vadd.f32 %v2499, %v2475
  %v2501 = vadd.f32 %v2500, %v2479
  %v2502 = vrot.slane %v2501, 4
  %v2503 = vadd.f32 %v2501, %v2502
  %v2504 = vrot.slane %v2503, 2
  %v2505 = vadd.f32 %v2503, %v2504
  %v2506 = vrot.slane %v2505, 1
  %v2507 = vadd.f32 %v2505, %v2506
  %v2508 = vadd.f32 %v2468, %v2472
  %v2509 = vadd.f32 %v2508, %v2476
  %v2510 = vadd.f32 %v2509, %v2480
  %v2511 = vrot.slane %v2510, 4
  %v2512 = vadd.f32 %v2510, %v2511
  %v2513 = vrot.slane %v2512, 2
  %v2514 = vadd.f32 %v2512, %v2513
  %v2515 = vrot.slane %v2514, 1
  %v2516 = vadd.f32 %v2514, %v2515
  %v2517 = vpack.c.bf16 %v2437, %v2437
  %v2518 = vpack.c.bf16 %v2446, %v2446
  %v2519 = vpack.c.bf16 %v2455, %v2455
  %v2520 = vpack.c.bf16 %v2464, %v2464
  %v2521 = vunpack.c.l.bf16 %v2517
  %v2522 = vunpack.c.l.bf16 %v2518
  %v2523 = vunpack.c.l.bf16 %v2519
  %v2524 = vunpack.c.l.bf16 %v2520
  %v2525 = vpack.c.bf16 %v2489, %v2489
  %v2526 = vpack.c.bf16 %v2498, %v2498
  %v2527 = vpack.c.bf16 %v2507, %v2507
  %v2528 = vpack.c.bf16 %v2516, %v2516
  %v2529 = vunpack.c.l.bf16 %v2525
  %v2530 = vunpack.c.l.bf16 %v2526
  %v2531 = vunpack.c.l.bf16 %v2527
  %v2532 = vunpack.c.l.bf16 %v2528
  %v2533 = vsub.f32 %v2437, %v2521
  %v2534 = vsub.f32 %v2446, %v2522
  %v2535 = vsub.f32 %v2455, %v2523
  %v2536 = vsub.f32 %v2464, %v2524
  %v2537 = vsub.f32 %v2489, %v2529
  %v2538 = vsub.f32 %v2498, %v2530
  %v2539 = vsub.f32 %v2507, %v2531
  %v2540 = vsub.f32 %v2516, %v2532
  %v2541 = vsel %vm870, %v2529, %v2537
  %v2542 = vsel %vm870, %v2530, %v2538
  %v2543 = vsel %vm870, %v2531, %v2539
  %v2544 = vsel %vm870, %v2532, %v2540
  %v2545 = vsel %vm869, %v2533, %v2541
  %v2546 = vsel %vm869, %v2534, %v2542
  %v2547 = vsel %vm869, %v2535, %v2543
  %v2548 = vsel %vm869, %v2536, %v2544
  %v2549 = vsel %vm868, %v2521, %v2545
  %v2550 = vsel %vm868, %v2522, %v2546
  %v2551 = vsel %vm868, %v2523, %v2547
  %v2552 = vsel %vm868, %v2524, %v2548
  %2553 = vmatprep.subr.mxu0 0.0
  %2554 = vmatpush1.msra.mxu0 %v723
  %2555 = vmatprep.subr.mxu0 0.0
  %2556 = vmatpush1.msra.mxu0 %v722
  %2557 = vmatprep.subr.mxu0 0.0
  %2558 = vmatpush1.msra.mxu0 %v721
  %2559 = vmatprep.subr.mxu0 0.0
  %2560 = vmatpush1.msra.mxu0 %v720
  %2561 = vmatprep.subr.mxu0 0.0
  %2562 = vmatpush1.msra.mxu0 %v719
  %2563 = vmatprep.subr.mxu0 0.0
  %2564 = vmatpush1.msra.mxu0 %v718
  %2565 = vmatprep.subr.mxu0 0.0
  %2566 = vmatpush1.msra.mxu0 %v717
  %2567 = vmatprep.subr.mxu0 0.0
  %2568 = vmatpush1.msra.mxu0 %v716
  %2569 = vmatprep.subr.mxu0 0.0
  %2570 = vmatpush1.msra.mxu0 %v715
  %2571 = vmatprep.subr.mxu0 0.0
  %2572 = vmatpush1.msra.mxu0 %v714
  %2573 = vmatprep.subr.mxu0 0.0
  %2574 = vmatpush1.msra.mxu0 %v713
  %2575 = vmatprep.subr.mxu0 0.0
  %2576 = vmatpush1.msra.mxu0 %v712
  %2577 = vmatprep.subr.mxu0 0.0
  %2578 = vmatpush1.msra.mxu0 %v711
  %2579 = vmatprep.subr.mxu0 0.0
  %2580 = vmatpush1.msra.mxu0 %v710
  %2581 = vmatprep.subr.mxu0 0.0
  %2582 = vmatpush1.msra.mxu0 %v709
  %2583 = vmatprep.subr.mxu0 0.0
  %2584 = vmatpush1.msra.mxu0 %v708
  %2585 = vmatprep.subr.mxu0 0.0
  %2586 = vmatpush2.msra.mxu0 %v739
  %2587 = vmatprep.subr.mxu0 0.0
  %2588 = vmatpush2.msra.mxu0 %v738
  %2589 = vmatprep.subr.mxu0 0.0
  %2590 = vmatpush2.msra.mxu0 %v737
  %2591 = vmatprep.subr.mxu0 0.0
  %2592 = vmatpush2.msra.mxu0 %v736
  %2593 = vmatprep.subr.mxu0 0.0
  %2594 = vmatpush2.msra.mxu0 %v735
  %2595 = vmatprep.subr.mxu0 0.0
  %2596 = vmatpush2.msra.mxu0 %v734
  %2597 = vmatprep.subr.mxu0 0.0
  %2598 = vmatpush2.msra.mxu0 %v733
  %2599 = vmatprep.subr.mxu0 0.0
  %2600 = vmatpush2.msra.mxu0 %v732
  %2601 = vmatprep.subr.mxu0 0.0
  %2602 = vmatpush2.msra.mxu0 %v731
  %2603 = vmatprep.subr.mxu0 0.0
  %2604 = vmatpush2.msra.mxu0 %v730
  %2605 = vmatprep.subr.mxu0 0.0
  %2606 = vmatpush2.msra.mxu0 %v729
  %2607 = vmatprep.subr.mxu0 0.0
  %2608 = vmatpush2.msra.mxu0 %v728
  %2609 = vmatprep.subr.mxu0 0.0
  %2610 = vmatpush2.msra.mxu0 %v727
  %2611 = vmatprep.subr.mxu0 0.0
  %2612 = vmatpush2.msra.mxu0 %v726
  %2613 = vmatprep.subr.mxu0 0.0
  %2614 = vmatpush2.msra.mxu0 %v725
  %2615 = vmatprep.subr.mxu0 0.0
  %2616 = vmatpush2.msra.mxu0 %v724
  %2617 = vmatprep.mubr.f32.mxu0 %v2550
  %2618 = vmatmul.mubr.f32.gmra.mxu0 %v2549
  %v2619 = vpop.f32.mrf.mxu0
  %v2620 = vadd.f32 0.0, %v2619
  %v2621 = vpop.f32.mrf.mxu0
  %2622 = vdwg.mxu0
  %2623 = vmatprep.subr.mxu0 0.0
  %2624 = vmatpush1.msra.mxu0 %v755
  %2625 = vmatprep.subr.mxu0 0.0
  %2626 = vmatpush1.msra.mxu0 %v754
  %2627 = vmatprep.subr.mxu0 0.0
  %2628 = vmatpush1.msra.mxu0 %v753
  %2629 = vmatprep.subr.mxu0 0.0
  %2630 = vmatpush1.msra.mxu0 %v752
  %2631 = vmatprep.subr.mxu0 0.0
  %2632 = vmatpush1.msra.mxu0 %v751
  %2633 = vmatprep.subr.mxu0 0.0
  %2634 = vmatpush1.msra.mxu0 %v750
  %2635 = vmatprep.subr.mxu0 0.0
  %2636 = vmatpush1.msra.mxu0 %v749
  %2637 = vmatprep.subr.mxu0 0.0
  %2638 = vmatpush1.msra.mxu0 %v748
  %2639 = vmatprep.subr.mxu0 0.0
  %2640 = vmatpush1.msra.mxu0 %v747
  %2641 = vmatprep.subr.mxu0 0.0
  %2642 = vmatpush1.msra.mxu0 %v746
  %2643 = vmatprep.subr.mxu0 0.0
  %2644 = vmatpush1.msra.mxu0 %v745
  %2645 = vmatprep.subr.mxu0 0.0
  %2646 = vmatpush1.msra.mxu0 %v744
  %2647 = vmatprep.subr.mxu0 0.0
  %2648 = vmatpush1.msra.mxu0 %v743
  %2649 = vmatprep.subr.mxu0 0.0
  %2650 = vmatpush1.msra.mxu0 %v742
  %2651 = vmatprep.subr.mxu0 0.0
  %2652 = vmatpush1.msra.mxu0 %v741
  %2653 = vmatprep.subr.mxu0 0.0
  %2654 = vmatpush1.msra.mxu0 %v740
  %2655 = vmatprep.subr.mxu0 0.0
  %2656 = vmatpush2.msra.mxu0 %v771
  %2657 = vmatprep.subr.mxu0 0.0
  %2658 = vmatpush2.msra.mxu0 %v770
  %2659 = vmatprep.subr.mxu0 0.0
  %2660 = vmatpush2.msra.mxu0 %v769
  %2661 = vmatprep.subr.mxu0 0.0
  %2662 = vmatpush2.msra.mxu0 %v768
  %2663 = vmatprep.subr.mxu0 0.0
  %2664 = vmatpush2.msra.mxu0 %v767
  %2665 = vmatprep.subr.mxu0 0.0
  %2666 = vmatpush2.msra.mxu0 %v766
  %2667 = vmatprep.subr.mxu0 0.0
  %2668 = vmatpush2.msra.mxu0 %v765
  %2669 = vmatprep.subr.mxu0 0.0
  %2670 = vmatpush2.msra.mxu0 %v764
  %2671 = vmatprep.subr.mxu0 0.0
  %2672 = vmatpush2.msra.mxu0 %v763
  %2673 = vmatprep.subr.mxu0 0.0
  %2674 = vmatpush2.msra.mxu0 %v762
  %2675 = vmatprep.subr.mxu0 0.0
  %2676 = vmatpush2.msra.mxu0 %v761
  %2677 = vmatprep.subr.mxu0 0.0
  %2678 = vmatpush2.msra.mxu0 %v760
  %2679 = vmatprep.subr.mxu0 0.0
  %2680 = vmatpush2.msra.mxu0 %v759
  %2681 = vmatprep.subr.mxu0 0.0
  %2682 = vmatpush2.msra.mxu0 %v758
  %2683 = vmatprep.subr.mxu0 0.0
  %2684 = vmatpush2.msra.mxu0 %v757
  %2685 = vmatprep.subr.mxu0 0.0
  %2686 = vmatpush2.msra.mxu0 %v756
  %2687 = vmatprep.mubr.f32.mxu0 %v2552
  %2688 = vmatmul.mubr.f32.gmra.mxu0 %v2551
  %v2689 = vpop.f32.mrf.mxu0
  %v2690 = vadd.f32 %v2620, %v2689
  %v2691 = vpop.f32.mrf.mxu0
  %2692 = vdwg.mxu0
  %v2694 = vrot.slane %v2690, 1
  %v2696 = vadd.f32 %v2690, %v2694
  %v2697 = vmul.f32 %v2696, 0.001953125
  %v2698 = vmul.f32 %v2697, %v2697
  %v2700 = vrot.slane %v2698, 6
  %v2702 = vsub.f32 %v2697, %v2700
  %v2703 = vmax.f32 %v2702, 0.0
  %v2704 = vadd.f32 %v2703, 1e-08
  %v2705 = vrsqrt.pop %v2704
  %v2706 = vpack.c.bf16 %v2697, %v2697
  %v2707 = vunpack.c.l.bf16 %v2706
  %v2708 = vpack.c.bf16 %v2705, %v2705
  %v2709 = vunpack.c.l.bf16 %v2708
  %v2710 = vsub.f32 %v2697, %v2707
  %v2711 = vsub.f32 %v2705, %v2709
  %v2712 = vlaneseq
  %v2713 = vshrl.u32 %v2712, 7
  %v2714 = vsub.s32 2, %v2713
  %v2715 = vrot.slane %v2709, %v2714
  %v2716 = vlaneseq
  %v2717 = vshrl.u32 %v2716, 7
  %v2718 = vsub.s32 2, %v2717
  %v2719 = vrot.slane %v2711, %v2718
  %v2720 = vsel %vm870, %v2715, %v2719
  %v2721 = vlaneseq
  %v2722 = vshrl.u32 %v2721, 7
  %v2723 = vsub.s32 0, %v2722
  %v2724 = vrot.slane %v2710, %v2723
  %v2725 = vsel %vm869, %v2724, %v2720
  %v2726 = vlaneseq
  %v2727 = vshrl.u32 %v2726, 7
  %v2728 = vsub.s32 0, %v2727
  %v2729 = vrot.slane %v2707, %v2728
  %v2730 = vsel %vm868, %v2729, %v2725
  %v2732 = vsel %vm1061, %v2730, 0
  %2734 = vmatprep.subr.mxu0 0.0
  %2735 = vmatpush1.msra.mxu0 0.0
  %2736 = vmatprep.subr.mxu0 0.0
  %2737 = vmatpush1.msra.mxu0 0.0
  %2738 = vmatprep.subr.mxu0 0.0
  %2739 = vmatpush1.msra.mxu0 0.0
  %2740 = vmatprep.subr.mxu0 0.0
  %2741 = vmatpush1.msra.mxu0 0.0
  %2742 = vmatprep.subr.mxu0 0.0
  %2743 = vmatpush1.msra.mxu0 0.0
  %2744 = vmatprep.subr.mxu0 0.0
  %2745 = vmatpush1.msra.mxu0 0.0
  %2746 = vmatprep.subr.mxu0 0.0
  %2747 = vmatpush1.msra.mxu0 0.0
  %2748 = vmatprep.subr.mxu0 0.0
  %2749 = vmatpush1.msra.mxu0 0.0
  %2750 = vmatprep.subr.mxu0 0.0
  %2751 = vmatpush1.msra.mxu0 0.0
  %2752 = vmatprep.subr.mxu0 0.0
  %2753 = vmatpush1.msra.mxu0 0.0
  %2754 = vmatprep.subr.mxu0 0.0
  %2755 = vmatpush1.msra.mxu0 0.0
  %2756 = vmatprep.subr.mxu0 0.0
  %2757 = vmatpush1.msra.mxu0 0.0
  %2758 = vmatprep.subr.mxu0 %v148
  %2759 = vmatpush1.msra.mxu0 %v147
  %2760 = vmatprep.subr.mxu0 %v144
  %2761 = vmatpush1.msra.mxu0 %v143
  %2762 = vmatprep.subr.mxu0 %v140
  %2763 = vmatpush1.msra.mxu0 %v139
  %2764 = vmatprep.subr.mxu0 %v136
  %2765 = vmatpush1.msra.mxu0 %v135
  %2766 = vmatprep.subr.mxu0 0.0
  %2767 = vmatpush2.msra.mxu0 0.0
  %2768 = vmatprep.subr.mxu0 0.0
  %2769 = vmatpush2.msra.mxu0 0.0
  %2770 = vmatprep.subr.mxu0 0.0
  %2771 = vmatpush2.msra.mxu0 0.0
  %2772 = vmatprep.subr.mxu0 0.0
  %2773 = vmatpush2.msra.mxu0 0.0
  %2774 = vmatprep.subr.mxu0 0.0
  %2775 = vmatpush2.msra.mxu0 0.0
  %2776 = vmatprep.subr.mxu0 0.0
  %2777 = vmatpush2.msra.mxu0 0.0
  %2778 = vmatprep.subr.mxu0 0.0
  %2779 = vmatpush2.msra.mxu0 0.0
  %2780 = vmatprep.subr.mxu0 0.0
  %2781 = vmatpush2.msra.mxu0 0.0
  %2782 = vmatprep.subr.mxu0 0.0
  %2783 = vmatpush2.msra.mxu0 0.0
  %2784 = vmatprep.subr.mxu0 0.0
  %2785 = vmatpush2.msra.mxu0 0.0
  %2786 = vmatprep.subr.mxu0 0.0
  %2787 = vmatpush2.msra.mxu0 0.0
  %2788 = vmatprep.subr.mxu0 0.0
  %2789 = vmatpush2.msra.mxu0 0.0
  %2790 = vmatprep.subr.mxu0 0.0
  %2791 = vmatpush2.msra.mxu0 0.0
  %2792 = vmatprep.subr.mxu0 0.0
  %2793 = vmatpush2.msra.mxu0 0.0
  %2794 = vmatprep.subr.mxu0 0.0
  %2795 = vmatpush2.msra.mxu0 0.0
  %2796 = vmatprep.subr.mxu0 0.0
  %2797 = vmatpush2.msra.mxu0 0.0
  %2798 = vmatprep.mubr.f32.mxu0 0.0
  %2799 = vmatmul.mubr.f32.gmra.mxu0 %v2732
  %v2800 = vpop.f32.mrf.mxu0
  %v2801 = vadd.f32 0.0, %v2800
  %v2802 = vpop.f32.mrf.mxu0
  %v2803 = vadd.f32 0.0, %v2802
  %2804 = vdwg.mxu0
  %2805 = vmatprep.subr.mxu0 0.0
  %2806 = vmatpush1.msra.mxu0 0.0
  %2807 = vmatprep.subr.mxu0 0.0
  %2808 = vmatpush1.msra.mxu0 0.0
  %2809 = vmatprep.subr.mxu0 0.0
  %2810 = vmatpush1.msra.mxu0 0.0
  %2811 = vmatprep.subr.mxu0 0.0
  %2812 = vmatpush1.msra.mxu0 0.0
  %2813 = vmatprep.subr.mxu0 0.0
  %2814 = vmatpush1.msra.mxu0 0.0
  %2815 = vmatprep.subr.mxu0 0.0
  %2816 = vmatpush1.msra.mxu0 0.0
  %2817 = vmatprep.subr.mxu0 0.0
  %2818 = vmatpush1.msra.mxu0 0.0
  %2819 = vmatprep.subr.mxu0 0.0
  %2820 = vmatpush1.msra.mxu0 0.0
  %2821 = vmatprep.subr.mxu0 0.0
  %2822 = vmatpush1.msra.mxu0 0.0
  %2823 = vmatprep.subr.mxu0 0.0
  %2824 = vmatpush1.msra.mxu0 0.0
  %2825 = vmatprep.subr.mxu0 0.0
  %2826 = vmatpush1.msra.mxu0 0.0
  %2827 = vmatprep.subr.mxu0 0.0
  %2828 = vmatpush1.msra.mxu0 0.0
  %2829 = vmatprep.subr.mxu0 %v150
  %2830 = vmatpush1.msra.mxu0 %v149
  %2831 = vmatprep.subr.mxu0 %v146
  %2832 = vmatpush1.msra.mxu0 %v145
  %2833 = vmatprep.subr.mxu0 %v142
  %2834 = vmatpush1.msra.mxu0 %v141
  %2835 = vmatprep.subr.mxu0 %v138
  %2836 = vmatpush1.msra.mxu0 %v137
  %2837 = vmatprep.subr.mxu0 0.0
  %2838 = vmatpush2.msra.mxu0 0.0
  %2839 = vmatprep.subr.mxu0 0.0
  %2840 = vmatpush2.msra.mxu0 0.0
  %2841 = vmatprep.subr.mxu0 0.0
  %2842 = vmatpush2.msra.mxu0 0.0
  %2843 = vmatprep.subr.mxu0 0.0
  %2844 = vmatpush2.msra.mxu0 0.0
  %2845 = vmatprep.subr.mxu0 0.0
  %2846 = vmatpush2.msra.mxu0 0.0
  %2847 = vmatprep.subr.mxu0 0.0
  %2848 = vmatpush2.msra.mxu0 0.0
  %2849 = vmatprep.subr.mxu0 0.0
  %2850 = vmatpush2.msra.mxu0 0.0
  %2851 = vmatprep.subr.mxu0 0.0
  %2852 = vmatpush2.msra.mxu0 0.0
  %2853 = vmatprep.subr.mxu0 0.0
  %2854 = vmatpush2.msra.mxu0 0.0
  %2855 = vmatprep.subr.mxu0 0.0
  %2856 = vmatpush2.msra.mxu0 0.0
  %2857 = vmatprep.subr.mxu0 0.0
  %2858 = vmatpush2.msra.mxu0 0.0
  %2859 = vmatprep.subr.mxu0 0.0
  %2860 = vmatpush2.msra.mxu0 0.0
  %2861 = vmatprep.subr.mxu0 0.0
  %2862 = vmatpush2.msra.mxu0 0.0
  %2863 = vmatprep.subr.mxu0 0.0
  %2864 = vmatpush2.msra.mxu0 0.0
  %2865 = vmatprep.subr.mxu0 0.0
  %2866 = vmatpush2.msra.mxu0 0.0
  %2867 = vmatprep.subr.mxu0 0.0
  %2868 = vmatpush2.msra.mxu0 0.0
  %2869 = vmatprep.mubr.f32.mxu0 0.0
  %2870 = vmatmul.mubr.f32.gmra.mxu0 %v2732
  %v2871 = vpop.f32.mrf.mxu0
  %v2872 = vadd.f32 0.0, %v2871
  %v2873 = vpop.f32.mrf.mxu0
  %v2874 = vadd.f32 0.0, %v2873
  %2875 = vdwg.mxu0
  %v2880 = vrot.slane %v2801, 1
  %v2881 = vrot.slane %v2803, 1
  %v2882 = vrot.slane %v2872, 1
  %v2883 = vrot.slane %v2874, 1
  %v2888 = vadd.f32 %v2801, %v2880
  %v2889 = vadd.f32 %v2803, %v2881
  %v2890 = vadd.f32 %v2872, %v2882
  %v2891 = vadd.f32 %v2874, %v2883
  %v2892 = vlaneseq
  %v2893 = vshrl.u32 %v2892, 7
  %v2894 = vsub.s32 0, %v2893
  %v2895 = vrot.slane %v2888, %v2894
  %v2896 = vlaneseq
  %v2897 = vshrl.u32 %v2896, 7
  %v2898 = vsub.s32 0, %v2897
  %v2899 = vrot.slane %v2889, %v2898
  %v2900 = vlaneseq
  %v2901 = vshrl.u32 %v2900, 7
  %v2902 = vsub.s32 0, %v2901
  %v2903 = vrot.slane %v2890, %v2902
  %v2904 = vlaneseq
  %v2905 = vshrl.u32 %v2904, 7
  %v2906 = vsub.s32 0, %v2905
  %v2907 = vrot.slane %v2891, %v2906
  %v2908 = vsub.f32 %v2413, %v2895
  %v2909 = vsub.f32 %v2414, %v2899
  %v2910 = vsub.f32 %v2415, %v2903
  %v2911 = vsub.f32 %v2416, %v2907
  %v2912 = vsub.f32 %v2417, %v2895
  %v2913 = vsub.f32 %v2418, %v2899
  %v2914 = vsub.f32 %v2419, %v2903
  %v2915 = vsub.f32 %v2420, %v2907
  %v2916 = vsub.f32 %v2421, %v2895
  %v2917 = vsub.f32 %v2422, %v2899
  %v2918 = vsub.f32 %v2423, %v2903
  %v2919 = vsub.f32 %v2424, %v2907
  %v2920 = vsub.f32 %v2425, %v2895
  %v2921 = vsub.f32 %v2426, %v2899
  %v2922 = vsub.f32 %v2427, %v2903
  %v2923 = vsub.f32 %v2428, %v2907
  %v2924 = vlaneseq
  %v2925 = vshrl.u32 %v2924, 7
  %v2926 = vsub.s32 2, %v2925
  %v2927 = vrot.slane %v2888, %v2926
  %v2928 = vlaneseq
  %v2929 = vshrl.u32 %v2928, 7
  %v2930 = vsub.s32 2, %v2929
  %v2931 = vrot.slane %v2889, %v2930
  %v2932 = vlaneseq
  %v2933 = vshrl.u32 %v2932, 7
  %v2934 = vsub.s32 2, %v2933
  %v2935 = vrot.slane %v2890, %v2934
  %v2936 = vlaneseq
  %v2937 = vshrl.u32 %v2936, 7
  %v2938 = vsub.s32 2, %v2937
  %v2939 = vrot.slane %v2891, %v2938
  %v2940 = vmul.f32 %v2908, %v2927
  %v2941 = vmul.f32 %v2909, %v2931
  %v2942 = vmul.f32 %v2910, %v2935
  %v2943 = vmul.f32 %v2911, %v2939
  %v2944 = vmul.f32 %v2912, %v2927
  %v2945 = vmul.f32 %v2913, %v2931
  %v2946 = vmul.f32 %v2914, %v2935
  %v2947 = vmul.f32 %v2915, %v2939
  %v2948 = vmul.f32 %v2916, %v2927
  %v2949 = vmul.f32 %v2917, %v2931
  %v2950 = vmul.f32 %v2918, %v2935
  %v2951 = vmul.f32 %v2919, %v2939
  %v2952 = vmul.f32 %v2920, %v2927
  %v2953 = vmul.f32 %v2921, %v2931
  %v2954 = vmul.f32 %v2922, %v2935
  %v2955 = vmul.f32 %v2923, %v2939
  %v2956 = vld [vmem:[%s6] sm:$0xff]
  %v2957 = vld [vmem:[%s6 + $0x8] sm:$0xff]
  %v2958 = vld [vmem:[%s7] sm:$0xff]
  %v2959 = vld [vmem:[%s7 + $0x8] sm:$0xff]
  %2961 = vset.pattern.permute.xlu0 0
  %2962 = vperm.xlu0 %2961, %v2958
  %v2963 = vpop.permute.xlu0 %2962
  %2966 = vset.pattern.permute.xlu0 0
  %2967 = vperm.xlu0 %2966, %v2959
  %v2968 = vpop.permute.xlu0 %2967
  %v2971 = vsel %vm1061, %v2956, 0
  %v2974 = vsel %vm1061, %v2957, 0
  %2976 = vmatprep.subr.mxu0 0.0
  %2977 = vmatpush1.msra.mxu0 0.0
  %2978 = vmatprep.subr.mxu0 0.0
  %2979 = vmatpush1.msra.mxu0 0.0
  %2980 = vmatprep.subr.mxu0 0.0
  %2981 = vmatpush1.msra.mxu0 0.0
  %2982 = vmatprep.subr.mxu0 0.0
  %2983 = vmatpush1.msra.mxu0 0.0
  %2984 = vmatprep.subr.mxu0 0.0
  %2985 = vmatpush1.msra.mxu0 0.0
  %2986 = vmatprep.subr.mxu0 0.0
  %2987 = vmatpush1.msra.mxu0 0.0
  %2988 = vmatprep.subr.mxu0 0.0
  %2989 = vmatpush1.msra.mxu0 0.0
  %2990 = vmatprep.subr.mxu0 0.0
  %2991 = vmatpush1.msra.mxu0 0.0
  %2992 = vmatprep.subr.mxu0 0.0
  %2993 = vmatpush1.msra.mxu0 0.0
  %2994 = vmatprep.subr.mxu0 0.0
  %2995 = vmatpush1.msra.mxu0 0.0
  %2996 = vmatprep.subr.mxu0 0.0
  %2997 = vmatpush1.msra.mxu0 0.0
  %2998 = vmatprep.subr.mxu0 0.0
  %2999 = vmatpush1.msra.mxu0 0.0
  %3000 = vmatprep.subr.mxu0 %v2953
  %3001 = vmatpush1.msra.mxu0 %v2952
  %3002 = vmatprep.subr.mxu0 %v2949
  %3003 = vmatpush1.msra.mxu0 %v2948
  %3004 = vmatprep.subr.mxu0 %v2945
  %3005 = vmatpush1.msra.mxu0 %v2944
  %3006 = vmatprep.subr.mxu0 %v2941
  %3007 = vmatpush1.msra.mxu0 %v2940
  %3008 = vmatprep.subr.mxu0 0.0
  %3009 = vmatpush2.msra.mxu0 0.0
  %3010 = vmatprep.subr.mxu0 0.0
  %3011 = vmatpush2.msra.mxu0 0.0
  %3012 = vmatprep.subr.mxu0 0.0
  %3013 = vmatpush2.msra.mxu0 0.0
  %3014 = vmatprep.subr.mxu0 0.0
  %3015 = vmatpush2.msra.mxu0 0.0
  %3016 = vmatprep.subr.mxu0 0.0
  %3017 = vmatpush2.msra.mxu0 0.0
  %3018 = vmatprep.subr.mxu0 0.0
  %3019 = vmatpush2.msra.mxu0 0.0
  %3020 = vmatprep.subr.mxu0 0.0
  %3021 = vmatpush2.msra.mxu0 0.0
  %3022 = vmatprep.subr.mxu0 0.0
  %3023 = vmatpush2.msra.mxu0 0.0
  %3024 = vmatprep.subr.mxu0 0.0
  %3025 = vmatpush2.msra.mxu0 0.0
  %3026 = vmatprep.subr.mxu0 0.0
  %3027 = vmatpush2.msra.mxu0 0.0
  %3028 = vmatprep.subr.mxu0 0.0
  %3029 = vmatpush2.msra.mxu0 0.0
  %3030 = vmatprep.subr.mxu0 0.0
  %3031 = vmatpush2.msra.mxu0 0.0
  %3032 = vmatprep.subr.mxu0 0.0
  %3033 = vmatpush2.msra.mxu0 0.0
  %3034 = vmatprep.subr.mxu0 0.0
  %3035 = vmatpush2.msra.mxu0 0.0
  %3036 = vmatprep.subr.mxu0 0.0
  %3037 = vmatpush2.msra.mxu0 0.0
  %3038 = vmatprep.subr.mxu0 0.0
  %3039 = vmatpush2.msra.mxu0 0.0
  %3040 = vmatprep.mubr.f32.mxu0 0.0
  %3041 = vmatmul.mubr.f32.gmra.mxu0 %v2971
  %v3042 = vpop.f32.mrf.mxu0
  %v3043 = vadd.f32 %v2963, %v3042
  %v3044 = vpop.f32.mrf.mxu0
  %v3045 = vadd.f32 %v2963, %v3044
  %3046 = vmatprep.mubr.f32.mxu0 0.0
  %3047 = vmatmul.mubr.f32.gmra.mxu0 %v2974
  %v3048 = vpop.f32.mrf.mxu0
  %v3049 = vadd.f32 %v2968, %v3048
  %v3050 = vpop.f32.mrf.mxu0
  %v3051 = vadd.f32 %v2968, %v3050
  %3052 = vdwg.mxu0
  %3053 = vmatprep.subr.mxu0 0.0
  %3054 = vmatpush1.msra.mxu0 0.0
  %3055 = vmatprep.subr.mxu0 0.0
  %3056 = vmatpush1.msra.mxu0 0.0
  %3057 = vmatprep.subr.mxu0 0.0
  %3058 = vmatpush1.msra.mxu0 0.0
  %3059 = vmatprep.subr.mxu0 0.0
  %3060 = vmatpush1.msra.mxu0 0.0
  %3061 = vmatprep.subr.mxu0 0.0
  %3062 = vmatpush1.msra.mxu0 0.0
  %3063 = vmatprep.subr.mxu0 0.0
  %3064 = vmatpush1.msra.mxu0 0.0
  %3065 = vmatprep.subr.mxu0 0.0
  %3066 = vmatpush1.msra.mxu0 0.0
  %3067 = vmatprep.subr.mxu0 0.0
  %3068 = vmatpush1.msra.mxu0 0.0
  %3069 = vmatprep.subr.mxu0 0.0
  %3070 = vmatpush1.msra.mxu0 0.0
  %3071 = vmatprep.subr.mxu0 0.0
  %3072 = vmatpush1.msra.mxu0 0.0
  %3073 = vmatprep.subr.mxu0 0.0
  %3074 = vmatpush1.msra.mxu0 0.0
  %3075 = vmatprep.subr.mxu0 0.0
  %3076 = vmatpush1.msra.mxu0 0.0
  %3077 = vmatprep.subr.mxu0 %v2955
  %3078 = vmatpush1.msra.mxu0 %v2954
  %3079 = vmatprep.subr.mxu0 %v2951
  %3080 = vmatpush1.msra.mxu0 %v2950
  %3081 = vmatprep.subr.mxu0 %v2947
  %3082 = vmatpush1.msra.mxu0 %v2946
  %3083 = vmatprep.subr.mxu0 %v2943
  %3084 = vmatpush1.msra.mxu0 %v2942
  %3085 = vmatprep.subr.mxu0 0.0
  %3086 = vmatpush2.msra.mxu0 0.0
  %3087 = vmatprep.subr.mxu0 0.0
  %3088 = vmatpush2.msra.mxu0 0.0
  %3089 = vmatprep.subr.mxu0 0.0
  %3090 = vmatpush2.msra.mxu0 0.0
  %3091 = vmatprep.subr.mxu0 0.0
  %3092 = vmatpush2.msra.mxu0 0.0
  %3093 = vmatprep.subr.mxu0 0.0
  %3094 = vmatpush2.msra.mxu0 0.0
  %3095 = vmatprep.subr.mxu0 0.0
  %3096 = vmatpush2.msra.mxu0 0.0
  %3097 = vmatprep.subr.mxu0 0.0
  %3098 = vmatpush2.msra.mxu0 0.0
  %3099 = vmatprep.subr.mxu0 0.0
  %3100 = vmatpush2.msra.mxu0 0.0
  %3101 = vmatprep.subr.mxu0 0.0
  %3102 = vmatpush2.msra.mxu0 0.0
  %3103 = vmatprep.subr.mxu0 0.0
  %3104 = vmatpush2.msra.mxu0 0.0
  %3105 = vmatprep.subr.mxu0 0.0
  %3106 = vmatpush2.msra.mxu0 0.0
  %3107 = vmatprep.subr.mxu0 0.0
  %3108 = vmatpush2.msra.mxu0 0.0
  %3109 = vmatprep.subr.mxu0 0.0
  %3110 = vmatpush2.msra.mxu0 0.0
  %3111 = vmatprep.subr.mxu0 0.0
  %3112 = vmatpush2.msra.mxu0 0.0
  %3113 = vmatprep.subr.mxu0 0.0
  %3114 = vmatpush2.msra.mxu0 0.0
  %3115 = vmatprep.subr.mxu0 0.0
  %3116 = vmatpush2.msra.mxu0 0.0
  %3117 = vmatprep.mubr.f32.mxu0 0.0
  %3118 = vmatmul.mubr.f32.gmra.mxu0 %v2971
  %v3119 = vpop.f32.mrf.mxu0
  %v3120 = vadd.f32 %v2963, %v3119
  %v3121 = vpop.f32.mrf.mxu0
  %v3122 = vadd.f32 %v2963, %v3121
  %3123 = vmatprep.mubr.f32.mxu0 0.0
  %3124 = vmatmul.mubr.f32.gmra.mxu0 %v2974
  %v3125 = vpop.f32.mrf.mxu0
  %v3126 = vadd.f32 %v2968, %v3125
  %v3127 = vpop.f32.mrf.mxu0
  %v3128 = vadd.f32 %v2968, %v3127
  %3129 = vdwg.mxu0
  %v3130 = vadd.f32 %v3043, %v33
  %v3131 = vadd.f32 %v3045, %v34
  %v3132 = vadd.f32 %v3120, %v35
  %v3133 = vadd.f32 %v3122, %v36
  %v3134 = vadd.f32 %v3049, %v37
  %v3135 = vadd.f32 %v3051, %v38
  %v3136 = vadd.f32 %v3126, %v39
  %v3137 = vadd.f32 %v3128, %v40
  %3138 = vst [vmem:[%s9] sm:$0xff] %v3130
  %3139 = vst [vmem:[%s9 + $0x8] sm:$0xff] %v3131
  %3140 = vst [vmem:[%s9 + $0x10] sm:$0xff] %v3132
  %3141 = vst [vmem:[%s9 + $0x18] sm:$0xff] %v3133
  %3142 = vst [vmem:[%s9 + $0x20] sm:$0xff] %v3134
  %3143 = vst [vmem:[%s9 + $0x28] sm:$0xff] %v3135
  %3144 = vst [vmem:[%s9 + $0x30] sm:$0xff] %v3136
  %3145 = vst [vmem:[%s9 + $0x38] sm:$0xff] %v3137
  // Predicated region
  $region38: #{visual_conv1d.1} parent=0 // pred_check
    _
  $region39: #{visual_conv1d.1} parent=0 // pred_check_branch
    %3147 = sbr.rel (0) target = $region41
  $region40: #{visual_conv1d.1} parent=0 // pred_region
    _
  $region41: #{visual_conv1d.1} parent=0 // pred_fallthru
    _
  // Predicated region
  $region42: #{visual_conv1d.1} parent=0 // pred_check
    _
  $region43: #{visual_conv1d.1} parent=0 // pred_check_branch
    %3149 = sbr.rel (0) target = $region45
  $region44: #{visual_conv1d.1} parent=0 // pred_region
    _
  $region45: #{visual_conv1d.1} parent=0 // pred_fallthru
    _

</llo_original>
